<compile_context>
chip_gen: v6e
topology: v6e:2x2x1
jax: 0.10.0
libtpu: 0.0.40
codegen_flags: <defaults>
</compile_context>

<pallas_src>
import functools

import numpy as np
import jax
import jax.numpy as jnp
from jax.experimental import pallas as pl
from jax.experimental.pallas import tpu as pltpu


# ----------------------------------------------------------------------------
# Spherical sampling-pattern generation (pure NumPy glue, ported verbatim).
# ----------------------------------------------------------------------------
def get_xy(delta_phi, delta_theta):
    t_th, t_ph, c_th = np.tan(delta_theta), np.tan(delta_phi), np.cos(delta_theta)
    return np.array([
        [(-t_th, 1 / c_th * t_ph), (0, t_ph), (t_th, 1 / c_th * t_ph)],
        [(-t_th, 0), (1, 1), (t_th, 0)],
        [(-t_th, -1 / c_th * t_ph), (0, -t_ph), (t_th, -1 / c_th * t_ph)],
    ])


def cal_index(h, w, img_r, img_c):
    phi = -((img_r + 0.5) / h * np.pi - np.pi / 2)
    theta = (img_c + 0.5) / w * 2 * np.pi - np.pi
    delta_phi = np.pi / h
    delta_theta = 2 * np.pi / w
    xys = get_xy(delta_phi, delta_theta)
    x = xys[..., 0]
    y = xys[..., 1]
    rho = np.sqrt(x ** 2 + y ** 2)
    v = np.arctan(rho)
    new_phi = np.arcsin(np.cos(v) * np.sin(phi) + y * np.sin(v) * np.cos(phi) / rho)
    new_theta = theta + np.arctan(
        x * np.sin(v) / (rho * np.cos(phi) * np.cos(v) - y * np.sin(phi) * np.sin(v)))
    new_r = (-new_phi + np.pi / 2) * h / np.pi - 0.5
    new_c = (new_theta + np.pi) * w / 2 / np.pi - 0.5
    new_c = (new_c + w) % w
    new_result = np.stack([new_r, new_c], axis=-1)
    new_result[1, 1] = (img_r, img_c)
    return new_result


def gen_filters_coordinates(h, w, stride=1):
    co = np.array([[cal_index(h, w, i, j) for j in range(0, w, stride)]
                   for i in range(0, h, stride)])
    return np.ascontiguousarray(co.transpose([4, 0, 1, 2, 3]))


def gen_grid_coordinates(h, w, stride=1):
    coordinates = gen_filters_coordinates(h, w, stride).copy()
    coordinates[0] = coordinates[0] * 2 / h - 1
    coordinates[1] = coordinates[1] * 2 / w - 1
    coordinates = coordinates[::-1]
    coordinates = coordinates.transpose(1, 3, 2, 4, 0)
    sz = coordinates.shape
    coordinates = coordinates.reshape(1, sz[0] * sz[1], sz[2] * sz[3], sz[4])
    return coordinates.copy()


# ----------------------------------------------------------------------------
# Host-side (cached, vectorized) construction of the banded interpolation op.
# ----------------------------------------------------------------------------
def _round_up(a, b):
    return (a + b - 1) // b * b


def _cdiv(a, b):
    return (a + b - 1) // b


def _bilinear_taps(H, W, stride):
    """All bilinear corner taps of grid_sample for the spherical 3x3 pattern."""
    grid = gen_grid_coordinates(H, W, stride).astype(np.float64)[0]   # (3Hs,3Ws,2)
    ix = ((grid[..., 0] + 1.0) * W - 1.0) / 2.0        # align_corners=False
    iy = ((grid[..., 1] + 1.0) * H - 1.0) / 2.0
    x0 = np.floor(ix).astype(np.int64)
    y0 = np.floor(iy).astype(np.int64)
    x1, y1 = x0 + 1, y0 + 1
    wx1 = ix - x0
    wx0 = 1.0 - wx1
    wy1 = iy - y0
    wy0 = 1.0 - wy1
    ys = np.stack([y0, y0, y1, y1], 0)                 # (4, 3Hs, 3Ws)
    xs = np.stack([x0, x1, x0, x1], 0)
    ws = np.stack([wy0 * wx0, wy0 * wx1, wy1 * wx0, wy1 * wx1], 0)
    return ys, xs, ws


@functools.lru_cache(maxsize=None)
def _build_pool_plan(H, W, stride):
    """Banded interpolation operator (bf16, on device) + tiling metadata."""
    Hs = len(range(0, H, stride))
    Ws = len(range(0, W, stride))
    ys, xs, ws = _bilinear_taps(H, W, stride)
    GH, GW = ys.shape[1:]
    gi = np.broadcast_to(np.arange(GH)[None, :, None], ys.shape)
    gj = np.broadcast_to(np.arange(GW)[None, None, :], ys.shape)
    tap = (gi % 3) * 3 + (gj % 3)                      # pooling-window tap 0..8
    pp = gi // 3                                       # pooled output row
    qq = gj // 3                                       # pooled output col
    valid = (ys >= 0) & (ys < H) & (xs >= 0) & (xs < W) & (ws != 0.0)

    # Choose XB input rows per K-block so that every pooled-row block only
    # touches the prev/cur/next K-blocks (verified numerically on the taps),
    # minimizing total MXU work.
    best = None                                        # (mxu_cost, XB)
    for cand in range(1, H):
        if H % cand or cand % stride or (cand * W) % 128:
            continue
        rb_c = cand // stride                          # pooled rows per block
        n_blk = _cdiv(Hs, rb_c)
        if n_blk < 2:
            continue
        slot = ys // cand - pp // rb_c + 1
        if (valid & ((slot < 0) | (slot > 2))).any():
            continue                                   # band does not fit
        cost = n_blk * 3 * cand * W * 9 * _round_up(rb_c * Ws, 128)
        if best is None or cost < best[0]:
            best = (cost, cand)

    if best is not None:
        XB = best[1]
        n_slots = 3
        RB = XB // stride
        Hs_blocks = _cdiv(Hs, RB)
        n_xblk = H // XB
    else:
        # TODO(synk): no banded row split exists (e.g. stride not dividing H);
        # fall back to one dense slab — fine for small H*W only.
        XB, n_slots, RB, Hs_blocks, n_xblk = H, 1, Hs, 1, 1
    Wop = _round_up(RB * Ws, 128)                      # lane-aligned out columns

    S = np.zeros((Hs_blocks, n_slots, XB * W, 9 * Wop), np.float32)
    yv, xv, wv = ys[valid], xs[valid], ws[valid]
    kv, pv, qv = tap[valid], pp[valid], qq[valid]
    rbv = pv // RB
    slotv = (yv // XB - rbv + 1) if n_slots == 3 else np.zeros_like(yv)
    rowv = (yv % XB) * W + xv
    colv = kv * Wop + (pv - rbv * RB) * Ws + qv
    np.add.at(S, (rbv, slotv, rowv, colv), wv.astype(np.float32))

    meta = dict(Hs=Hs, Ws=Ws, XB=XB, RB=RB, Wop=Wop,
                Hs_blocks=Hs_blocks, n_xblk=n_xblk, n_slots=n_slots)
    return jnp.asarray(S, dtype=jnp.bfloat16), meta


# ----------------------------------------------------------------------------
# Pallas kernel: per-tap MXU matmuls over the banded slabs + running max.
# ----------------------------------------------------------------------------
def _sphere_pool_kernel(*refs, wop, n_slots, n_taps=9):
    x_refs = refs[:n_slots]                  # n_slots x (TB, XB*W) f32 tiles
    s_ref = refs[n_slots]                    # (1, n_slots, XB*W, 9*Wop) bf16
    o_ref = refs[n_slots + 1]                # (TB, Wop) f32

    # f32 -> bf16 cast on the VPU (hidden under MXU work); cast once, reuse
    # across all 9 taps.
    xs = [r[...].astype(jnp.bfloat16) for r in x_refs]

    m = None
    for k in range(n_taps):                  # static unroll over pooling taps
        acc = None
        for d in range(n_slots):             # prev / cur / next input-row band
            part = jnp.dot(xs[d], s_ref[0, d, :, k * wop:(k + 1) * wop],
                           preferred_element_type=jnp.float32)
            acc = part if acc is None else acc + part
        m = acc if m is None else jnp.maximum(m, acc)   # running 9-tap max
    o_ref[...] = m.astype(o_ref.dtype)


def sphere_max_pool2d(x, stride=1):
    N, C, H, W = x.shape
    S, meta = _build_pool_plan(int(H), int(W), int(stride))
    Hs, Ws = meta["Hs"], meta["Ws"]
    XB, RB, Wop = meta["XB"], meta["RB"], meta["Wop"]
    Hs_blocks, n_xblk, n_slots = meta["Hs_blocks"], meta["n_xblk"], meta["n_slots"]

    NC = N * C
    x_flat = x.reshape(NC, H * W)            # keep f32; cast inside the kernel

    # Row tile: MXU-height 256 for big batches; guarantee >= 2 grid blocks in
    # total so v7x's two TensorCores both get work.
    TB = min(256, NC)
    n_i = _cdiv(NC, TB)
    if Hs_blocks * n_i < 2 and NC >= 16:
        TB = _round_up(_cdiv(NC, 2), 8)
        n_i = _cdiv(NC, TB)

    # VMEM budget from the actual chip capacity (v7x: 64 MiB, v5e/v6e: 128 MiB).
    try:
        vmem_cap = int(pltpu.get_tpu_info().vmem_capacity_bytes)
    except Exception:
        vmem_cap = 64 * 1024 * 1024          # conservative (v7x)
    x_tile = TB * XB * W * 4
    s_blk = n_slots * XB * W * 9 * Wop * 2
    o_tile = TB * Wop * 4
    live = 2 * TB * Wop * 4 + n_slots * TB * XB * W * 2
    vmem_needed = 2 * (n_slots * x_tile + s_blk + o_tile) + live
    vmem_limit = int(min(max(2 * vmem_needed, 32 * 1024 * 1024),
                         int(0.75 * vmem_cap)))

    flops = 2 * NC * Hs_blocks * n_slots * (XB * W) * (9 * Wop)
    bytes_accessed = (n_slots * NC * H * W * 4 + int(S.size) * 2
                      + NC * Hs_blocks * Wop * 4)

    def x_imap(d):
        if n_slots == 1:
            return lambda rb, i: (i, 0)
        def imap(rb, i):
            return (i, jnp.clip(rb - 1 + d, 0, n_xblk - 1))
        return imap

    in_specs = [pl.BlockSpec((TB, XB * W), x_imap(d)) for d in range(n_slots)]
    in_specs.append(pl.BlockSpec((1, n_slots, XB * W, 9 * Wop),
                                 lambda rb, i: (rb, 0, 0, 0)))

    out = pl.pallas_call(
        functools.partial(_sphere_pool_kernel, wop=Wop, n_slots=n_slots),
        out_shape=jax.ShapeDtypeStruct((NC, Hs_blocks * Wop), jnp.float32),
        grid=(Hs_blocks, n_i),               # rb outer => each S block DMA'd once
        in_specs=in_specs,
        out_specs=pl.BlockSpec((TB, Wop), lambda rb, i: (i, rb)),
        compiler_params=pltpu.CompilerParams(
            dimension_semantics=("parallel", "parallel"),
            vmem_limit_bytes=vmem_limit),
        cost_estimate=pl.CostEstimate(flops=int(flops), transcendentals=0,
                                      bytes_accessed=int(bytes_accessed)),
    )(*([x_flat] * n_slots + [S]))

    out = out.reshape(NC, Hs_blocks, Wop)[:, :, :RB * Ws]
    out = out.reshape(NC, Hs_blocks * RB, Ws)[:, :Hs, :]
    return out.reshape(N, C, Hs, Ws)


# ----------------------------------------------------------------------------
# Pure NumPy reference (grid_sample bilinear/zeros/align_corners=False + maxpool)
# ----------------------------------------------------------------------------
def _reference(x, stride=1):
    N, C, H, W = x.shape
    grid = gen_grid_coordinates(H, W, stride).astype(np.float32)[0]
    ix = ((grid[..., 0].astype(np.float64) + 1.0) * W - 1.0) / 2.0
    iy = ((grid[..., 1].astype(np.float64) + 1.0) * H - 1.0) / 2.0
    x0 = np.floor(ix).astype(np.int64)
    y0 = np.floor(iy).astype(np.int64)
    x1, y1 = x0 + 1, y0 + 1
    wx1 = ix - x0
    wx0 = 1.0 - wx1
    wy1 = iy - y0
    wy0 = 1.0 - wy1

    def gather(yy, xx):
        valid = (yy >= 0) & (yy < H) & (xx >= 0) & (xx < W)
        yc = np.clip(yy, 0, H - 1)
        xc = np.clip(xx, 0, W - 1)
        return x[:, :, yc, xc] * valid

    samp = (gather(y0, x0) * (wy0 * wx0) + gather(y0, x1) * (wy0 * wx1) +
            gather(y1, x0) * (wy1 * wx0) + gather(y1, x1) * (wy1 * wx1))
    Hg, Wg = samp.shape[2], samp.shape[3]
    samp = samp.reshape(N, C, Hg // 3, 3, Wg // 3, 3)
    return samp.max(axis=(3, 5))


if __name__ == "__main__":
    key = jax.random.PRNGKey(0)
    x = jax.random.normal(key, (2, 4, 16, 16), dtype=jnp.float32)

    out = sphere_max_pool2d(x, stride=1)
    out = jax.block_until_ready(out)

    ref = _reference(np.asarray(x), stride=1)
    assert out.shape == (2, 4, 16, 16), out.shape
    # bf16 weights / in-kernel bf16 x, f32 accumulation: loosened tolerance.
    np.testing.assert_allclose(np.asarray(out), ref, rtol=5e-2, atol=5e-2)
    print("KERNEL_OK")
</pallas_src>

<mosaic_0001>
module attributes {stable_mosaic.version = 11 : i64} {
  func.func @_sphere_pool_kernel(%arg0: i32, %arg1: i32, %arg2: memref<8x128xf32, #tpu.memory_space<vmem>>, %arg3: memref<8x128xf32, #tpu.memory_space<vmem>>, %arg4: memref<8x128xf32, #tpu.memory_space<vmem>>, %arg5: memref<1x3x128x1152xbf16, #tpu.memory_space<vmem>>, %arg6: memref<8x128xf32, #tpu.memory_space<vmem>>) attributes {dimension_semantics = [#tpu.dimension_semantics<parallel>, #tpu.dimension_semantics<parallel>], iteration_bounds = array<i64: 2, 1>, scalar_prefetch = 0 : i64, scratch_operands = 0 : i64, tpu.core_type = #tpu.core_type<tc>, window_params = [{transform_indices = @transform_0, window_bounds = array<i64: 8, 128>}, {transform_indices = @transform_1, window_bounds = array<i64: 8, 128>}, {transform_indices = @transform_2, window_bounds = array<i64: 8, 128>}, {transform_indices = @transform_3, window_bounds = array<i64: 1, 3, 128, 1152>}, {transform_indices = @transform_4, window_bounds = array<i64: 8, 128>}]} {
    %c0 = arith.constant 0 : index
    %c0_0 = arith.constant 0 : index
    %0 = vector.load %arg2[%c0, %c0_0] : memref<8x128xf32, #tpu.memory_space<vmem>>, vector<8x128xf32>
    %1 = arith.truncf %0 : vector<8x128xf32> to vector<8x128xbf16>
    %c0_1 = arith.constant 0 : index
    %c0_2 = arith.constant 0 : index
    %2 = vector.load %arg3[%c0_1, %c0_2] : memref<8x128xf32, #tpu.memory_space<vmem>>, vector<8x128xf32>
    %3 = arith.truncf %2 : vector<8x128xf32> to vector<8x128xbf16>
    %c0_3 = arith.constant 0 : index
    %c0_4 = arith.constant 0 : index
    %4 = vector.load %arg4[%c0_3, %c0_4] : memref<8x128xf32, #tpu.memory_space<vmem>>, vector<8x128xf32>
    %5 = arith.truncf %4 : vector<8x128xf32> to vector<8x128xbf16>
    %c0_5 = arith.constant 0 : index
    %c0_6 = arith.constant 0 : index
    %c0_7 = arith.constant 0 : index
    %c0_8 = arith.constant 0 : index
    %6 = vector.load %arg5[%c0_5, %c0_6, %c0_7, %c0_8] : memref<1x3x128x1152xbf16, #tpu.memory_space<vmem>>, vector<1x1x128x128xbf16>
    %7 = vector.shape_cast %6 : vector<1x1x128x128xbf16> to vector<128x128xbf16>
    %cst = arith.constant dense<0.000000e+00> : vector<8x128xf32>
    %8 = tpu.matmul %1, %7, %cst {dimension_numbers = #tpu.dot_dimension_numbers<[1], [0], [0], [1], [0, 0, 1, 1], [], []>} : vector<8x128xbf16>, vector<128x128xbf16>, vector<8x128xf32> -> vector<8x128xf32>
    %c0_9 = arith.constant 0 : index
    %c1 = arith.constant 1 : index
    %c0_10 = arith.constant 0 : index
    %c0_11 = arith.constant 0 : index
    %9 = vector.load %arg5[%c0_9, %c1, %c0_10, %c0_11] : memref<1x3x128x1152xbf16, #tpu.memory_space<vmem>>, vector<1x1x128x128xbf16>
    %10 = vector.shape_cast %9 : vector<1x1x128x128xbf16> to vector<128x128xbf16>
    %cst_12 = arith.constant dense<0.000000e+00> : vector<8x128xf32>
    %11 = tpu.matmul %3, %10, %cst_12 {dimension_numbers = #tpu.dot_dimension_numbers<[1], [0], [0], [1], [0, 0, 1, 1], [], []>} : vector<8x128xbf16>, vector<128x128xbf16>, vector<8x128xf32> -> vector<8x128xf32>
    %12 = arith.addf %8, %11 : vector<8x128xf32>
    %c0_13 = arith.constant 0 : index
    %c2 = arith.constant 2 : index
    %c0_14 = arith.constant 0 : index
    %c0_15 = arith.constant 0 : index
    %13 = vector.load %arg5[%c0_13, %c2, %c0_14, %c0_15] : memref<1x3x128x1152xbf16, #tpu.memory_space<vmem>>, vector<1x1x128x128xbf16>
    %14 = vector.shape_cast %13 : vector<1x1x128x128xbf16> to vector<128x128xbf16>
    %cst_16 = arith.constant dense<0.000000e+00> : vector<8x128xf32>
    %15 = tpu.matmul %5, %14, %cst_16 {dimension_numbers = #tpu.dot_dimension_numbers<[1], [0], [0], [1], [0, 0, 1, 1], [], []>} : vector<8x128xbf16>, vector<128x128xbf16>, vector<8x128xf32> -> vector<8x128xf32>
    %16 = arith.addf %12, %15 : vector<8x128xf32>
    %c0_17 = arith.constant 0 : index
    %c0_18 = arith.constant 0 : index
    %c0_19 = arith.constant 0 : index
    %c128 = arith.constant 128 : index
    %17 = vector.load %arg5[%c0_17, %c0_18, %c0_19, %c128] : memref<1x3x128x1152xbf16, #tpu.memory_space<vmem>>, vector<1x1x128x128xbf16>
    %18 = vector.shape_cast %17 : vector<1x1x128x128xbf16> to vector<128x128xbf16>
    %cst_20 = arith.constant dense<0.000000e+00> : vector<8x128xf32>
    %19 = tpu.matmul %1, %18, %cst_20 {dimension_numbers = #tpu.dot_dimension_numbers<[1], [0], [0], [1], [0, 0, 1, 1], [], []>} : vector<8x128xbf16>, vector<128x128xbf16>, vector<8x128xf32> -> vector<8x128xf32>
    %c0_21 = arith.constant 0 : index
    %c1_22 = arith.constant 1 : index
    %c0_23 = arith.constant 0 : index
    %c128_24 = arith.constant 128 : index
    %20 = vector.load %arg5[%c0_21, %c1_22, %c0_23, %c128_24] : memref<1x3x128x1152xbf16, #tpu.memory_space<vmem>>, vector<1x1x128x128xbf16>
    %21 = vector.shape_cast %20 : vector<1x1x128x128xbf16> to vector<128x128xbf16>
    %cst_25 = arith.constant dense<0.000000e+00> : vector<8x128xf32>
    %22 = tpu.matmul %3, %21, %cst_25 {dimension_numbers = #tpu.dot_dimension_numbers<[1], [0], [0], [1], [0, 0, 1, 1], [], []>} : vector<8x128xbf16>, vector<128x128xbf16>, vector<8x128xf32> -> vector<8x128xf32>
    %23 = arith.addf %19, %22 : vector<8x128xf32>
    %c0_26 = arith.constant 0 : index
    %c2_27 = arith.constant 2 : index
    %c0_28 = arith.constant 0 : index
    %c128_29 = arith.constant 128 : index
    %24 = vector.load %arg5[%c0_26, %c2_27, %c0_28, %c128_29] : memref<1x3x128x1152xbf16, #tpu.memory_space<vmem>>, vector<1x1x128x128xbf16>
    %25 = vector.shape_cast %24 : vector<1x1x128x128xbf16> to vector<128x128xbf16>
    %cst_30 = arith.constant dense<0.000000e+00> : vector<8x128xf32>
    %26 = tpu.matmul %5, %25, %cst_30 {dimension_numbers = #tpu.dot_dimension_numbers<[1], [0], [0], [1], [0, 0, 1, 1], [], []>} : vector<8x128xbf16>, vector<128x128xbf16>, vector<8x128xf32> -> vector<8x128xf32>
    %27 = arith.addf %23, %26 : vector<8x128xf32>
    %28 = arith.maximumf %16, %27 : vector<8x128xf32>
    %c0_31 = arith.constant 0 : index
    %c0_32 = arith.constant 0 : index
    %c0_33 = arith.constant 0 : index
    %c256 = arith.constant 256 : index
    %29 = vector.load %arg5[%c0_31, %c0_32, %c0_33, %c256] : memref<1x3x128x1152xbf16, #tpu.memory_space<vmem>>, vector<1x1x128x128xbf16>
    %30 = vector.shape_cast %29 : vector<1x1x128x128xbf16> to vector<128x128xbf16>
    %cst_34 = arith.constant dense<0.000000e+00> : vector<8x128xf32>
    %31 = tpu.matmul %1, %30, %cst_34 {dimension_numbers = #tpu.dot_dimension_numbers<[1], [0], [0], [1], [0, 0, 1, 1], [], []>} : vector<8x128xbf16>, vector<128x128xbf16>, vector<8x128xf32> -> vector<8x128xf32>
    %c0_35 = arith.constant 0 : index
    %c1_36 = arith.constant 1 : index
    %c0_37 = arith.constant 0 : index
    %c256_38 = arith.constant 256 : index
    %32 = vector.load %arg5[%c0_35, %c1_36, %c0_37, %c256_38] : memref<1x3x128x1152xbf16, #tpu.memory_space<vmem>>, vector<1x1x128x128xbf16>
    %33 = vector.shape_cast %32 : vector<1x1x128x128xbf16> to vector<128x128xbf16>
    %cst_39 = arith.constant dense<0.000000e+00> : vector<8x128xf32>
    %34 = tpu.matmul %3, %33, %cst_39 {dimension_numbers = #tpu.dot_dimension_numbers<[1], [0], [0], [1], [0, 0, 1, 1], [], []>} : vector<8x128xbf16>, vector<128x128xbf16>, vector<8x128xf32> -> vector<8x128xf32>
    %35 = arith.addf %31, %34 : vector<8x128xf32>
    %c0_40 = arith.constant 0 : index
    %c2_41 = arith.constant 2 : index
    %c0_42 = arith.constant 0 : index
    %c256_43 = arith.constant 256 : index
    %36 = vector.load %arg5[%c0_40, %c2_41, %c0_42, %c256_43] : memref<1x3x128x1152xbf16, #tpu.memory_space<vmem>>, vector<1x1x128x128xbf16>
    %37 = vector.shape_cast %36 : vector<1x1x128x128xbf16> to vector<128x128xbf16>
    %cst_44 = arith.constant dense<0.000000e+00> : vector<8x128xf32>
    %38 = tpu.matmul %5, %37, %cst_44 {dimension_numbers = #tpu.dot_dimension_numbers<[1], [0], [0], [1], [0, 0, 1, 1], [], []>} : vector<8x128xbf16>, vector<128x128xbf16>, vector<8x128xf32> -> vector<8x128xf32>
    %39 = arith.addf %35, %38 : vector<8x128xf32>
    %40 = arith.maximumf %28, %39 : vector<8x128xf32>
    %c0_45 = arith.constant 0 : index
    %c0_46 = arith.constant 0 : index
    %c0_47 = arith.constant 0 : index
    %c384 = arith.constant 384 : index
    %41 = vector.load %arg5[%c0_45, %c0_46, %c0_47, %c384] : memref<1x3x128x1152xbf16, #tpu.memory_space<vmem>>, vector<1x1x128x128xbf16>
    %42 = vector.shape_cast %41 : vector<1x1x128x128xbf16> to vector<128x128xbf16>
    %cst_48 = arith.constant dense<0.000000e+00> : vector<8x128xf32>
    %43 = tpu.matmul %1, %42, %cst_48 {dimension_numbers = #tpu.dot_dimension_numbers<[1], [0], [0], [1], [0, 0, 1, 1], [], []>} : vector<8x128xbf16>, vector<128x128xbf16>, vector<8x128xf32> -> vector<8x128xf32>
    %c0_49 = arith.constant 0 : index
    %c1_50 = arith.constant 1 : index
    %c0_51 = arith.constant 0 : index
    %c384_52 = arith.constant 384 : index
    %44 = vector.load %arg5[%c0_49, %c1_50, %c0_51, %c384_52] : memref<1x3x128x1152xbf16, #tpu.memory_space<vmem>>, vector<1x1x128x128xbf16>
    %45 = vector.shape_cast %44 : vector<1x1x128x128xbf16> to vector<128x128xbf16>
    %cst_53 = arith.constant dense<0.000000e+00> : vector<8x128xf32>
    %46 = tpu.matmul %3, %45, %cst_53 {dimension_numbers = #tpu.dot_dimension_numbers<[1], [0], [0], [1], [0, 0, 1, 1], [], []>} : vector<8x128xbf16>, vector<128x128xbf16>, vector<8x128xf32> -> vector<8x128xf32>
    %47 = arith.addf %43, %46 : vector<8x128xf32>
    %c0_54 = arith.constant 0 : index
    %c2_55 = arith.constant 2 : index
    %c0_56 = arith.constant 0 : index
    %c384_57 = arith.constant 384 : index
    %48 = vector.load %arg5[%c0_54, %c2_55, %c0_56, %c384_57] : memref<1x3x128x1152xbf16, #tpu.memory_space<vmem>>, vector<1x1x128x128xbf16>
    %49 = vector.shape_cast %48 : vector<1x1x128x128xbf16> to vector<128x128xbf16>
    %cst_58 = arith.constant dense<0.000000e+00> : vector<8x128xf32>
    %50 = tpu.matmul %5, %49, %cst_58 {dimension_numbers = #tpu.dot_dimension_numbers<[1], [0], [0], [1], [0, 0, 1, 1], [], []>} : vector<8x128xbf16>, vector<128x128xbf16>, vector<8x128xf32> -> vector<8x128xf32>
    %51 = arith.addf %47, %50 : vector<8x128xf32>
    %52 = arith.maximumf %40, %51 : vector<8x128xf32>
    %c0_59 = arith.constant 0 : index
    %c0_60 = arith.constant 0 : index
    %c0_61 = arith.constant 0 : index
    %c512 = arith.constant 512 : index
    %53 = vector.load %arg5[%c0_59, %c0_60, %c0_61, %c512] : memref<1x3x128x1152xbf16, #tpu.memory_space<vmem>>, vector<1x1x128x128xbf16>
    %54 = vector.shape_cast %53 : vector<1x1x128x128xbf16> to vector<128x128xbf16>
    %cst_62 = arith.constant dense<0.000000e+00> : vector<8x128xf32>
    %55 = tpu.matmul %1, %54, %cst_62 {dimension_numbers = #tpu.dot_dimension_numbers<[1], [0], [0], [1], [0, 0, 1, 1], [], []>} : vector<8x128xbf16>, vector<128x128xbf16>, vector<8x128xf32> -> vector<8x128xf32>
    %c0_63 = arith.constant 0 : index
    %c1_64 = arith.constant 1 : index
    %c0_65 = arith.constant 0 : index
    %c512_66 = arith.constant 512 : index
    %56 = vector.load %arg5[%c0_63, %c1_64, %c0_65, %c512_66] : memref<1x3x128x1152xbf16, #tpu.memory_space<vmem>>, vector<1x1x128x128xbf16>
    %57 = vector.shape_cast %56 : vector<1x1x128x128xbf16> to vector<128x128xbf16>
    %cst_67 = arith.constant dense<0.000000e+00> : vector<8x128xf32>
    %58 = tpu.matmul %3, %57, %cst_67 {dimension_numbers = #tpu.dot_dimension_numbers<[1], [0], [0], [1], [0, 0, 1, 1], [], []>} : vector<8x128xbf16>, vector<128x128xbf16>, vector<8x128xf32> -> vector<8x128xf32>
    %59 = arith.addf %55, %58 : vector<8x128xf32>
    %c0_68 = arith.constant 0 : index
    %c2_69 = arith.constant 2 : index
    %c0_70 = arith.constant 0 : index
    %c512_71 = arith.constant 512 : index
    %60 = vector.load %arg5[%c0_68, %c2_69, %c0_70, %c512_71] : memref<1x3x128x1152xbf16, #tpu.memory_space<vmem>>, vector<1x1x128x128xbf16>
    %61 = vector.shape_cast %60 : vector<1x1x128x128xbf16> to vector<128x128xbf16>
    %cst_72 = arith.constant dense<0.000000e+00> : vector<8x128xf32>
    %62 = tpu.matmul %5, %61, %cst_72 {dimension_numbers = #tpu.dot_dimension_numbers<[1], [0], [0], [1], [0, 0, 1, 1], [], []>} : vector<8x128xbf16>, vector<128x128xbf16>, vector<8x128xf32> -> vector<8x128xf32>
    %63 = arith.addf %59, %62 : vector<8x128xf32>
    %64 = arith.maximumf %52, %63 : vector<8x128xf32>
    %c0_73 = arith.constant 0 : index
    %c0_74 = arith.constant 0 : index
    %c0_75 = arith.constant 0 : index
    %c640 = arith.constant 640 : index
    %65 = vector.load %arg5[%c0_73, %c0_74, %c0_75, %c640] : memref<1x3x128x1152xbf16, #tpu.memory_space<vmem>>, vector<1x1x128x128xbf16>
    %66 = vector.shape_cast %65 : vector<1x1x128x128xbf16> to vector<128x128xbf16>
    %cst_76 = arith.constant dense<0.000000e+00> : vector<8x128xf32>
    %67 = tpu.matmul %1, %66, %cst_76 {dimension_numbers = #tpu.dot_dimension_numbers<[1], [0], [0], [1], [0, 0, 1, 1], [], []>} : vector<8x128xbf16>, vector<128x128xbf16>, vector<8x128xf32> -> vector<8x128xf32>
    %c0_77 = arith.constant 0 : index
    %c1_78 = arith.constant 1 : index
    %c0_79 = arith.constant 0 : index
    %c640_80 = arith.constant 640 : index
    %68 = vector.load %arg5[%c0_77, %c1_78, %c0_79, %c640_80] : memref<1x3x128x1152xbf16, #tpu.memory_space<vmem>>, vector<1x1x128x128xbf16>
    %69 = vector.shape_cast %68 : vector<1x1x128x128xbf16> to vector<128x128xbf16>
    %cst_81 = arith.constant dense<0.000000e+00> : vector<8x128xf32>
    %70 = tpu.matmul %3, %69, %cst_81 {dimension_numbers = #tpu.dot_dimension_numbers<[1], [0], [0], [1], [0, 0, 1, 1], [], []>} : vector<8x128xbf16>, vector<128x128xbf16>, vector<8x128xf32> -> vector<8x128xf32>
    %71 = arith.addf %67, %70 : vector<8x128xf32>
    %c0_82 = arith.constant 0 : index
    %c2_83 = arith.constant 2 : index
    %c0_84 = arith.constant 0 : index
    %c640_85 = arith.constant 640 : index
    %72 = vector.load %arg5[%c0_82, %c2_83, %c0_84, %c640_85] : memref<1x3x128x1152xbf16, #tpu.memory_space<vmem>>, vector<1x1x128x128xbf16>
    %73 = vector.shape_cast %72 : vector<1x1x128x128xbf16> to vector<128x128xbf16>
    %cst_86 = arith.constant dense<0.000000e+00> : vector<8x128xf32>
    %74 = tpu.matmul %5, %73, %cst_86 {dimension_numbers = #tpu.dot_dimension_numbers<[1], [0], [0], [1], [0, 0, 1, 1], [], []>} : vector<8x128xbf16>, vector<128x128xbf16>, vector<8x128xf32> -> vector<8x128xf32>
    %75 = arith.addf %71, %74 : vector<8x128xf32>
    %76 = arith.maximumf %64, %75 : vector<8x128xf32>
    %c0_87 = arith.constant 0 : index
    %c0_88 = arith.constant 0 : index
    %c0_89 = arith.constant 0 : index
    %c768 = arith.constant 768 : index
    %77 = vector.load %arg5[%c0_87, %c0_88, %c0_89, %c768] : memref<1x3x128x1152xbf16, #tpu.memory_space<vmem>>, vector<1x1x128x128xbf16>
    %78 = vector.shape_cast %77 : vector<1x1x128x128xbf16> to vector<128x128xbf16>
    %cst_90 = arith.constant dense<0.000000e+00> : vector<8x128xf32>
    %79 = tpu.matmul %1, %78, %cst_90 {dimension_numbers = #tpu.dot_dimension_numbers<[1], [0], [0], [1], [0, 0, 1, 1], [], []>} : vector<8x128xbf16>, vector<128x128xbf16>, vector<8x128xf32> -> vector<8x128xf32>
    %c0_91 = arith.constant 0 : index
    %c1_92 = arith.constant 1 : index
    %c0_93 = arith.constant 0 : index
    %c768_94 = arith.constant 768 : index
    %80 = vector.load %arg5[%c0_91, %c1_92, %c0_93, %c768_94] : memref<1x3x128x1152xbf16, #tpu.memory_space<vmem>>, vector<1x1x128x128xbf16>
    %81 = vector.shape_cast %80 : vector<1x1x128x128xbf16> to vector<128x128xbf16>
    %cst_95 = arith.constant dense<0.000000e+00> : vector<8x128xf32>
    %82 = tpu.matmul %3, %81, %cst_95 {dimension_numbers = #tpu.dot_dimension_numbers<[1], [0], [0], [1], [0, 0, 1, 1], [], []>} : vector<8x128xbf16>, vector<128x128xbf16>, vector<8x128xf32> -> vector<8x128xf32>
    %83 = arith.addf %79, %82 : vector<8x128xf32>
    %c0_96 = arith.constant 0 : index
    %c2_97 = arith.constant 2 : index
    %c0_98 = arith.constant 0 : index
    %c768_99 = arith.constant 768 : index
    %84 = vector.load %arg5[%c0_96, %c2_97, %c0_98, %c768_99] : memref<1x3x128x1152xbf16, #tpu.memory_space<vmem>>, vector<1x1x128x128xbf16>
    %85 = vector.shape_cast %84 : vector<1x1x128x128xbf16> to vector<128x128xbf16>
    %cst_100 = arith.constant dense<0.000000e+00> : vector<8x128xf32>
    %86 = tpu.matmul %5, %85, %cst_100 {dimension_numbers = #tpu.dot_dimension_numbers<[1], [0], [0], [1], [0, 0, 1, 1], [], []>} : vector<8x128xbf16>, vector<128x128xbf16>, vector<8x128xf32> -> vector<8x128xf32>
    %87 = arith.addf %83, %86 : vector<8x128xf32>
    %88 = arith.maximumf %76, %87 : vector<8x128xf32>
    %c0_101 = arith.constant 0 : index
    %c0_102 = arith.constant 0 : index
    %c0_103 = arith.constant 0 : index
    %c896 = arith.constant 896 : index
    %89 = vector.load %arg5[%c0_101, %c0_102, %c0_103, %c896] : memref<1x3x128x1152xbf16, #tpu.memory_space<vmem>>, vector<1x1x128x128xbf16>
    %90 = vector.shape_cast %89 : vector<1x1x128x128xbf16> to vector<128x128xbf16>
    %cst_104 = arith.constant dense<0.000000e+00> : vector<8x128xf32>
    %91 = tpu.matmul %1, %90, %cst_104 {dimension_numbers = #tpu.dot_dimension_numbers<[1], [0], [0], [1], [0, 0, 1, 1], [], []>} : vector<8x128xbf16>, vector<128x128xbf16>, vector<8x128xf32> -> vector<8x128xf32>
    %c0_105 = arith.constant 0 : index
    %c1_106 = arith.constant 1 : index
    %c0_107 = arith.constant 0 : index
    %c896_108 = arith.constant 896 : index
    %92 = vector.load %arg5[%c0_105, %c1_106, %c0_107, %c896_108] : memref<1x3x128x1152xbf16, #tpu.memory_space<vmem>>, vector<1x1x128x128xbf16>
    %93 = vector.shape_cast %92 : vector<1x1x128x128xbf16> to vector<128x128xbf16>
    %cst_109 = arith.constant dense<0.000000e+00> : vector<8x128xf32>
    %94 = tpu.matmul %3, %93, %cst_109 {dimension_numbers = #tpu.dot_dimension_numbers<[1], [0], [0], [1], [0, 0, 1, 1], [], []>} : vector<8x128xbf16>, vector<128x128xbf16>, vector<8x128xf32> -> vector<8x128xf32>
    %95 = arith.addf %91, %94 : vector<8x128xf32>
    %c0_110 = arith.constant 0 : index
    %c2_111 = arith.constant 2 : index
    %c0_112 = arith.constant 0 : index
    %c896_113 = arith.constant 896 : index
    %96 = vector.load %arg5[%c0_110, %c2_111, %c0_112, %c896_113] : memref<1x3x128x1152xbf16, #tpu.memory_space<vmem>>, vector<1x1x128x128xbf16>
    %97 = vector.shape_cast %96 : vector<1x1x128x128xbf16> to vector<128x128xbf16>
    %cst_114 = arith.constant dense<0.000000e+00> : vector<8x128xf32>
    %98 = tpu.matmul %5, %97, %cst_114 {dimension_numbers = #tpu.dot_dimension_numbers<[1], [0], [0], [1], [0, 0, 1, 1], [], []>} : vector<8x128xbf16>, vector<128x128xbf16>, vector<8x128xf32> -> vector<8x128xf32>
    %99 = arith.addf %95, %98 : vector<8x128xf32>
    %100 = arith.maximumf %88, %99 : vector<8x128xf32>
    %c0_115 = arith.constant 0 : index
    %c0_116 = arith.constant 0 : index
    %c0_117 = arith.constant 0 : index
    %c1024 = arith.constant 1024 : index
    %101 = vector.load %arg5[%c0_115, %c0_116, %c0_117, %c1024] : memref<1x3x128x1152xbf16, #tpu.memory_space<vmem>>, vector<1x1x128x128xbf16>
    %102 = vector.shape_cast %101 : vector<1x1x128x128xbf16> to vector<128x128xbf16>
    %cst_118 = arith.constant dense<0.000000e+00> : vector<8x128xf32>
    %103 = tpu.matmul %1, %102, %cst_118 {dimension_numbers = #tpu.dot_dimension_numbers<[1], [0], [0], [1], [0, 0, 1, 1], [], []>} : vector<8x128xbf16>, vector<128x128xbf16>, vector<8x128xf32> -> vector<8x128xf32>
    %c0_119 = arith.constant 0 : index
    %c1_120 = arith.constant 1 : index
    %c0_121 = arith.constant 0 : index
    %c1024_122 = arith.constant 1024 : index
    %104 = vector.load %arg5[%c0_119, %c1_120, %c0_121, %c1024_122] : memref<1x3x128x1152xbf16, #tpu.memory_space<vmem>>, vector<1x1x128x128xbf16>
    %105 = vector.shape_cast %104 : vector<1x1x128x128xbf16> to vector<128x128xbf16>
    %cst_123 = arith.constant dense<0.000000e+00> : vector<8x128xf32>
    %106 = tpu.matmul %3, %105, %cst_123 {dimension_numbers = #tpu.dot_dimension_numbers<[1], [0], [0], [1], [0, 0, 1, 1], [], []>} : vector<8x128xbf16>, vector<128x128xbf16>, vector<8x128xf32> -> vector<8x128xf32>
    %107 = arith.addf %103, %106 : vector<8x128xf32>
    %c0_124 = arith.constant 0 : index
    %c2_125 = arith.constant 2 : index
    %c0_126 = arith.constant 0 : index
    %c1024_127 = arith.constant 1024 : index
    %108 = vector.load %arg5[%c0_124, %c2_125, %c0_126, %c1024_127] : memref<1x3x128x1152xbf16, #tpu.memory_space<vmem>>, vector<1x1x128x128xbf16>
    %109 = vector.shape_cast %108 : vector<1x1x128x128xbf16> to vector<128x128xbf16>
    %cst_128 = arith.constant dense<0.000000e+00> : vector<8x128xf32>
    %110 = tpu.matmul %5, %109, %cst_128 {dimension_numbers = #tpu.dot_dimension_numbers<[1], [0], [0], [1], [0, 0, 1, 1], [], []>} : vector<8x128xbf16>, vector<128x128xbf16>, vector<8x128xf32> -> vector<8x128xf32>
    %111 = arith.addf %107, %110 : vector<8x128xf32>
    %112 = arith.maximumf %100, %111 : vector<8x128xf32>
    %c0_129 = arith.constant 0 : index
    %c0_130 = arith.constant 0 : index
    %113 = vector.load %arg6[%c0_129, %c0_130] : memref<8x128xf32, #tpu.memory_space<vmem>>, vector<8x128xf32>
    tpu.vector_store %arg6[%c0_129, %c0_130], %112 {strides = array<i32>} : memref<8x128xf32, #tpu.memory_space<vmem>>, vector<8x128xf32>,
    return
  }
  func.func @transform_0(%arg0: i32, %arg1: i32) -> (i32, i32) {
    %c1_i32 = arith.constant 1 : i32
    %0 = arith.subi %arg0, %c1_i32 : i32
    %c0_i32 = arith.constant 0 : i32
    %1 = arith.addi %0, %c0_i32 : i32
    %c0_i32_0 = arith.constant 0 : i32
    %c1_i32_1 = arith.constant 1 : i32
    %2 = arith.maxsi %c0_i32_0, %1 : i32
    %3 = arith.minsi %c1_i32_1, %2 : i32
    %c0_i32_2 = arith.constant 0 : i32
    return %arg1, %3 : i32, i32
  }
  func.func @transform_1(%arg0: i32, %arg1: i32) -> (i32, i32) {
    %c1_i32 = arith.constant 1 : i32
    %0 = arith.subi %arg0, %c1_i32 : i32
    %c1_i32_0 = arith.constant 1 : i32
    %1 = arith.addi %0, %c1_i32_0 : i32
    %c0_i32 = arith.constant 0 : i32
    %c1_i32_1 = arith.constant 1 : i32
    %2 = arith.maxsi %c0_i32, %1 : i32
    %3 = arith.minsi %c1_i32_1, %2 : i32
    %c0_i32_2 = arith.constant 0 : i32
    return %arg1, %3 : i32, i32
  }
  func.func @transform_2(%arg0: i32, %arg1: i32) -> (i32, i32) {
    %c1_i32 = arith.constant 1 : i32
    %0 = arith.subi %arg0, %c1_i32 : i32
    %c2_i32 = arith.constant 2 : i32
    %1 = arith.addi %0, %c2_i32 : i32
    %c0_i32 = arith.constant 0 : i32
    %c1_i32_0 = arith.constant 1 : i32
    %2 = arith.maxsi %c0_i32, %1 : i32
    %3 = arith.minsi %c1_i32_0, %2 : i32
    %c0_i32_1 = arith.constant 0 : i32
    return %arg1, %3 : i32, i32
  }
  func.func @transform_3(%arg0: i32, %arg1: i32) -> (i32, i32, i32, i32) {
    %c0_i32 = arith.constant 0 : i32
    %c0_i32_0 = arith.constant 0 : i32
    %c0_i32_1 = arith.constant 0 : i32
    %c0_i32_2 = arith.constant 0 : i32
    return %arg0, %c0_i32, %c0_i32_0, %c0_i32_1 : i32, i32, i32, i32
  }
  func.func @transform_4(%arg0: i32, %arg1: i32) -> (i32, i32) {
    %c0_i32 = arith.constant 0 : i32
    return %arg1, %arg0 : i32, i32
  }
}

</mosaic_0001>

<llo_original>
// kernel: tpu_custom_call.1
$region0: #{tpu_custom_call.1}
  #allocation0 [shape = 'u32[]', space=smem, size = 0x4, offset = 0x4, fixed_abs, tag = 'smem constant byte address 0x4 - core index']
  #allocation1 [shape = 'u32[144,128]{1,0:T(1,128)}', space=vmem, size = 0x12000, scoped, tag = 'internal scratch']
  %s0 = inlined_call_operand.hbm [shape: f32[8,256], index: 0, kind: input, shape index: {}]
  %s1 = inlined_call_operand.hbm [shape: f32[8,256], index: 1, kind: input, shape index: {}]
  %s2 = inlined_call_operand.hbm [shape: f32[8,256], index: 2, kind: input, shape index: {}]
  %s3 = inlined_call_operand.hbm [shape: bf16[2,3,128,1152], index: 3, kind: input, shape index: {}]
  %s4 = inlined_call_operand.hbm [shape: f32[8,256], index: 4, kind: output, shape index: {}]
  %s5 = sld [smem:[#allocation0]]
  $region65: #{tpu_custom_call.1} parent=0
    _
  %s7 = ssub.s32 1, %s5
  %s8 = scalar_select 0, %s7, %s5
  $region1: #{tpu_custom_call.1} parent=0
    #allocation2 [shape = 'u8[8192]{0}', space=vmem, size = 0x2000, scoped, tag = 'input window, operand 0']
    #allocation3 [shape = 's32[2]{0}', space=sflag, size = 0x8, scoped, tag = 'scoped memory for tpu_custom_call.1']
    #allocation4 [shape = 's32[2]{0}', space=sflag, size = 0x8, scoped, tag = 'scoped memory for tpu_custom_call.1']
    #allocation5 [shape = 'u8[8192]{0}', space=vmem, size = 0x2000, scoped, tag = 'input window, operand 1']
    #allocation6 [shape = 's32[2]{0}', space=sflag, size = 0x8, scoped, tag = 'scoped memory for tpu_custom_call.1']
    #allocation7 [shape = 'u8[8192]{0}', space=vmem, size = 0x2000, scoped, tag = 'input window, operand 2']
    #allocation8 [shape = 'u8[1769472]{0}', space=vmem, size = 0x1b0000, scoped, tag = 'input window, operand 3']
    #allocation9 [shape = 's32[2]{0}', space=sflag, size = 0x8, scoped, tag = 'scoped memory for tpu_custom_call.1']
    #allocation10 [shape = 'u8[8192]{0}', space=vmem, size = 0x2000, scoped, tag = 'output window, operand 0']
    %9 = vsyncpa [#allocation3], 0
    %s10 = scalar_lea.sflag [#allocation3], 1
    %11 = vsyncpa %s10, 0
    %12 = vsyncpa [#allocation6], 0
    %s13 = scalar_lea.sflag [#allocation6], 1
    %14 = vsyncpa %s13, 0
    %15 = vsyncpa [#allocation9], 0
    %s16 = scalar_lea.sflag [#allocation9], 1
    %17 = vsyncpa %s16, 0
    %18 = vsyncpa [#allocation4], 0
    %s19 = scalar_lea.sflag [#allocation4], 1
    %20 = vsyncpa %s19, 0
    loop: start=0, step=1, limit=4
    $region2: #{tpu_custom_call.1} parent=1 // loop_pre_header
      _
    $region3: #{tpu_custom_call.1} parent=1 // loop_header
      %s22 = sphi 0, %s26
      %p23 = scmp.ge.s32.totalorder %s22, 4
      %s29 = sphi 0, %s41
      %s30 = sphi 0, %s37
      %s31 = sphi 0, %s29
      %s32 = sphi 0, %s30
      %s33 = sphi 0, %s31
      %s34 = sphi 0, %s32
      %s56 = sphi 0, %s58
      %s59 = sphi 0, %s56
      %s60 = sphi 0, %s59
      %s76 = sphi 0, %s60
      %s92 = sphi 0, %s94
      %s95 = sphi 0, %s92
      %s96 = sphi 0, %s95
      %s112 = sphi 0, %s96
      %s130 = sphi 0, %s132
      %s133 = sphi 0, %s130
      %s134 = sphi 0, %s133
      %s150 = sphi 0, %s134
      %s156 = sphi 0, %s158
      %s159 = sphi 0, %s156
      %s160 = sphi 0, %s159
      %s176 = sphi 0, %s160
      %s184 = sphi 0, %s186
      %s187 = sphi 0, %s184
      %s188 = sphi 0, %s187
      %s204 = sphi 0, %s188
    $region4: #{tpu_custom_call.1} parent=1 // loop_header_branch
      %25 = sbr.rel (%p23) target = $region8
    $region5: #{tpu_custom_call.1} parent=1 // loop_body
      %s27 = ssub.s32 %s22, 1
      %s28 = ssub.s32 %s22, 2
      %s35 = sadd.s32 1, %s30
      %p36 = scmp.ge.s32.totalorder %s35, 1
      %s37 = scalar_select %p36, 0, %s35
      %s38 = sadd.s32 1, %s29
      %s39 = scalar_select %p36, %s38, %s29
      %p40 = scmp.ge.s32.totalorder %s39, 2
      %s41 = scalar_select %p40, 0, %s39
      %s42 = ssub.s32 %s29, 1
      %p43 = scmp.gt.s32.totalorder %s42, 0
      %s44 = scalar_select %p43, %s42, 0
      %p45 = scmp.lt.s32.totalorder %s44, 1
      %s46 = scalar_select %p45, %s44, 1
      %s47 = ssub.s32 %s41, 1
      %p48 = scmp.gt.s32.totalorder %s47, 0
      %s49 = scalar_select %p48, %s47, 0
      %p50 = scmp.lt.s32.totalorder %s49, 1
      %s51 = scalar_select %p50, %s49, 1
      %s52 = ssub.s32 %s30, %s37
      %s53 = ssub.s32 %s46, %s51
      %s54 = sor.u32 %s52, %s53
      %p55 = scmp.eq.s32.totalorder %s54, 0
      %s57 = sadd.s32 %s56, 1
      %s58 = scalar_select %p55, %s56, %s57
      %p61 = pneg %p55
      %p62 = scmp.eq.s32.totalorder %s22, 1
      %p63 = por %p61, %p62
      %p64 = scmp.ne.s32.totalorder %s56, %s59
      %p65 = scmp.eq.s32.totalorder %s22, 0
      %p66 = por %p64, %p65
      %p67 = scmp.ne.s32.totalorder %s56, %s59
      %p68 = scmp.eq.s32.totalorder %s27, 1
      %p69 = por %p67, %p68
      %p70 = scmp.ne.s32.totalorder %s59, %s60
      %p71 = scmp.eq.s32.totalorder %s27, 0
      %p72 = por %p70, %p71
      %p73 = scmp.ne.s32.totalorder %s59, %s60
      %p74 = scmp.eq.s32.totalorder %s28, 1
      %p75 = por %p73, %p74
      %p77 = scmp.ne.s32.totalorder %s60, %s76
      %p78 = scmp.eq.s32.totalorder %s28, 0
      %p79 = por %p77, %p78
      %p80 = scmp.gt.s32.totalorder %s29, 0
      %s81 = scalar_select %p80, %s29, 0
      %p82 = scmp.lt.s32.totalorder %s81, 1
      %s83 = scalar_select %p82, %s81, 1
      %p84 = scmp.gt.s32.totalorder %s41, 0
      %s85 = scalar_select %p84, %s41, 0
      %p86 = scmp.lt.s32.totalorder %s85, 1
      %s87 = scalar_select %p86, %s85, 1
      %s88 = ssub.s32 %s30, %s37
      %s89 = ssub.s32 %s83, %s87
      %s90 = sor.u32 %s88, %s89
      %p91 = scmp.eq.s32.totalorder %s90, 0
      %s93 = sadd.s32 %s92, 1
      %s94 = scalar_select %p91, %s92, %s93
      %p97 = pneg %p91
      %p98 = scmp.eq.s32.totalorder %s22, 1
      %p99 = por %p97, %p98
      %p100 = scmp.ne.s32.totalorder %s92, %s95
      %p101 = scmp.eq.s32.totalorder %s22, 0
      %p102 = por %p100, %p101
      %p103 = scmp.ne.s32.totalorder %s92, %s95
      %p104 = scmp.eq.s32.totalorder %s27, 1
      %p105 = por %p103, %p104
      %p106 = scmp.ne.s32.totalorder %s95, %s96
      %p107 = scmp.eq.s32.totalorder %s27, 0
      %p108 = por %p106, %p107
      %p109 = scmp.ne.s32.totalorder %s95, %s96
      %p110 = scmp.eq.s32.totalorder %s28, 1
      %p111 = por %p109, %p110
      %p113 = scmp.ne.s32.totalorder %s96, %s112
      %p114 = scmp.eq.s32.totalorder %s28, 0
      %p115 = por %p113, %p114
      %s116 = sadd.s32 %s29, 1
      %p117 = scmp.gt.s32.totalorder %s116, 0
      %s118 = scalar_select %p117, %s116, 0
      %p119 = scmp.lt.s32.totalorder %s118, 1
      %s120 = scalar_select %p119, %s118, 1
      %s121 = sadd.s32 %s41, 1
      %p122 = scmp.gt.s32.totalorder %s121, 0
      %s123 = scalar_select %p122, %s121, 0
      %p124 = scmp.lt.s32.totalorder %s123, 1
      %s125 = scalar_select %p124, %s123, 1
      %s126 = ssub.s32 %s30, %s37
      %s127 = ssub.s32 %s120, %s125
      %s128 = sor.u32 %s126, %s127
      %p129 = scmp.eq.s32.totalorder %s128, 0
      %s131 = sadd.s32 %s130, 1
      %s132 = scalar_select %p129, %s130, %s131
      %p135 = pneg %p129
      %p136 = scmp.eq.s32.totalorder %s22, 1
      %p137 = por %p135, %p136
      %p138 = scmp.ne.s32.totalorder %s130, %s133
      %p139 = scmp.eq.s32.totalorder %s22, 0
      %p140 = por %p138, %p139
      %p141 = scmp.ne.s32.totalorder %s130, %s133
      %p142 = scmp.eq.s32.totalorder %s27, 1
      %p143 = por %p141, %p142
      %p144 = scmp.ne.s32.totalorder %s133, %s134
      %p145 = scmp.eq.s32.totalorder %s27, 0
      %p146 = por %p144, %p145
      %p147 = scmp.ne.s32.totalorder %s133, %s134
      %p148 = scmp.eq.s32.totalorder %s28, 1
      %p149 = por %p147, %p148
      %p151 = scmp.ne.s32.totalorder %s134, %s150
      %p152 = scmp.eq.s32.totalorder %s28, 0
      %p153 = por %p151, %p152
      %s154 = ssub.s32 %s29, %s41
      %p155 = scmp.eq.s32.totalorder %s154, 0
      %s157 = sadd.s32 %s156, 1
      %s158 = scalar_select %p155, %s156, %s157
      %p161 = pneg %p155
      %p162 = scmp.eq.s32.totalorder %s22, 1
      %p163 = por %p161, %p162
      %p164 = scmp.ne.s32.totalorder %s156, %s159
      %p165 = scmp.eq.s32.totalorder %s22, 0
      %p166 = por %p164, %p165
      %p167 = scmp.ne.s32.totalorder %s156, %s159
      %p168 = scmp.eq.s32.totalorder %s27, 1
      %p169 = por %p167, %p168
      %p170 = scmp.ne.s32.totalorder %s159, %s160
      %p171 = scmp.eq.s32.totalorder %s27, 0
      %p172 = por %p170, %p171
      %p173 = scmp.ne.s32.totalorder %s159, %s160
      %p174 = scmp.eq.s32.totalorder %s28, 1
      %p175 = por %p173, %p174
      %p177 = scmp.ne.s32.totalorder %s160, %s176
      %p178 = scmp.eq.s32.totalorder %s28, 0
      %p179 = por %p177, %p178
      %s180 = ssub.s32 %s30, %s37
      %s181 = ssub.s32 %s29, %s41
      %s182 = sor.u32 %s180, %s181
      %p183 = scmp.eq.s32.totalorder %s182, 0
      %s185 = sadd.s32 %s184, 1
      %s186 = scalar_select %p183, %s184, %s185
      %p189 = pneg %p183
      %p190 = scmp.eq.s32.totalorder %s22, 1
      %p191 = por %p189, %p190
      %p192 = scmp.ne.s32.totalorder %s184, %s187
      %p193 = scmp.eq.s32.totalorder %s22, 0
      %p194 = por %p192, %p193
      %p195 = scmp.ne.s32.totalorder %s184, %s187
      %p196 = scmp.eq.s32.totalorder %s27, 1
      %p197 = por %p195, %p196
      %p198 = scmp.ne.s32.totalorder %s187, %s188
      %p199 = scmp.eq.s32.totalorder %s27, 0
      %p200 = por %p198, %p199
      %p201 = scmp.ne.s32.totalorder %s187, %s188
      %p202 = scmp.eq.s32.totalorder %s28, 1
      %p203 = por %p201, %p202
      %p205 = scmp.ne.s32.totalorder %s188, %s204
      %p206 = scmp.eq.s32.totalorder %s28, 0
      %p207 = por %p205, %p206
      %p208 = scmp.le.s32.totalorder 1, %s22
      %p209 = scmp.lt.s32.totalorder %s22, 3
      %p210 = pnand %p208, %p209
      %p211 = pneg %p210
      // Predicated region
      $region9: #{tpu_custom_call.1} parent=5 // pred_check
        _
      $region10: #{tpu_custom_call.1} parent=5 // pred_check_branch
        %213 = sbr.rel (%p210) target = $region12
      $region11: #{tpu_custom_call.1} parent=5 // pred_region
        %s214 = ssub.s32 %s22, 1
      $region12: #{tpu_custom_call.1} parent=5 // pred_fallthru
        _
      %p215 = scmp.lt.s32.totalorder %s22, 2
      // Predicated region
      $region13: #{tpu_custom_call.1} parent=5 // pred_check
        %p216 = pneg %p215
      $region14: #{tpu_custom_call.1} parent=5 // pred_check_branch
        %218 = sbr.rel (%p216) target = $region16
      $region15: #{tpu_custom_call.1} parent=5 // pred_region
        // Predicated region
        $region17: #{tpu_custom_call.1} parent=15 // pred_check
          %p219 = pneg %p66
        $region18: #{tpu_custom_call.1} parent=15 // pred_check_branch
          %221 = sbr.rel (%p219) target = $region20
        $region19: #{tpu_custom_call.1} parent=15 // pred_region
          %s222 = sand.u32 %s56, 1
          %s223 = scalar_lea.sflag [#allocation3], %s222
          %s224 = sand.u32 %s56, 1
          %s225 = smul.addr %s224, 8
          %s226 = scalar_lea.vmem [#allocation2], %s225
          %s227 = ssub.s32 %s29, 1
          %p228 = scmp.gt.s32.totalorder %s227, 0
          %s229 = scalar_select %p228, %s227, 0
          %p230 = scmp.lt.s32.totalorder %s229, 1
          %s231 = scalar_select %p230, %s229, 1
          %s233 = ssub.s32 128, 128
          %234 = vsyncadd %s223, %s233
          %s235 = smul.addr %s30, 2
          %s236 = sadd.s32 %s231, %s235
          %s237 = smul.addr %s236, 128
          %s238 = scalar_lea.hbm %s0, %s237
          %s240 = sshll.u32 %s226, 4
          %s241 = int_to_ptr.vmem [resolvable:$true] %s240
          %243 = dma.hbm_to_vmem [thread:$0]  %s238, 128, %s241, %s223
        $region20: #{tpu_custom_call.1} parent=15 // pred_fallthru
          _
        // Predicated region
        $region21: #{tpu_custom_call.1} parent=15 // pred_check
          %p244 = pneg %p102
        $region22: #{tpu_custom_call.1} parent=15 // pred_check_branch
          %246 = sbr.rel (%p244) target = $region24
        $region23: #{tpu_custom_call.1} parent=15 // pred_region
          %s247 = sand.u32 %s22, 1
          %s248 = scalar_lea.sflag [#allocation6], %s247
          %s249 = sand.u32 %s92, 1
          %s250 = smul.addr %s249, 8
          %s251 = scalar_lea.vmem [#allocation5], %s250
          %p252 = scmp.gt.s32.totalorder %s29, 0
          %s253 = scalar_select %p252, %s29, 0
          %p254 = scmp.lt.s32.totalorder %s253, 1
          %s255 = scalar_select %p254, %s253, 1
          %s257 = ssub.s32 128, 128
          %258 = vsyncadd %s248, %s257
          %s259 = smul.addr %s30, 2
          %s260 = sadd.s32 %s255, %s259
          %s261 = smul.addr %s260, 128
          %s262 = scalar_lea.hbm %s1, %s261
          %s264 = sshll.u32 %s251, 4
          %s265 = int_to_ptr.vmem [resolvable:$true] %s264
          %267 = dma.hbm_to_vmem [thread:$0]  %s262, 128, %s265, %s248
        $region24: #{tpu_custom_call.1} parent=15 // pred_fallthru
          _
        // Predicated region
        $region25: #{tpu_custom_call.1} parent=15 // pred_check
          %p268 = pneg %p140
        $region26: #{tpu_custom_call.1} parent=15 // pred_check_branch
          %270 = sbr.rel (%p268) target = $region28
        $region27: #{tpu_custom_call.1} parent=15 // pred_region
          %s271 = sand.u32 %s22, 1
          %s272 = scalar_lea.sflag [#allocation6], %s271
          %s273 = sand.u32 %s130, 1
          %s274 = smul.addr %s273, 8
          %s275 = scalar_lea.vmem [#allocation7], %s274
          %s276 = sadd.s32 %s29, 1
          %p277 = scmp.gt.s32.totalorder %s276, 0
          %s278 = scalar_select %p277, %s276, 0
          %p279 = scmp.lt.s32.totalorder %s278, 1
          %s280 = scalar_select %p279, %s278, 1
          %s282 = ssub.s32 128, 128
          %283 = vsyncadd %s272, %s282
          %s284 = smul.addr %s30, 2
          %s285 = sadd.s32 %s280, %s284
          %s286 = smul.addr %s285, 128
          %s287 = scalar_lea.hbm %s2, %s286
          %s289 = sshll.u32 %s275, 4
          %s290 = int_to_ptr.vmem [resolvable:$true] %s289
          %292 = dma.hbm_to_vmem [thread:$0]  %s287, 128, %s290, %s272
        $region28: #{tpu_custom_call.1} parent=15 // pred_fallthru
          _
        // Predicated region
        $region29: #{tpu_custom_call.1} parent=15 // pred_check
          %p293 = pneg %p166
        $region30: #{tpu_custom_call.1} parent=15 // pred_check_branch
          %295 = sbr.rel (%p293) target = $region32
        $region31: #{tpu_custom_call.1} parent=15 // pred_region
          %s296 = sand.u32 %s156, 1
          %s297 = scalar_lea.sflag [#allocation9], %s296
          %s298 = sand.u32 %s156, 1
          %s299 = smul.addr %s298, 1728
          %s300 = scalar_lea.vmem [#allocation8], %s299
          %s302 = ssub.s32 27648, 27648
          %303 = vsyncadd %s297, %s302
          %s304 = smul.addr %s29, 432
          %s305 = smul.addr %s304, 64
          %s306 = scalar_lea.hbm %s3, %s305
          %s307 = sshll.u32 %s300, 4
          %s308 = int_to_ptr.vmem [resolvable:$true] %s307
          %313 = dma.hbm_to_vmem [thread:$0]  %s306, 27648, %s308, %s297, 576, 576, 36
        $region32: #{tpu_custom_call.1} parent=15 // pred_fallthru
          _
      $region16: #{tpu_custom_call.1} parent=5 // pred_fallthru
        _
      %p314 = scmp.le.s32.totalorder 1, %s22
      %p315 = scmp.lt.s32.totalorder %s22, 3
      %p316 = pnand %p314, %p315
      %p317 = pneg %p316
      // Predicated region
      $region33: #{tpu_custom_call.1} parent=5 // pred_check
        _
      $region34: #{tpu_custom_call.1} parent=5 // pred_check_branch
        %319 = sbr.rel (%p316) target = $region36
      $region35: #{tpu_custom_call.1} parent=5 // pred_region
        %s320 = ssub.s32 %s22, 1
        %s321 = sand.u32 %s59, 1
        %s322 = scalar_lea.sflag [#allocation3], %s321
        %s323 = sand.u32 %s59, 1
        %s324 = smul.addr %s323, 8
        %s325 = scalar_lea.vmem [#allocation2], %s324
        // Predicated region
        $region37: #{tpu_custom_call.1} parent=35 // pred_check
          %p326 = pneg %p72
        $region38: #{tpu_custom_call.1} parent=35 // pred_check_branch
          %328 = sbr.rel (%p326) target = $region40
        $region39: #{tpu_custom_call.1} parent=35 // pred_region
          %329 = dma.done %s322, 128
        $region40: #{tpu_custom_call.1} parent=35 // pred_fallthru
          _
        %s330 = sand.u32 %s27, 1
        %s331 = scalar_lea.sflag [#allocation6], %s330
        %s332 = sand.u32 %s95, 1
        %s333 = smul.addr %s332, 8
        %s334 = scalar_lea.vmem [#allocation5], %s333
        // Predicated region
        $region41: #{tpu_custom_call.1} parent=35 // pred_check
          %p335 = pneg %p108
        $region42: #{tpu_custom_call.1} parent=35 // pred_check_branch
          %337 = sbr.rel (%p335) target = $region44
        $region43: #{tpu_custom_call.1} parent=35 // pred_region
          %338 = dma.done %s331, 128
        $region44: #{tpu_custom_call.1} parent=35 // pred_fallthru
          _
        %s339 = sand.u32 %s27, 1
        %s340 = scalar_lea.sflag [#allocation6], %s339
        %s341 = sand.u32 %s133, 1
        %s342 = smul.addr %s341, 8
        %s343 = scalar_lea.vmem [#allocation7], %s342
        // Predicated region
        $region45: #{tpu_custom_call.1} parent=35 // pred_check
          %p344 = pneg %p146
        $region46: #{tpu_custom_call.1} parent=35 // pred_check_branch
          %346 = sbr.rel (%p344) target = $region48
        $region47: #{tpu_custom_call.1} parent=35 // pred_region
          %347 = dma.done %s340, 128
        $region48: #{tpu_custom_call.1} parent=35 // pred_fallthru
          _
        %s348 = sand.u32 %s159, 1
        %s349 = scalar_lea.sflag [#allocation9], %s348
        %s350 = sand.u32 %s159, 1
        %s351 = smul.addr %s350, 1728
        %s352 = scalar_lea.vmem [#allocation8], %s351
        // Predicated region
        $region49: #{tpu_custom_call.1} parent=35 // pred_check
          %p353 = pneg %p172
        $region50: #{tpu_custom_call.1} parent=35 // pred_check_branch
          %355 = sbr.rel (%p353) target = $region52
        $region51: #{tpu_custom_call.1} parent=35 // pred_region
          %356 = dma.done %s349, 27648
        $region52: #{tpu_custom_call.1} parent=35 // pred_fallthru
          _
        %s357 = sand.u32 %s59, 1
        %s358 = scalar_lea.sflag [#allocation3], %s357
        %s359 = sand.u32 %s59, 1
        %s360 = smul.addr %s359, 8
        %s361 = scalar_lea.vmem [#allocation2], %s360
        %p362 = pneg %p72
        %p363 = pneg %p69
        %s364 = sand.u32 %s27, 1
        %s365 = scalar_lea.sflag [#allocation6], %s364
        %s366 = sand.u32 %s95, 1
        %s367 = smul.addr %s366, 8
        %s368 = scalar_lea.vmem [#allocation5], %s367
        %p369 = pneg %p108
        %p370 = pneg %p105
        %s371 = sand.u32 %s27, 1
        %s372 = scalar_lea.sflag [#allocation6], %s371
        %s373 = sand.u32 %s133, 1
        %s374 = smul.addr %s373, 8
        %s375 = scalar_lea.vmem [#allocation7], %s374
        %p376 = pneg %p146
        %p377 = pneg %p143
        %s378 = sand.u32 %s159, 1
        %s379 = scalar_lea.sflag [#allocation9], %s378
        %s380 = sand.u32 %s159, 1
        %s381 = smul.addr %s380, 1728
        %s382 = scalar_lea.vmem [#allocation8], %s381
        %p383 = pneg %p172
        %p384 = pneg %p169
        %p385 = pneg %p200
        %p386 = pneg %p197
        %s387 = sand.u32 %s187, 1
        %s388 = scalar_lea.sflag [#allocation4], %s387
        %s389 = sand.u32 %s187, 1
        %s390 = smul.addr %s389, 8
        %s391 = scalar_lea.vmem [#allocation10], %s390
        %s392 = ssub.s32 %s31, 1
        %p393 = scmp.gt.s32.totalorder %s392, 0
        %s394 = scalar_select %p393, %s392, 0
        %p395 = scmp.lt.s32.totalorder %s394, 1
        %s396 = scalar_select %p395, %s394, 1
        %p397 = scmp.gt.s32.totalorder %s31, 0
        %s398 = scalar_select %p397, %s31, 0
        %p399 = scmp.lt.s32.totalorder %s398, 1
        %s400 = scalar_select %p399, %s398, 1
        %s401 = sadd.s32 %s31, 1
        %p402 = scmp.gt.s32.totalorder %s401, 0
        %s403 = scalar_select %p402, %s401, 0
        %p404 = scmp.lt.s32.totalorder %s403, 1
        %s405 = scalar_select %p404, %s403, 1
        %v407 = vld [vmem:[%s325] sm:$0xff]
        %v408 = vpack.c.bf16 %v407, %v407
        %v409 = vld [vmem:[%s334] sm:$0xff]
        %v410 = vpack.c.bf16 %v409, %v409
        %v411 = vld [vmem:[%s343] sm:$0xff]
        %v412 = vpack.c.bf16 %v411, %v411
        %v413 = vld [vmem:[%s352] sm:$0xf]
        %v414 = vld [vmem:[%s352 + $0x24] sm:$0xf]
        %v415 = vld [vmem:[%s352 + $0x48] sm:$0xf]
        %v416 = vld [vmem:[%s352 + $0x6c] sm:$0xf]
        %v417 = vld [vmem:[%s352 + $0x90] sm:$0xf]
        %v418 = vld [vmem:[%s352 + $0xb4] sm:$0xf]
        %v419 = vld [vmem:[%s352 + $0xd8] sm:$0xf]
        %v420 = vld [vmem:[%s352 + $0xfc] sm:$0xf]
        %v421 = vld [vmem:[%s352 + $0x120] sm:$0xf]
        %v422 = vld [vmem:[%s352 + $0x144] sm:$0xf]
        %v423 = vld [vmem:[%s352 + $0x168] sm:$0xf]
        %v424 = vld [vmem:[%s352 + $0x18c] sm:$0xf]
        %v425 = vld [vmem:[%s352 + $0x1b0] sm:$0xf]
        %v426 = vld [vmem:[%s352 + $0x1d4] sm:$0xf]
        %v427 = vld [vmem:[%s352 + $0x1f8] sm:$0xf]
        %v428 = vld [vmem:[%s352 + $0x21c] sm:$0xf]
        %s429 = scalar_lea.vmem %s352, 576 [#allocation8]
        %v430 = vld [vmem:[%s429] sm:$0xf]
        %v431 = vld [vmem:[%s429 + $0x24] sm:$0xf]
        %v432 = vld [vmem:[%s429 + $0x48] sm:$0xf]
        %v433 = vld [vmem:[%s429 + $0x6c] sm:$0xf]
        %v434 = vld [vmem:[%s429 + $0x90] sm:$0xf]
        %v435 = vld [vmem:[%s429 + $0xb4] sm:$0xf]
        %v436 = vld [vmem:[%s429 + $0xd8] sm:$0xf]
        %v437 = vld [vmem:[%s429 + $0xfc] sm:$0xf]
        %v438 = vld [vmem:[%s429 + $0x120] sm:$0xf]
        %v439 = vld [vmem:[%s429 + $0x144] sm:$0xf]
        %v440 = vld [vmem:[%s429 + $0x168] sm:$0xf]
        %v441 = vld [vmem:[%s429 + $0x18c] sm:$0xf]
        %v442 = vld [vmem:[%s429 + $0x1b0] sm:$0xf]
        %v443 = vld [vmem:[%s429 + $0x1d4] sm:$0xf]
        %v444 = vld [vmem:[%s429 + $0x1f8] sm:$0xf]
        %v445 = vld [vmem:[%s429 + $0x21c] sm:$0xf]
        %v462 = vunpack.c.l.b16 %v430
        %v463 = vunpack.c.l.b16 %v431
        %v464 = vunpack.c.l.b16 %v432
        %v465 = vunpack.c.l.b16 %v433
        %v466 = vunpack.c.l.b16 %v434
        %v467 = vunpack.c.l.b16 %v435
        %v468 = vunpack.c.l.b16 %v436
        %v469 = vunpack.c.l.b16 %v437
        %v470 = vunpack.c.l.b16 %v438
        %v471 = vunpack.c.l.b16 %v439
        %v472 = vunpack.c.l.b16 %v440
        %v473 = vunpack.c.l.b16 %v441
        %v474 = vunpack.c.l.b16 %v442
        %v475 = vunpack.c.l.b16 %v443
        %v476 = vunpack.c.l.b16 %v444
        %v477 = vunpack.c.l.b16 %v445
        %v478 = vpack.c.b16 %v463, %v462
        %v479 = vpack.c.b16 %v465, %v464
        %v480 = vpack.c.b16 %v467, %v466
        %v481 = vpack.c.b16 %v469, %v468
        %v482 = vpack.c.b16 %v471, %v470
        %v483 = vpack.c.b16 %v473, %v472
        %v484 = vpack.c.b16 %v475, %v474
        %v485 = vpack.c.b16 %v477, %v476
        %494 = vmatprep.subr.bf16.mxu0 0
        %495 = vmatpush1.bf16.msra.mxu0 %v485
        %496 = vmatprep.subr.bf16.mxu0 0
        %497 = vmatpush1.bf16.msra.mxu0 %v484
        %498 = vmatprep.subr.bf16.mxu0 0
        %499 = vmatpush1.bf16.msra.mxu0 %v483
        %500 = vmatprep.subr.bf16.mxu0 0
        %501 = vmatpush1.bf16.msra.mxu0 %v482
        %502 = vmatprep.subr.bf16.mxu0 0
        %503 = vmatpush1.bf16.msra.mxu0 %v481
        %504 = vmatprep.subr.bf16.mxu0 0
        %505 = vmatpush1.bf16.msra.mxu0 %v480
        %506 = vmatprep.subr.bf16.mxu0 0
        %507 = vmatpush1.bf16.msra.mxu0 %v479
        %508 = vmatprep.subr.bf16.mxu0 0
        %509 = vmatpush1.bf16.msra.mxu0 %v478
        %510 = vmatprep.subr.bf16.mxu0 0
        %511 = vmatpush2.bf16.msra.mxu0 0
        %512 = vmatprep.subr.bf16.mxu0 0
        %513 = vmatpush2.bf16.msra.mxu0 0
        %514 = vmatprep.subr.bf16.mxu0 0
        %515 = vmatpush2.bf16.msra.mxu0 0
        %516 = vmatprep.subr.bf16.mxu0 0
        %517 = vmatpush2.bf16.msra.mxu0 0
        %518 = vmatprep.subr.bf16.mxu0 0
        %519 = vmatpush2.bf16.msra.mxu0 0
        %520 = vmatprep.subr.bf16.mxu0 0
        %521 = vmatpush2.bf16.msra.mxu0 0
        %522 = vmatprep.subr.bf16.mxu0 0
        %523 = vmatpush2.bf16.msra.mxu0 0
        %524 = vmatprep.subr.bf16.mxu0 0
        %525 = vmatpush2.bf16.msra.mxu0 0
        %526 = vmatprep.mubr.bf16.mxu0 0
        %527 = vmatmul.mubr.bf16.gmra.mxu0 %v410
        %v528 = vpop.f32.mrf.mxu0
        %v529 = vadd.f32 0.0, %v528
        %v530 = vpop.f32.mrf.mxu0
        %v531 = vpop.f32.mrf.mxu0
        %v532 = vpop.f32.mrf.mxu0
        %533 = vdwg.mxu0
        %v550 = vunpack.c.l.b16 %v413
        %v551 = vunpack.c.l.b16 %v414
        %v552 = vunpack.c.l.b16 %v415
        %v553 = vunpack.c.l.b16 %v416
        %v554 = vunpack.c.l.b16 %v417
        %v555 = vunpack.c.l.b16 %v418
        %v556 = vunpack.c.l.b16 %v419
        %v557 = vunpack.c.l.b16 %v420
        %v558 = vunpack.c.l.b16 %v421
        %v559 = vunpack.c.l.b16 %v422
        %v560 = vunpack.c.l.b16 %v423
        %v561 = vunpack.c.l.b16 %v424
        %v562 = vunpack.c.l.b16 %v425
        %v563 = vunpack.c.l.b16 %v426
        %v564 = vunpack.c.l.b16 %v427
        %v565 = vunpack.c.l.b16 %v428
        %v566 = vpack.c.b16 %v551, %v550
        %v567 = vpack.c.b16 %v553, %v552
        %v568 = vpack.c.b16 %v555, %v554
        %v569 = vpack.c.b16 %v557, %v556
        %v570 = vpack.c.b16 %v559, %v558
        %v571 = vpack.c.b16 %v561, %v560
        %v572 = vpack.c.b16 %v563, %v562
        %v573 = vpack.c.b16 %v565, %v564
        %582 = vmatprep.subr.bf16.mxu0 0
        %583 = vmatpush1.bf16.msra.mxu0 %v573
        %584 = vmatprep.subr.bf16.mxu0 0
        %585 = vmatpush1.bf16.msra.mxu0 %v572
        %586 = vmatprep.subr.bf16.mxu0 0
        %587 = vmatpush1.bf16.msra.mxu0 %v571
        %588 = vmatprep.subr.bf16.mxu0 0
        %589 = vmatpush1.bf16.msra.mxu0 %v570
        %590 = vmatprep.subr.bf16.mxu0 0
        %591 = vmatpush1.bf16.msra.mxu0 %v569
        %592 = vmatprep.subr.bf16.mxu0 0
        %593 = vmatpush1.bf16.msra.mxu0 %v568
        %594 = vmatprep.subr.bf16.mxu0 0
        %595 = vmatpush1.bf16.msra.mxu0 %v567
        %596 = vmatprep.subr.bf16.mxu0 0
        %597 = vmatpush1.bf16.msra.mxu0 %v566
        %598 = vmatprep.subr.bf16.mxu0 0
        %599 = vmatpush2.bf16.msra.mxu0 0
        %600 = vmatprep.subr.bf16.mxu0 0
        %601 = vmatpush2.bf16.msra.mxu0 0
        %602 = vmatprep.subr.bf16.mxu0 0
        %603 = vmatpush2.bf16.msra.mxu0 0
        %604 = vmatprep.subr.bf16.mxu0 0
        %605 = vmatpush2.bf16.msra.mxu0 0
        %606 = vmatprep.subr.bf16.mxu0 0
        %607 = vmatpush2.bf16.msra.mxu0 0
        %608 = vmatprep.subr.bf16.mxu0 0
        %609 = vmatpush2.bf16.msra.mxu0 0
        %610 = vmatprep.subr.bf16.mxu0 0
        %611 = vmatpush2.bf16.msra.mxu0 0
        %612 = vmatprep.subr.bf16.mxu0 0
        %613 = vmatpush2.bf16.msra.mxu0 0
        %614 = vmatprep.mubr.bf16.mxu0 0
        %615 = vmatmul.mubr.bf16.gmra.mxu0 %v408
        %v616 = vpop.f32.mrf.mxu0
        %v617 = vadd.f32 %v529, %v616
        %v618 = vpop.f32.mrf.mxu0
        %v619 = vpop.f32.mrf.mxu0
        %v620 = vpop.f32.mrf.mxu0
        %621 = vdwg.mxu0
        %s622 = scalar_lea.vmem %s352, 1152 [#allocation8]
        %v623 = vld [vmem:[%s622] sm:$0xf]
        %v624 = vld [vmem:[%s622 + $0x24] sm:$0xf]
        %v625 = vld [vmem:[%s622 + $0x48] sm:$0xf]
        %v626 = vld [vmem:[%s622 + $0x6c] sm:$0xf]
        %v627 = vld [vmem:[%s622 + $0x90] sm:$0xf]
        %v628 = vld [vmem:[%s622 + $0xb4] sm:$0xf]
        %v629 = vld [vmem:[%s622 + $0xd8] sm:$0xf]
        %v630 = vld [vmem:[%s622 + $0xfc] sm:$0xf]
        %v631 = vld [vmem:[%s622 + $0x120] sm:$0xf]
        %v632 = vld [vmem:[%s622 + $0x144] sm:$0xf]
        %v633 = vld [vmem:[%s622 + $0x168] sm:$0xf]
        %v634 = vld [vmem:[%s622 + $0x18c] sm:$0xf]
        %v635 = vld [vmem:[%s622 + $0x1b0] sm:$0xf]
        %v636 = vld [vmem:[%s622 + $0x1d4] sm:$0xf]
        %v637 = vld [vmem:[%s622 + $0x1f8] sm:$0xf]
        %v638 = vld [vmem:[%s622 + $0x21c] sm:$0xf]
        %v655 = vunpack.c.l.b16 %v623
        %v656 = vunpack.c.l.b16 %v624
        %v657 = vunpack.c.l.b16 %v625
        %v658 = vunpack.c.l.b16 %v626
        %v659 = vunpack.c.l.b16 %v627
        %v660 = vunpack.c.l.b16 %v628
        %v661 = vunpack.c.l.b16 %v629
        %v662 = vunpack.c.l.b16 %v630
        %v663 = vunpack.c.l.b16 %v631
        %v664 = vunpack.c.l.b16 %v632
        %v665 = vunpack.c.l.b16 %v633
        %v666 = vunpack.c.l.b16 %v634
        %v667 = vunpack.c.l.b16 %v635
        %v668 = vunpack.c.l.b16 %v636
        %v669 = vunpack.c.l.b16 %v637
        %v670 = vunpack.c.l.b16 %v638
        %v671 = vpack.c.b16 %v656, %v655
        %v672 = vpack.c.b16 %v658, %v657
        %v673 = vpack.c.b16 %v660, %v659
        %v674 = vpack.c.b16 %v662, %v661
        %v675 = vpack.c.b16 %v664, %v663
        %v676 = vpack.c.b16 %v666, %v665
        %v677 = vpack.c.b16 %v668, %v667
        %v678 = vpack.c.b16 %v670, %v669
        %687 = vmatprep.subr.bf16.mxu0 0
        %688 = vmatpush1.bf16.msra.mxu0 %v678
        %689 = vmatprep.subr.bf16.mxu0 0
        %690 = vmatpush1.bf16.msra.mxu0 %v677
        %691 = vmatprep.subr.bf16.mxu0 0
        %692 = vmatpush1.bf16.msra.mxu0 %v676
        %693 = vmatprep.subr.bf16.mxu0 0
        %694 = vmatpush1.bf16.msra.mxu0 %v675
        %695 = vmatprep.subr.bf16.mxu0 0
        %696 = vmatpush1.bf16.msra.mxu0 %v674
        %697 = vmatprep.subr.bf16.mxu0 0
        %698 = vmatpush1.bf16.msra.mxu0 %v673
        %699 = vmatprep.subr.bf16.mxu0 0
        %700 = vmatpush1.bf16.msra.mxu0 %v672
        %701 = vmatprep.subr.bf16.mxu0 0
        %702 = vmatpush1.bf16.msra.mxu0 %v671
        %703 = vmatprep.subr.bf16.mxu0 0
        %704 = vmatpush2.bf16.msra.mxu0 0
        %705 = vmatprep.subr.bf16.mxu0 0
        %706 = vmatpush2.bf16.msra.mxu0 0
        %707 = vmatprep.subr.bf16.mxu0 0
        %708 = vmatpush2.bf16.msra.mxu0 0
        %709 = vmatprep.subr.bf16.mxu0 0
        %710 = vmatpush2.bf16.msra.mxu0 0
        %711 = vmatprep.subr.bf16.mxu0 0
        %712 = vmatpush2.bf16.msra.mxu0 0
        %713 = vmatprep.subr.bf16.mxu0 0
        %714 = vmatpush2.bf16.msra.mxu0 0
        %715 = vmatprep.subr.bf16.mxu0 0
        %716 = vmatpush2.bf16.msra.mxu0 0
        %717 = vmatprep.subr.bf16.mxu0 0
        %718 = vmatpush2.bf16.msra.mxu0 0
        %719 = vmatprep.mubr.bf16.mxu0 0
        %720 = vmatmul.mubr.bf16.gmra.mxu0 %v412
        %v721 = vpop.f32.mrf.mxu0
        %v722 = vadd.f32 0.0, %v721
        %v723 = vpop.f32.mrf.mxu0
        %v724 = vpop.f32.mrf.mxu0
        %v725 = vpop.f32.mrf.mxu0
        %726 = vdwg.mxu0
        %v727 = vadd.f32 %v617, %v722
        %v728 = vld [vmem:[%s352 + $0x4] sm:$0xf]
        %v729 = vld [vmem:[%s352 + $0x28] sm:$0xf]
        %v730 = vld [vmem:[%s352 + $0x4c] sm:$0xf]
        %v731 = vld [vmem:[%s352 + $0x70] sm:$0xf]
        %v732 = vld [vmem:[%s352 + $0x94] sm:$0xf]
        %v733 = vld [vmem:[%s352 + $0xb8] sm:$0xf]
        %v734 = vld [vmem:[%s352 + $0xdc] sm:$0xf]
        %v735 = vld [vmem:[%s352 + $0x100] sm:$0xf]
        %v736 = vld [vmem:[%s352 + $0x124] sm:$0xf]
        %v737 = vld [vmem:[%s352 + $0x148] sm:$0xf]
        %v738 = vld [vmem:[%s352 + $0x16c] sm:$0xf]
        %v739 = vld [vmem:[%s352 + $0x190] sm:$0xf]
        %v740 = vld [vmem:[%s352 + $0x1b4] sm:$0xf]
        %v741 = vld [vmem:[%s352 + $0x1d8] sm:$0xf]
        %v742 = vld [vmem:[%s352 + $0x1fc] sm:$0xf]
        %v743 = vld [vmem:[%s352 + $0x220] sm:$0xf]
        %v744 = vld [vmem:[%s429 + $0x4] sm:$0xf]
        %v745 = vld [vmem:[%s429 + $0x28] sm:$0xf]
        %v746 = vld [vmem:[%s429 + $0x4c] sm:$0xf]
        %v747 = vld [vmem:[%s429 + $0x70] sm:$0xf]
        %v748 = vld [vmem:[%s429 + $0x94] sm:$0xf]
        %v749 = vld [vmem:[%s429 + $0xb8] sm:$0xf]
        %v750 = vld [vmem:[%s429 + $0xdc] sm:$0xf]
        %v751 = vld [vmem:[%s429 + $0x100] sm:$0xf]
        %v752 = vld [vmem:[%s429 + $0x124] sm:$0xf]
        %v753 = vld [vmem:[%s429 + $0x148] sm:$0xf]
        %v754 = vld [vmem:[%s429 + $0x16c] sm:$0xf]
        %v755 = vld [vmem:[%s429 + $0x190] sm:$0xf]
        %v756 = vld [vmem:[%s429 + $0x1b4] sm:$0xf]
        %v757 = vld [vmem:[%s429 + $0x1d8] sm:$0xf]
        %v758 = vld [vmem:[%s429 + $0x1fc] sm:$0xf]
        %v759 = vld [vmem:[%s429 + $0x220] sm:$0xf]
        %v776 = vunpack.c.l.b16 %v744
        %v777 = vunpack.c.l.b16 %v745
        %v778 = vunpack.c.l.b16 %v746
        %v779 = vunpack.c.l.b16 %v747
        %v780 = vunpack.c.l.b16 %v748
        %v781 = vunpack.c.l.b16 %v749
        %v782 = vunpack.c.l.b16 %v750
        %v783 = vunpack.c.l.b16 %v751
        %v784 = vunpack.c.l.b16 %v752
        %v785 = vunpack.c.l.b16 %v753
        %v786 = vunpack.c.l.b16 %v754
        %v787 = vunpack.c.l.b16 %v755
        %v788 = vunpack.c.l.b16 %v756
        %v789 = vunpack.c.l.b16 %v757
        %v790 = vunpack.c.l.b16 %v758
        %v791 = vunpack.c.l.b16 %v759
        %v792 = vpack.c.b16 %v777, %v776
        %v793 = vpack.c.b16 %v779, %v778
        %v794 = vpack.c.b16 %v781, %v780
        %v795 = vpack.c.b16 %v783, %v782
        %v796 = vpack.c.b16 %v785, %v784
        %v797 = vpack.c.b16 %v787, %v786
        %v798 = vpack.c.b16 %v789, %v788
        %v799 = vpack.c.b16 %v791, %v790
        %808 = vmatprep.subr.bf16.mxu0 0
        %809 = vmatpush1.bf16.msra.mxu0 %v799
        %810 = vmatprep.subr.bf16.mxu0 0
        %811 = vmatpush1.bf16.msra.mxu0 %v798
        %812 = vmatprep.subr.bf16.mxu0 0
        %813 = vmatpush1.bf16.msra.mxu0 %v797
        %814 = vmatprep.subr.bf16.mxu0 0
        %815 = vmatpush1.bf16.msra.mxu0 %v796
        %816 = vmatprep.subr.bf16.mxu0 0
        %817 = vmatpush1.bf16.msra.mxu0 %v795
        %818 = vmatprep.subr.bf16.mxu0 0
        %819 = vmatpush1.bf16.msra.mxu0 %v794
        %820 = vmatprep.subr.bf16.mxu0 0
        %821 = vmatpush1.bf16.msra.mxu0 %v793
        %822 = vmatprep.subr.bf16.mxu0 0
        %823 = vmatpush1.bf16.msra.mxu0 %v792
        %824 = vmatprep.subr.bf16.mxu0 0
        %825 = vmatpush2.bf16.msra.mxu0 0
        %826 = vmatprep.subr.bf16.mxu0 0
        %827 = vmatpush2.bf16.msra.mxu0 0
        %828 = vmatprep.subr.bf16.mxu0 0
        %829 = vmatpush2.bf16.msra.mxu0 0
        %830 = vmatprep.subr.bf16.mxu0 0
        %831 = vmatpush2.bf16.msra.mxu0 0
        %832 = vmatprep.subr.bf16.mxu0 0
        %833 = vmatpush2.bf16.msra.mxu0 0
        %834 = vmatprep.subr.bf16.mxu0 0
        %835 = vmatpush2.bf16.msra.mxu0 0
        %836 = vmatprep.subr.bf16.mxu0 0
        %837 = vmatpush2.bf16.msra.mxu0 0
        %838 = vmatprep.subr.bf16.mxu0 0
        %839 = vmatpush2.bf16.msra.mxu0 0
        %840 = vmatprep.mubr.bf16.mxu0 0
        %841 = vmatmul.mubr.bf16.gmra.mxu0 %v410
        %v842 = vpop.f32.mrf.mxu0
        %v843 = vadd.f32 0.0, %v842
        %v844 = vpop.f32.mrf.mxu0
        %v845 = vpop.f32.mrf.mxu0
        %v846 = vpop.f32.mrf.mxu0
        %847 = vdwg.mxu0
        %v864 = vunpack.c.l.b16 %v728
        %v865 = vunpack.c.l.b16 %v729
        %v866 = vunpack.c.l.b16 %v730
        %v867 = vunpack.c.l.b16 %v731
        %v868 = vunpack.c.l.b16 %v732
        %v869 = vunpack.c.l.b16 %v733
        %v870 = vunpack.c.l.b16 %v734
        %v871 = vunpack.c.l.b16 %v735
        %v872 = vunpack.c.l.b16 %v736
        %v873 = vunpack.c.l.b16 %v737
        %v874 = vunpack.c.l.b16 %v738
        %v875 = vunpack.c.l.b16 %v739
        %v876 = vunpack.c.l.b16 %v740
        %v877 = vunpack.c.l.b16 %v741
        %v878 = vunpack.c.l.b16 %v742
        %v879 = vunpack.c.l.b16 %v743
        %v880 = vpack.c.b16 %v865, %v864
        %v881 = vpack.c.b16 %v867, %v866
        %v882 = vpack.c.b16 %v869, %v868
        %v883 = vpack.c.b16 %v871, %v870
        %v884 = vpack.c.b16 %v873, %v872
        %v885 = vpack.c.b16 %v875, %v874
        %v886 = vpack.c.b16 %v877, %v876
        %v887 = vpack.c.b16 %v879, %v878
        %896 = vmatprep.subr.bf16.mxu0 0
        %897 = vmatpush1.bf16.msra.mxu0 %v887
        %898 = vmatprep.subr.bf16.mxu0 0
        %899 = vmatpush1.bf16.msra.mxu0 %v886
        %900 = vmatprep.subr.bf16.mxu0 0
        %901 = vmatpush1.bf16.msra.mxu0 %v885
        %902 = vmatprep.subr.bf16.mxu0 0
        %903 = vmatpush1.bf16.msra.mxu0 %v884
        %904 = vmatprep.subr.bf16.mxu0 0
        %905 = vmatpush1.bf16.msra.mxu0 %v883
        %906 = vmatprep.subr.bf16.mxu0 0
        %907 = vmatpush1.bf16.msra.mxu0 %v882
        %908 = vmatprep.subr.bf16.mxu0 0
        %909 = vmatpush1.bf16.msra.mxu0 %v881
        %910 = vmatprep.subr.bf16.mxu0 0
        %911 = vmatpush1.bf16.msra.mxu0 %v880
        %912 = vmatprep.subr.bf16.mxu0 0
        %913 = vmatpush2.bf16.msra.mxu0 0
        %914 = vmatprep.subr.bf16.mxu0 0
        %915 = vmatpush2.bf16.msra.mxu0 0
        %916 = vmatprep.subr.bf16.mxu0 0
        %917 = vmatpush2.bf16.msra.mxu0 0
        %918 = vmatprep.subr.bf16.mxu0 0
        %919 = vmatpush2.bf16.msra.mxu0 0
        %920 = vmatprep.subr.bf16.mxu0 0
        %921 = vmatpush2.bf16.msra.mxu0 0
        %922 = vmatprep.subr.bf16.mxu0 0
        %923 = vmatpush2.bf16.msra.mxu0 0
        %924 = vmatprep.subr.bf16.mxu0 0
        %925 = vmatpush2.bf16.msra.mxu0 0
        %926 = vmatprep.subr.bf16.mxu0 0
        %927 = vmatpush2.bf16.msra.mxu0 0
        %928 = vmatprep.mubr.bf16.mxu0 0
        %929 = vmatmul.mubr.bf16.gmra.mxu0 %v408
        %v930 = vpop.f32.mrf.mxu0
        %v931 = vadd.f32 %v843, %v930
        %v932 = vpop.f32.mrf.mxu0
        %v933 = vpop.f32.mrf.mxu0
        %v934 = vpop.f32.mrf.mxu0
        %935 = vdwg.mxu0
        %v936 = vld [vmem:[%s622 + $0x4] sm:$0xf]
        %v937 = vld [vmem:[%s622 + $0x28] sm:$0xf]
        %v938 = vld [vmem:[%s622 + $0x4c] sm:$0xf]
        %v939 = vld [vmem:[%s622 + $0x70] sm:$0xf]
        %v940 = vld [vmem:[%s622 + $0x94] sm:$0xf]
        %v941 = vld [vmem:[%s622 + $0xb8] sm:$0xf]
        %v942 = vld [vmem:[%s622 + $0xdc] sm:$0xf]
        %v943 = vld [vmem:[%s622 + $0x100] sm:$0xf]
        %v944 = vld [vmem:[%s622 + $0x124] sm:$0xf]
        %v945 = vld [vmem:[%s622 + $0x148] sm:$0xf]
        %v946 = vld [vmem:[%s622 + $0x16c] sm:$0xf]
        %v947 = vld [vmem:[%s622 + $0x190] sm:$0xf]
        %v948 = vld [vmem:[%s622 + $0x1b4] sm:$0xf]
        %v949 = vld [vmem:[%s622 + $0x1d8] sm:$0xf]
        %v950 = vld [vmem:[%s622 + $0x1fc] sm:$0xf]
        %v951 = vld [vmem:[%s622 + $0x220] sm:$0xf]
        %v968 = vunpack.c.l.b16 %v936
        %v969 = vunpack.c.l.b16 %v937
        %v970 = vunpack.c.l.b16 %v938
        %v971 = vunpack.c.l.b16 %v939
        %v972 = vunpack.c.l.b16 %v940
        %v973 = vunpack.c.l.b16 %v941
        %v974 = vunpack.c.l.b16 %v942
        %v975 = vunpack.c.l.b16 %v943
        %v976 = vunpack.c.l.b16 %v944
        %v977 = vunpack.c.l.b16 %v945
        %v978 = vunpack.c.l.b16 %v946
        %v979 = vunpack.c.l.b16 %v947
        %v980 = vunpack.c.l.b16 %v948
        %v981 = vunpack.c.l.b16 %v949
        %v982 = vunpack.c.l.b16 %v950
        %v983 = vunpack.c.l.b16 %v951
        %v984 = vpack.c.b16 %v969, %v968
        %v985 = vpack.c.b16 %v971, %v970
        %v986 = vpack.c.b16 %v973, %v972
        %v987 = vpack.c.b16 %v975, %v974
        %v988 = vpack.c.b16 %v977, %v976
        %v989 = vpack.c.b16 %v979, %v978
        %v990 = vpack.c.b16 %v981, %v980
        %v991 = vpack.c.b16 %v983, %v982
        %1000 = vmatprep.subr.bf16.mxu0 0
        %1001 = vmatpush1.bf16.msra.mxu0 %v991
        %1002 = vmatprep.subr.bf16.mxu0 0
        %1003 = vmatpush1.bf16.msra.mxu0 %v990
        %1004 = vmatprep.subr.bf16.mxu0 0
        %1005 = vmatpush1.bf16.msra.mxu0 %v989
        %1006 = vmatprep.subr.bf16.mxu0 0
        %1007 = vmatpush1.bf16.msra.mxu0 %v988
        %1008 = vmatprep.subr.bf16.mxu0 0
        %1009 = vmatpush1.bf16.msra.mxu0 %v987
        %1010 = vmatprep.subr.bf16.mxu0 0
        %1011 = vmatpush1.bf16.msra.mxu0 %v986
        %1012 = vmatprep.subr.bf16.mxu0 0
        %1013 = vmatpush1.bf16.msra.mxu0 %v985
        %1014 = vmatprep.subr.bf16.mxu0 0
        %1015 = vmatpush1.bf16.msra.mxu0 %v984
        %1016 = vmatprep.subr.bf16.mxu0 0
        %1017 = vmatpush2.bf16.msra.mxu0 0
        %1018 = vmatprep.subr.bf16.mxu0 0
        %1019 = vmatpush2.bf16.msra.mxu0 0
        %1020 = vmatprep.subr.bf16.mxu0 0
        %1021 = vmatpush2.bf16.msra.mxu0 0
        %1022 = vmatprep.subr.bf16.mxu0 0
        %1023 = vmatpush2.bf16.msra.mxu0 0
        %1024 = vmatprep.subr.bf16.mxu0 0
        %1025 = vmatpush2.bf16.msra.mxu0 0
        %1026 = vmatprep.subr.bf16.mxu0 0
        %1027 = vmatpush2.bf16.msra.mxu0 0
        %1028 = vmatprep.subr.bf16.mxu0 0
        %1029 = vmatpush2.bf16.msra.mxu0 0
        %1030 = vmatprep.subr.bf16.mxu0 0
        %1031 = vmatpush2.bf16.msra.mxu0 0
        %1032 = vmatprep.mubr.bf16.mxu0 0
        %1033 = vmatmul.mubr.bf16.gmra.mxu0 %v412
        %v1034 = vpop.f32.mrf.mxu0
        %v1035 = vadd.f32 0.0, %v1034
        %v1036 = vpop.f32.mrf.mxu0
        %v1037 = vpop.f32.mrf.mxu0
        %v1038 = vpop.f32.mrf.mxu0
        %1039 = vdwg.mxu0
        %v1040 = vadd.f32 %v931, %v1035
        %v1041 = vmax.f32 %v727, %v1040
        %v1042 = vld [vmem:[%s352 + $0x8] sm:$0xf]
        %v1043 = vld [vmem:[%s352 + $0x2c] sm:$0xf]
        %v1044 = vld [vmem:[%s352 + $0x50] sm:$0xf]
        %v1045 = vld [vmem:[%s352 + $0x74] sm:$0xf]
        %v1046 = vld [vmem:[%s352 + $0x98] sm:$0xf]
        %v1047 = vld [vmem:[%s352 + $0xbc] sm:$0xf]
        %v1048 = vld [vmem:[%s352 + $0xe0] sm:$0xf]
        %v1049 = vld [vmem:[%s352 + $0x104] sm:$0xf]
        %v1050 = vld [vmem:[%s352 + $0x128] sm:$0xf]
        %v1051 = vld [vmem:[%s352 + $0x14c] sm:$0xf]
        %v1052 = vld [vmem:[%s352 + $0x170] sm:$0xf]
        %v1053 = vld [vmem:[%s352 + $0x194] sm:$0xf]
        %v1054 = vld [vmem:[%s352 + $0x1b8] sm:$0xf]
        %v1055 = vld [vmem:[%s352 + $0x1dc] sm:$0xf]
        %v1056 = vld [vmem:[%s352 + $0x200] sm:$0xf]
        %v1057 = vld [vmem:[%s352 + $0x224] sm:$0xf]
        %v1058 = vld [vmem:[%s429 + $0x8] sm:$0xf]
        %v1059 = vld [vmem:[%s429 + $0x2c] sm:$0xf]
        %v1060 = vld [vmem:[%s429 + $0x50] sm:$0xf]
        %v1061 = vld [vmem:[%s429 + $0x74] sm:$0xf]
        %v1062 = vld [vmem:[%s429 + $0x98] sm:$0xf]
        %v1063 = vld [vmem:[%s429 + $0xbc] sm:$0xf]
        %v1064 = vld [vmem:[%s429 + $0xe0] sm:$0xf]
        %v1065 = vld [vmem:[%s429 + $0x104] sm:$0xf]
        %v1066 = vld [vmem:[%s429 + $0x128] sm:$0xf]
        %v1067 = vld [vmem:[%s429 + $0x14c] sm:$0xf]
        %v1068 = vld [vmem:[%s429 + $0x170] sm:$0xf]
        %v1069 = vld [vmem:[%s429 + $0x194] sm:$0xf]
        %v1070 = vld [vmem:[%s429 + $0x1b8] sm:$0xf]
        %v1071 = vld [vmem:[%s429 + $0x1dc] sm:$0xf]
        %v1072 = vld [vmem:[%s429 + $0x200] sm:$0xf]
        %v1073 = vld [vmem:[%s429 + $0x224] sm:$0xf]
        %v1090 = vunpack.c.l.b16 %v1058
        %v1091 = vunpack.c.l.b16 %v1059
        %v1092 = vunpack.c.l.b16 %v1060
        %v1093 = vunpack.c.l.b16 %v1061
        %v1094 = vunpack.c.l.b16 %v1062
        %v1095 = vunpack.c.l.b16 %v1063
        %v1096 = vunpack.c.l.b16 %v1064
        %v1097 = vunpack.c.l.b16 %v1065
        %v1098 = vunpack.c.l.b16 %v1066
        %v1099 = vunpack.c.l.b16 %v1067
        %v1100 = vunpack.c.l.b16 %v1068
        %v1101 = vunpack.c.l.b16 %v1069
        %v1102 = vunpack.c.l.b16 %v1070
        %v1103 = vunpack.c.l.b16 %v1071
        %v1104 = vunpack.c.l.b16 %v1072
        %v1105 = vunpack.c.l.b16 %v1073
        %v1106 = vpack.c.b16 %v1091, %v1090
        %v1107 = vpack.c.b16 %v1093, %v1092
        %v1108 = vpack.c.b16 %v1095, %v1094
        %v1109 = vpack.c.b16 %v1097, %v1096
        %v1110 = vpack.c.b16 %v1099, %v1098
        %v1111 = vpack.c.b16 %v1101, %v1100
        %v1112 = vpack.c.b16 %v1103, %v1102
        %v1113 = vpack.c.b16 %v1105, %v1104
        %1122 = vmatprep.subr.bf16.mxu0 0
        %1123 = vmatpush1.bf16.msra.mxu0 %v1113
        %1124 = vmatprep.subr.bf16.mxu0 0
        %1125 = vmatpush1.bf16.msra.mxu0 %v1112
        %1126 = vmatprep.subr.bf16.mxu0 0
        %1127 = vmatpush1.bf16.msra.mxu0 %v1111
        %1128 = vmatprep.subr.bf16.mxu0 0
        %1129 = vmatpush1.bf16.msra.mxu0 %v1110
        %1130 = vmatprep.subr.bf16.mxu0 0
        %1131 = vmatpush1.bf16.msra.mxu0 %v1109
        %1132 = vmatprep.subr.bf16.mxu0 0
        %1133 = vmatpush1.bf16.msra.mxu0 %v1108
        %1134 = vmatprep.subr.bf16.mxu0 0
        %1135 = vmatpush1.bf16.msra.mxu0 %v1107
        %1136 = vmatprep.subr.bf16.mxu0 0
        %1137 = vmatpush1.bf16.msra.mxu0 %v1106
        %1138 = vmatprep.subr.bf16.mxu0 0
        %1139 = vmatpush2.bf16.msra.mxu0 0
        %1140 = vmatprep.subr.bf16.mxu0 0
        %1141 = vmatpush2.bf16.msra.mxu0 0
        %1142 = vmatprep.subr.bf16.mxu0 0
        %1143 = vmatpush2.bf16.msra.mxu0 0
        %1144 = vmatprep.subr.bf16.mxu0 0
        %1145 = vmatpush2.bf16.msra.mxu0 0
        %1146 = vmatprep.subr.bf16.mxu0 0
        %1147 = vmatpush2.bf16.msra.mxu0 0
        %1148 = vmatprep.subr.bf16.mxu0 0
        %1149 = vmatpush2.bf16.msra.mxu0 0
        %1150 = vmatprep.subr.bf16.mxu0 0
        %1151 = vmatpush2.bf16.msra.mxu0 0
        %1152 = vmatprep.subr.bf16.mxu0 0
        %1153 = vmatpush2.bf16.msra.mxu0 0
        %1154 = vmatprep.mubr.bf16.mxu0 0
        %1155 = vmatmul.mubr.bf16.gmra.mxu0 %v410
        %v1156 = vpop.f32.mrf.mxu0
        %v1157 = vadd.f32 0.0, %v1156
        %v1158 = vpop.f32.mrf.mxu0
        %v1159 = vpop.f32.mrf.mxu0
        %v1160 = vpop.f32.mrf.mxu0
        %1161 = vdwg.mxu0
        %v1178 = vunpack.c.l.b16 %v1042
        %v1179 = vunpack.c.l.b16 %v1043
        %v1180 = vunpack.c.l.b16 %v1044
        %v1181 = vunpack.c.l.b16 %v1045
        %v1182 = vunpack.c.l.b16 %v1046
        %v1183 = vunpack.c.l.b16 %v1047
        %v1184 = vunpack.c.l.b16 %v1048
        %v1185 = vunpack.c.l.b16 %v1049
        %v1186 = vunpack.c.l.b16 %v1050
        %v1187 = vunpack.c.l.b16 %v1051
        %v1188 = vunpack.c.l.b16 %v1052
        %v1189 = vunpack.c.l.b16 %v1053
        %v1190 = vunpack.c.l.b16 %v1054
        %v1191 = vunpack.c.l.b16 %v1055
        %v1192 = vunpack.c.l.b16 %v1056
        %v1193 = vunpack.c.l.b16 %v1057
        %v1194 = vpack.c.b16 %v1179, %v1178
        %v1195 = vpack.c.b16 %v1181, %v1180
        %v1196 = vpack.c.b16 %v1183, %v1182
        %v1197 = vpack.c.b16 %v1185, %v1184
        %v1198 = vpack.c.b16 %v1187, %v1186
        %v1199 = vpack.c.b16 %v1189, %v1188
        %v1200 = vpack.c.b16 %v1191, %v1190
        %v1201 = vpack.c.b16 %v1193, %v1192
        %1210 = vmatprep.subr.bf16.mxu0 0
        %1211 = vmatpush1.bf16.msra.mxu0 %v1201
        %1212 = vmatprep.subr.bf16.mxu0 0
        %1213 = vmatpush1.bf16.msra.mxu0 %v1200
        %1214 = vmatprep.subr.bf16.mxu0 0
        %1215 = vmatpush1.bf16.msra.mxu0 %v1199
        %1216 = vmatprep.subr.bf16.mxu0 0
        %1217 = vmatpush1.bf16.msra.mxu0 %v1198
        %1218 = vmatprep.subr.bf16.mxu0 0
        %1219 = vmatpush1.bf16.msra.mxu0 %v1197
        %1220 = vmatprep.subr.bf16.mxu0 0
        %1221 = vmatpush1.bf16.msra.mxu0 %v1196
        %1222 = vmatprep.subr.bf16.mxu0 0
        %1223 = vmatpush1.bf16.msra.mxu0 %v1195
        %1224 = vmatprep.subr.bf16.mxu0 0
        %1225 = vmatpush1.bf16.msra.mxu0 %v1194
        %1226 = vmatprep.subr.bf16.mxu0 0
        %1227 = vmatpush2.bf16.msra.mxu0 0
        %1228 = vmatprep.subr.bf16.mxu0 0
        %1229 = vmatpush2.bf16.msra.mxu0 0
        %1230 = vmatprep.subr.bf16.mxu0 0
        %1231 = vmatpush2.bf16.msra.mxu0 0
        %1232 = vmatprep.subr.bf16.mxu0 0
        %1233 = vmatpush2.bf16.msra.mxu0 0
        %1234 = vmatprep.subr.bf16.mxu0 0
        %1235 = vmatpush2.bf16.msra.mxu0 0
        %1236 = vmatprep.subr.bf16.mxu0 0
        %1237 = vmatpush2.bf16.msra.mxu0 0
        %1238 = vmatprep.subr.bf16.mxu0 0
        %1239 = vmatpush2.bf16.msra.mxu0 0
        %1240 = vmatprep.subr.bf16.mxu0 0
        %1241 = vmatpush2.bf16.msra.mxu0 0
        %1242 = vmatprep.mubr.bf16.mxu0 0
        %1243 = vmatmul.mubr.bf16.gmra.mxu0 %v408
        %v1244 = vpop.f32.mrf.mxu0
        %v1245 = vadd.f32 %v1157, %v1244
        %v1246 = vpop.f32.mrf.mxu0
        %v1247 = vpop.f32.mrf.mxu0
        %v1248 = vpop.f32.mrf.mxu0
        %1249 = vdwg.mxu0
        %v1250 = vld [vmem:[%s622 + $0x8] sm:$0xf]
        %v1251 = vld [vmem:[%s622 + $0x2c] sm:$0xf]
        %v1252 = vld [vmem:[%s622 + $0x50] sm:$0xf]
        %v1253 = vld [vmem:[%s622 + $0x74] sm:$0xf]
        %v1254 = vld [vmem:[%s622 + $0x98] sm:$0xf]
        %v1255 = vld [vmem:[%s622 + $0xbc] sm:$0xf]
        %v1256 = vld [vmem:[%s622 + $0xe0] sm:$0xf]
        %v1257 = vld [vmem:[%s622 + $0x104] sm:$0xf]
        %v1258 = vld [vmem:[%s622 + $0x128] sm:$0xf]
        %v1259 = vld [vmem:[%s622 + $0x14c] sm:$0xf]
        %v1260 = vld [vmem:[%s622 + $0x170] sm:$0xf]
        %v1261 = vld [vmem:[%s622 + $0x194] sm:$0xf]
        %v1262 = vld [vmem:[%s622 + $0x1b8] sm:$0xf]
        %v1263 = vld [vmem:[%s622 + $0x1dc] sm:$0xf]
        %v1264 = vld [vmem:[%s622 + $0x200] sm:$0xf]
        %v1265 = vld [vmem:[%s622 + $0x224] sm:$0xf]
        %v1282 = vunpack.c.l.b16 %v1250
        %v1283 = vunpack.c.l.b16 %v1251
        %v1284 = vunpack.c.l.b16 %v1252
        %v1285 = vunpack.c.l.b16 %v1253
        %v1286 = vunpack.c.l.b16 %v1254
        %v1287 = vunpack.c.l.b16 %v1255
        %v1288 = vunpack.c.l.b16 %v1256
        %v1289 = vunpack.c.l.b16 %v1257
        %v1290 = vunpack.c.l.b16 %v1258
        %v1291 = vunpack.c.l.b16 %v1259
        %v1292 = vunpack.c.l.b16 %v1260
        %v1293 = vunpack.c.l.b16 %v1261
        %v1294 = vunpack.c.l.b16 %v1262
        %v1295 = vunpack.c.l.b16 %v1263
        %v1296 = vunpack.c.l.b16 %v1264
        %v1297 = vunpack.c.l.b16 %v1265
        %v1298 = vpack.c.b16 %v1283, %v1282
        %v1299 = vpack.c.b16 %v1285, %v1284
        %v1300 = vpack.c.b16 %v1287, %v1286
        %v1301 = vpack.c.b16 %v1289, %v1288
        %v1302 = vpack.c.b16 %v1291, %v1290
        %v1303 = vpack.c.b16 %v1293, %v1292
        %v1304 = vpack.c.b16 %v1295, %v1294
        %v1305 = vpack.c.b16 %v1297, %v1296
        %1314 = vmatprep.subr.bf16.mxu0 0
        %1315 = vmatpush1.bf16.msra.mxu0 %v1305
        %1316 = vmatprep.subr.bf16.mxu0 0
        %1317 = vmatpush1.bf16.msra.mxu0 %v1304
        %1318 = vmatprep.subr.bf16.mxu0 0
        %1319 = vmatpush1.bf16.msra.mxu0 %v1303
        %1320 = vmatprep.subr.bf16.mxu0 0
        %1321 = vmatpush1.bf16.msra.mxu0 %v1302
        %1322 = vmatprep.subr.bf16.mxu0 0
        %1323 = vmatpush1.bf16.msra.mxu0 %v1301
        %1324 = vmatprep.subr.bf16.mxu0 0
        %1325 = vmatpush1.bf16.msra.mxu0 %v1300
        %1326 = vmatprep.subr.bf16.mxu0 0
        %1327 = vmatpush1.bf16.msra.mxu0 %v1299
        %1328 = vmatprep.subr.bf16.mxu0 0
        %1329 = vmatpush1.bf16.msra.mxu0 %v1298
        %1330 = vmatprep.subr.bf16.mxu0 0
        %1331 = vmatpush2.bf16.msra.mxu0 0
        %1332 = vmatprep.subr.bf16.mxu0 0
        %1333 = vmatpush2.bf16.msra.mxu0 0
        %1334 = vmatprep.subr.bf16.mxu0 0
        %1335 = vmatpush2.bf16.msra.mxu0 0
        %1336 = vmatprep.subr.bf16.mxu0 0
        %1337 = vmatpush2.bf16.msra.mxu0 0
        %1338 = vmatprep.subr.bf16.mxu0 0
        %1339 = vmatpush2.bf16.msra.mxu0 0
        %1340 = vmatprep.subr.bf16.mxu0 0
        %1341 = vmatpush2.bf16.msra.mxu0 0
        %1342 = vmatprep.subr.bf16.mxu0 0
        %1343 = vmatpush2.bf16.msra.mxu0 0
        %1344 = vmatprep.subr.bf16.mxu0 0
        %1345 = vmatpush2.bf16.msra.mxu0 0
        %1346 = vmatprep.mubr.bf16.mxu0 0
        %1347 = vmatmul.mubr.bf16.gmra.mxu0 %v412
        %v1348 = vpop.f32.mrf.mxu0
        %v1349 = vadd.f32 0.0, %v1348
        %v1350 = vpop.f32.mrf.mxu0
        %v1351 = vpop.f32.mrf.mxu0
        %v1352 = vpop.f32.mrf.mxu0
        %1353 = vdwg.mxu0
        %v1354 = vadd.f32 %v1245, %v1349
        %v1355 = vmax.f32 %v1041, %v1354
        %v1356 = vld [vmem:[%s352 + $0xc] sm:$0xf]
        %v1357 = vld [vmem:[%s352 + $0x30] sm:$0xf]
        %v1358 = vld [vmem:[%s352 + $0x54] sm:$0xf]
        %v1359 = vld [vmem:[%s352 + $0x78] sm:$0xf]
        %v1360 = vld [vmem:[%s352 + $0x9c] sm:$0xf]
        %v1361 = vld [vmem:[%s352 + $0xc0] sm:$0xf]
        %v1362 = vld [vmem:[%s352 + $0xe4] sm:$0xf]
        %v1363 = vld [vmem:[%s352 + $0x108] sm:$0xf]
        %v1364 = vld [vmem:[%s352 + $0x12c] sm:$0xf]
        %v1365 = vld [vmem:[%s352 + $0x150] sm:$0xf]
        %v1366 = vld [vmem:[%s352 + $0x174] sm:$0xf]
        %v1367 = vld [vmem:[%s352 + $0x198] sm:$0xf]
        %v1368 = vld [vmem:[%s352 + $0x1bc] sm:$0xf]
        %v1369 = vld [vmem:[%s352 + $0x1e0] sm:$0xf]
        %v1370 = vld [vmem:[%s352 + $0x204] sm:$0xf]
        %v1371 = vld [vmem:[%s352 + $0x228] sm:$0xf]
        %v1372 = vld [vmem:[%s429 + $0xc] sm:$0xf]
        %v1373 = vld [vmem:[%s429 + $0x30] sm:$0xf]
        %v1374 = vld [vmem:[%s429 + $0x54] sm:$0xf]
        %v1375 = vld [vmem:[%s429 + $0x78] sm:$0xf]
        %v1376 = vld [vmem:[%s429 + $0x9c] sm:$0xf]
        %v1377 = vld [vmem:[%s429 + $0xc0] sm:$0xf]
        %v1378 = vld [vmem:[%s429 + $0xe4] sm:$0xf]
        %v1379 = vld [vmem:[%s429 + $0x108] sm:$0xf]
        %v1380 = vld [vmem:[%s429 + $0x12c] sm:$0xf]
        %v1381 = vld [vmem:[%s429 + $0x150] sm:$0xf]
        %v1382 = vld [vmem:[%s429 + $0x174] sm:$0xf]
        %v1383 = vld [vmem:[%s429 + $0x198] sm:$0xf]
        %v1384 = vld [vmem:[%s429 + $0x1bc] sm:$0xf]
        %v1385 = vld [vmem:[%s429 + $0x1e0] sm:$0xf]
        %v1386 = vld [vmem:[%s429 + $0x204] sm:$0xf]
        %v1387 = vld [vmem:[%s429 + $0x228] sm:$0xf]
        %v1404 = vunpack.c.l.b16 %v1372
        %v1405 = vunpack.c.l.b16 %v1373
        %v1406 = vunpack.c.l.b16 %v1374
        %v1407 = vunpack.c.l.b16 %v1375
        %v1408 = vunpack.c.l.b16 %v1376
        %v1409 = vunpack.c.l.b16 %v1377
        %v1410 = vunpack.c.l.b16 %v1378
        %v1411 = vunpack.c.l.b16 %v1379
        %v1412 = vunpack.c.l.b16 %v1380
        %v1413 = vunpack.c.l.b16 %v1381
        %v1414 = vunpack.c.l.b16 %v1382
        %v1415 = vunpack.c.l.b16 %v1383
        %v1416 = vunpack.c.l.b16 %v1384
        %v1417 = vunpack.c.l.b16 %v1385
        %v1418 = vunpack.c.l.b16 %v1386
        %v1419 = vunpack.c.l.b16 %v1387
        %v1420 = vpack.c.b16 %v1405, %v1404
        %v1421 = vpack.c.b16 %v1407, %v1406
        %v1422 = vpack.c.b16 %v1409, %v1408
        %v1423 = vpack.c.b16 %v1411, %v1410
        %v1424 = vpack.c.b16 %v1413, %v1412
        %v1425 = vpack.c.b16 %v1415, %v1414
        %v1426 = vpack.c.b16 %v1417, %v1416
        %v1427 = vpack.c.b16 %v1419, %v1418
        %1436 = vmatprep.subr.bf16.mxu0 0
        %1437 = vmatpush1.bf16.msra.mxu0 %v1427
        %1438 = vmatprep.subr.bf16.mxu0 0
        %1439 = vmatpush1.bf16.msra.mxu0 %v1426
        %1440 = vmatprep.subr.bf16.mxu0 0
        %1441 = vmatpush1.bf16.msra.mxu0 %v1425
        %1442 = vmatprep.subr.bf16.mxu0 0
        %1443 = vmatpush1.bf16.msra.mxu0 %v1424
        %1444 = vmatprep.subr.bf16.mxu0 0
        %1445 = vmatpush1.bf16.msra.mxu0 %v1423
        %1446 = vmatprep.subr.bf16.mxu0 0
        %1447 = vmatpush1.bf16.msra.mxu0 %v1422
        %1448 = vmatprep.subr.bf16.mxu0 0
        %1449 = vmatpush1.bf16.msra.mxu0 %v1421
        %1450 = vmatprep.subr.bf16.mxu0 0
        %1451 = vmatpush1.bf16.msra.mxu0 %v1420
        %1452 = vmatprep.subr.bf16.mxu0 0
        %1453 = vmatpush2.bf16.msra.mxu0 0
        %1454 = vmatprep.subr.bf16.mxu0 0
        %1455 = vmatpush2.bf16.msra.mxu0 0
        %1456 = vmatprep.subr.bf16.mxu0 0
        %1457 = vmatpush2.bf16.msra.mxu0 0
        %1458 = vmatprep.subr.bf16.mxu0 0
        %1459 = vmatpush2.bf16.msra.mxu0 0
        %1460 = vmatprep.subr.bf16.mxu0 0
        %1461 = vmatpush2.bf16.msra.mxu0 0
        %1462 = vmatprep.subr.bf16.mxu0 0
        %1463 = vmatpush2.bf16.msra.mxu0 0
        %1464 = vmatprep.subr.bf16.mxu0 0
        %1465 = vmatpush2.bf16.msra.mxu0 0
        %1466 = vmatprep.subr.bf16.mxu0 0
        %1467 = vmatpush2.bf16.msra.mxu0 0
        %1468 = vmatprep.mubr.bf16.mxu0 0
        %1469 = vmatmul.mubr.bf16.gmra.mxu0 %v410
        %v1470 = vpop.f32.mrf.mxu0
        %v1471 = vadd.f32 0.0, %v1470
        %v1472 = vpop.f32.mrf.mxu0
        %v1473 = vpop.f32.mrf.mxu0
        %v1474 = vpop.f32.mrf.mxu0
        %1475 = vdwg.mxu0
        %v1492 = vunpack.c.l.b16 %v1356
        %v1493 = vunpack.c.l.b16 %v1357
        %v1494 = vunpack.c.l.b16 %v1358
        %v1495 = vunpack.c.l.b16 %v1359
        %v1496 = vunpack.c.l.b16 %v1360
        %v1497 = vunpack.c.l.b16 %v1361
        %v1498 = vunpack.c.l.b16 %v1362
        %v1499 = vunpack.c.l.b16 %v1363
        %v1500 = vunpack.c.l.b16 %v1364
        %v1501 = vunpack.c.l.b16 %v1365
        %v1502 = vunpack.c.l.b16 %v1366
        %v1503 = vunpack.c.l.b16 %v1367
        %v1504 = vunpack.c.l.b16 %v1368
        %v1505 = vunpack.c.l.b16 %v1369
        %v1506 = vunpack.c.l.b16 %v1370
        %v1507 = vunpack.c.l.b16 %v1371
        %v1508 = vpack.c.b16 %v1493, %v1492
        %v1509 = vpack.c.b16 %v1495, %v1494
        %v1510 = vpack.c.b16 %v1497, %v1496
        %v1511 = vpack.c.b16 %v1499, %v1498
        %v1512 = vpack.c.b16 %v1501, %v1500
        %v1513 = vpack.c.b16 %v1503, %v1502
        %v1514 = vpack.c.b16 %v1505, %v1504
        %v1515 = vpack.c.b16 %v1507, %v1506
        %1524 = vmatprep.subr.bf16.mxu0 0
        %1525 = vmatpush1.bf16.msra.mxu0 %v1515
        %1526 = vmatprep.subr.bf16.mxu0 0
        %1527 = vmatpush1.bf16.msra.mxu0 %v1514
        %1528 = vmatprep.subr.bf16.mxu0 0
        %1529 = vmatpush1.bf16.msra.mxu0 %v1513
        %1530 = vmatprep.subr.bf16.mxu0 0
        %1531 = vmatpush1.bf16.msra.mxu0 %v1512
        %1532 = vmatprep.subr.bf16.mxu0 0
        %1533 = vmatpush1.bf16.msra.mxu0 %v1511
        %1534 = vmatprep.subr.bf16.mxu0 0
        %1535 = vmatpush1.bf16.msra.mxu0 %v1510
        %1536 = vmatprep.subr.bf16.mxu0 0
        %1537 = vmatpush1.bf16.msra.mxu0 %v1509
        %1538 = vmatprep.subr.bf16.mxu0 0
        %1539 = vmatpush1.bf16.msra.mxu0 %v1508
        %1540 = vmatprep.subr.bf16.mxu0 0
        %1541 = vmatpush2.bf16.msra.mxu0 0
        %1542 = vmatprep.subr.bf16.mxu0 0
        %1543 = vmatpush2.bf16.msra.mxu0 0
        %1544 = vmatprep.subr.bf16.mxu0 0
        %1545 = vmatpush2.bf16.msra.mxu0 0
        %1546 = vmatprep.subr.bf16.mxu0 0
        %1547 = vmatpush2.bf16.msra.mxu0 0
        %1548 = vmatprep.subr.bf16.mxu0 0
        %1549 = vmatpush2.bf16.msra.mxu0 0
        %1550 = vmatprep.subr.bf16.mxu0 0
        %1551 = vmatpush2.bf16.msra.mxu0 0
        %1552 = vmatprep.subr.bf16.mxu0 0
        %1553 = vmatpush2.bf16.msra.mxu0 0
        %1554 = vmatprep.subr.bf16.mxu0 0
        %1555 = vmatpush2.bf16.msra.mxu0 0
        %1556 = vmatprep.mubr.bf16.mxu0 0
        %1557 = vmatmul.mubr.bf16.gmra.mxu0 %v408
        %v1558 = vpop.f32.mrf.mxu0
        %v1559 = vadd.f32 %v1471, %v1558
        %v1560 = vpop.f32.mrf.mxu0
        %v1561 = vpop.f32.mrf.mxu0
        %v1562 = vpop.f32.mrf.mxu0
        %1563 = vdwg.mxu0
        %v1564 = vld [vmem:[%s622 + $0xc] sm:$0xf]
        %v1565 = vld [vmem:[%s622 + $0x30] sm:$0xf]
        %v1566 = vld [vmem:[%s622 + $0x54] sm:$0xf]
        %v1567 = vld [vmem:[%s622 + $0x78] sm:$0xf]
        %v1568 = vld [vmem:[%s622 + $0x9c] sm:$0xf]
        %v1569 = vld [vmem:[%s622 + $0xc0] sm:$0xf]
        %v1570 = vld [vmem:[%s622 + $0xe4] sm:$0xf]
        %v1571 = vld [vmem:[%s622 + $0x108] sm:$0xf]
        %v1572 = vld [vmem:[%s622 + $0x12c] sm:$0xf]
        %v1573 = vld [vmem:[%s622 + $0x150] sm:$0xf]
        %v1574 = vld [vmem:[%s622 + $0x174] sm:$0xf]
        %v1575 = vld [vmem:[%s622 + $0x198] sm:$0xf]
        %v1576 = vld [vmem:[%s622 + $0x1bc] sm:$0xf]
        %v1577 = vld [vmem:[%s622 + $0x1e0] sm:$0xf]
        %v1578 = vld [vmem:[%s622 + $0x204] sm:$0xf]
        %v1579 = vld [vmem:[%s622 + $0x228] sm:$0xf]
        %v1596 = vunpack.c.l.b16 %v1564
        %v1597 = vunpack.c.l.b16 %v1565
        %v1598 = vunpack.c.l.b16 %v1566
        %v1599 = vunpack.c.l.b16 %v1567
        %v1600 = vunpack.c.l.b16 %v1568
        %v1601 = vunpack.c.l.b16 %v1569
        %v1602 = vunpack.c.l.b16 %v1570
        %v1603 = vunpack.c.l.b16 %v1571
        %v1604 = vunpack.c.l.b16 %v1572
        %v1605 = vunpack.c.l.b16 %v1573
        %v1606 = vunpack.c.l.b16 %v1574
        %v1607 = vunpack.c.l.b16 %v1575
        %v1608 = vunpack.c.l.b16 %v1576
        %v1609 = vunpack.c.l.b16 %v1577
        %v1610 = vunpack.c.l.b16 %v1578
        %v1611 = vunpack.c.l.b16 %v1579
        %v1612 = vpack.c.b16 %v1597, %v1596
        %v1613 = vpack.c.b16 %v1599, %v1598
        %v1614 = vpack.c.b16 %v1601, %v1600
        %v1615 = vpack.c.b16 %v1603, %v1602
        %v1616 = vpack.c.b16 %v1605, %v1604
        %v1617 = vpack.c.b16 %v1607, %v1606
        %v1618 = vpack.c.b16 %v1609, %v1608
        %v1619 = vpack.c.b16 %v1611, %v1610
        %1628 = vmatprep.subr.bf16.mxu0 0
        %1629 = vmatpush1.bf16.msra.mxu0 %v1619
        %1630 = vmatprep.subr.bf16.mxu0 0
        %1631 = vmatpush1.bf16.msra.mxu0 %v1618
        %1632 = vmatprep.subr.bf16.mxu0 0
        %1633 = vmatpush1.bf16.msra.mxu0 %v1617
        %1634 = vmatprep.subr.bf16.mxu0 0
        %1635 = vmatpush1.bf16.msra.mxu0 %v1616
        %1636 = vmatprep.subr.bf16.mxu0 0
        %1637 = vmatpush1.bf16.msra.mxu0 %v1615
        %1638 = vmatprep.subr.bf16.mxu0 0
        %1639 = vmatpush1.bf16.msra.mxu0 %v1614
        %1640 = vmatprep.subr.bf16.mxu0 0
        %1641 = vmatpush1.bf16.msra.mxu0 %v1613
        %1642 = vmatprep.subr.bf16.mxu0 0
        %1643 = vmatpush1.bf16.msra.mxu0 %v1612
        %1644 = vmatprep.subr.bf16.mxu0 0
        %1645 = vmatpush2.bf16.msra.mxu0 0
        %1646 = vmatprep.subr.bf16.mxu0 0
        %1647 = vmatpush2.bf16.msra.mxu0 0
        %1648 = vmatprep.subr.bf16.mxu0 0
        %1649 = vmatpush2.bf16.msra.mxu0 0
        %1650 = vmatprep.subr.bf16.mxu0 0
        %1651 = vmatpush2.bf16.msra.mxu0 0
        %1652 = vmatprep.subr.bf16.mxu0 0
        %1653 = vmatpush2.bf16.msra.mxu0 0
        %1654 = vmatprep.subr.bf16.mxu0 0
        %1655 = vmatpush2.bf16.msra.mxu0 0
        %1656 = vmatprep.subr.bf16.mxu0 0
        %1657 = vmatpush2.bf16.msra.mxu0 0
        %1658 = vmatprep.subr.bf16.mxu0 0
        %1659 = vmatpush2.bf16.msra.mxu0 0
        %1660 = vmatprep.mubr.bf16.mxu0 0
        %1661 = vmatmul.mubr.bf16.gmra.mxu0 %v412
        %v1662 = vpop.f32.mrf.mxu0
        %v1663 = vadd.f32 0.0, %v1662
        %v1664 = vpop.f32.mrf.mxu0
        %v1665 = vpop.f32.mrf.mxu0
        %v1666 = vpop.f32.mrf.mxu0
        %1667 = vdwg.mxu0
        %v1668 = vadd.f32 %v1559, %v1663
        %v1669 = vmax.f32 %v1355, %v1668
        %v1670 = vld [vmem:[%s352 + $0x10] sm:$0xf]
        %v1671 = vld [vmem:[%s352 + $0x34] sm:$0xf]
        %v1672 = vld [vmem:[%s352 + $0x58] sm:$0xf]
        %v1673 = vld [vmem:[%s352 + $0x7c] sm:$0xf]
        %v1674 = vld [vmem:[%s352 + $0xa0] sm:$0xf]
        %v1675 = vld [vmem:[%s352 + $0xc4] sm:$0xf]
        %v1676 = vld [vmem:[%s352 + $0xe8] sm:$0xf]
        %v1677 = vld [vmem:[%s352 + $0x10c] sm:$0xf]
        %v1678 = vld [vmem:[%s352 + $0x130] sm:$0xf]
        %v1679 = vld [vmem:[%s352 + $0x154] sm:$0xf]
        %v1680 = vld [vmem:[%s352 + $0x178] sm:$0xf]
        %v1681 = vld [vmem:[%s352 + $0x19c] sm:$0xf]
        %v1682 = vld [vmem:[%s352 + $0x1c0] sm:$0xf]
        %v1683 = vld [vmem:[%s352 + $0x1e4] sm:$0xf]
        %v1684 = vld [vmem:[%s352 + $0x208] sm:$0xf]
        %v1685 = vld [vmem:[%s352 + $0x22c] sm:$0xf]
        %v1686 = vld [vmem:[%s429 + $0x10] sm:$0xf]
        %v1687 = vld [vmem:[%s429 + $0x34] sm:$0xf]
        %v1688 = vld [vmem:[%s429 + $0x58] sm:$0xf]
        %v1689 = vld [vmem:[%s429 + $0x7c] sm:$0xf]
        %v1690 = vld [vmem:[%s429 + $0xa0] sm:$0xf]
        %v1691 = vld [vmem:[%s429 + $0xc4] sm:$0xf]
        %v1692 = vld [vmem:[%s429 + $0xe8] sm:$0xf]
        %v1693 = vld [vmem:[%s429 + $0x10c] sm:$0xf]
        %v1694 = vld [vmem:[%s429 + $0x130] sm:$0xf]
        %v1695 = vld [vmem:[%s429 + $0x154] sm:$0xf]
        %v1696 = vld [vmem:[%s429 + $0x178] sm:$0xf]
        %v1697 = vld [vmem:[%s429 + $0x19c] sm:$0xf]
        %v1698 = vld [vmem:[%s429 + $0x1c0] sm:$0xf]
        %v1699 = vld [vmem:[%s429 + $0x1e4] sm:$0xf]
        %v1700 = vld [vmem:[%s429 + $0x208] sm:$0xf]
        %v1701 = vld [vmem:[%s429 + $0x22c] sm:$0xf]
        %v1718 = vunpack.c.l.b16 %v1686
        %v1719 = vunpack.c.l.b16 %v1687
        %v1720 = vunpack.c.l.b16 %v1688
        %v1721 = vunpack.c.l.b16 %v1689
        %v1722 = vunpack.c.l.b16 %v1690
        %v1723 = vunpack.c.l.b16 %v1691
        %v1724 = vunpack.c.l.b16 %v1692
        %v1725 = vunpack.c.l.b16 %v1693
        %v1726 = vunpack.c.l.b16 %v1694
        %v1727 = vunpack.c.l.b16 %v1695
        %v1728 = vunpack.c.l.b16 %v1696
        %v1729 = vunpack.c.l.b16 %v1697
        %v1730 = vunpack.c.l.b16 %v1698
        %v1731 = vunpack.c.l.b16 %v1699
        %v1732 = vunpack.c.l.b16 %v1700
        %v1733 = vunpack.c.l.b16 %v1701
        %v1734 = vpack.c.b16 %v1719, %v1718
        %v1735 = vpack.c.b16 %v1721, %v1720
        %v1736 = vpack.c.b16 %v1723, %v1722
        %v1737 = vpack.c.b16 %v1725, %v1724
        %v1738 = vpack.c.b16 %v1727, %v1726
        %v1739 = vpack.c.b16 %v1729, %v1728
        %v1740 = vpack.c.b16 %v1731, %v1730
        %v1741 = vpack.c.b16 %v1733, %v1732
        %1750 = vmatprep.subr.bf16.mxu0 0
        %1751 = vmatpush1.bf16.msra.mxu0 %v1741
        %1752 = vmatprep.subr.bf16.mxu0 0
        %1753 = vmatpush1.bf16.msra.mxu0 %v1740
        %1754 = vmatprep.subr.bf16.mxu0 0
        %1755 = vmatpush1.bf16.msra.mxu0 %v1739
        %1756 = vmatprep.subr.bf16.mxu0 0
        %1757 = vmatpush1.bf16.msra.mxu0 %v1738
        %1758 = vmatprep.subr.bf16.mxu0 0
        %1759 = vmatpush1.bf16.msra.mxu0 %v1737
        %1760 = vmatprep.subr.bf16.mxu0 0
        %1761 = vmatpush1.bf16.msra.mxu0 %v1736
        %1762 = vmatprep.subr.bf16.mxu0 0
        %1763 = vmatpush1.bf16.msra.mxu0 %v1735
        %1764 = vmatprep.subr.bf16.mxu0 0
        %1765 = vmatpush1.bf16.msra.mxu0 %v1734
        %1766 = vmatprep.subr.bf16.mxu0 0
        %1767 = vmatpush2.bf16.msra.mxu0 0
        %1768 = vmatprep.subr.bf16.mxu0 0
        %1769 = vmatpush2.bf16.msra.mxu0 0
        %1770 = vmatprep.subr.bf16.mxu0 0
        %1771 = vmatpush2.bf16.msra.mxu0 0
        %1772 = vmatprep.subr.bf16.mxu0 0
        %1773 = vmatpush2.bf16.msra.mxu0 0
        %1774 = vmatprep.subr.bf16.mxu0 0
        %1775 = vmatpush2.bf16.msra.mxu0 0
        %1776 = vmatprep.subr.bf16.mxu0 0
        %1777 = vmatpush2.bf16.msra.mxu0 0
        %1778 = vmatprep.subr.bf16.mxu0 0
        %1779 = vmatpush2.bf16.msra.mxu0 0
        %1780 = vmatprep.subr.bf16.mxu0 0
        %1781 = vmatpush2.bf16.msra.mxu0 0
        %1782 = vmatprep.mubr.bf16.mxu0 0
        %1783 = vmatmul.mubr.bf16.gmra.mxu0 %v410
        %v1784 = vpop.f32.mrf.mxu0
        %v1785 = vadd.f32 0.0, %v1784
        %v1786 = vpop.f32.mrf.mxu0
        %v1787 = vpop.f32.mrf.mxu0
        %v1788 = vpop.f32.mrf.mxu0
        %1789 = vdwg.mxu0
        %v1806 = vunpack.c.l.b16 %v1670
        %v1807 = vunpack.c.l.b16 %v1671
        %v1808 = vunpack.c.l.b16 %v1672
        %v1809 = vunpack.c.l.b16 %v1673
        %v1810 = vunpack.c.l.b16 %v1674
        %v1811 = vunpack.c.l.b16 %v1675
        %v1812 = vunpack.c.l.b16 %v1676
        %v1813 = vunpack.c.l.b16 %v1677
        %v1814 = vunpack.c.l.b16 %v1678
        %v1815 = vunpack.c.l.b16 %v1679
        %v1816 = vunpack.c.l.b16 %v1680
        %v1817 = vunpack.c.l.b16 %v1681
        %v1818 = vunpack.c.l.b16 %v1682
        %v1819 = vunpack.c.l.b16 %v1683
        %v1820 = vunpack.c.l.b16 %v1684
        %v1821 = vunpack.c.l.b16 %v1685
        %v1822 = vpack.c.b16 %v1807, %v1806
        %v1823 = vpack.c.b16 %v1809, %v1808
        %v1824 = vpack.c.b16 %v1811, %v1810
        %v1825 = vpack.c.b16 %v1813, %v1812
        %v1826 = vpack.c.b16 %v1815, %v1814
        %v1827 = vpack.c.b16 %v1817, %v1816
        %v1828 = vpack.c.b16 %v1819, %v1818
        %v1829 = vpack.c.b16 %v1821, %v1820
        %1838 = vmatprep.subr.bf16.mxu0 0
        %1839 = vmatpush1.bf16.msra.mxu0 %v1829
        %1840 = vmatprep.subr.bf16.mxu0 0
        %1841 = vmatpush1.bf16.msra.mxu0 %v1828
        %1842 = vmatprep.subr.bf16.mxu0 0
        %1843 = vmatpush1.bf16.msra.mxu0 %v1827
        %1844 = vmatprep.subr.bf16.mxu0 0
        %1845 = vmatpush1.bf16.msra.mxu0 %v1826
        %1846 = vmatprep.subr.bf16.mxu0 0
        %1847 = vmatpush1.bf16.msra.mxu0 %v1825
        %1848 = vmatprep.subr.bf16.mxu0 0
        %1849 = vmatpush1.bf16.msra.mxu0 %v1824
        %1850 = vmatprep.subr.bf16.mxu0 0
        %1851 = vmatpush1.bf16.msra.mxu0 %v1823
        %1852 = vmatprep.subr.bf16.mxu0 0
        %1853 = vmatpush1.bf16.msra.mxu0 %v1822
        %1854 = vmatprep.subr.bf16.mxu0 0
        %1855 = vmatpush2.bf16.msra.mxu0 0
        %1856 = vmatprep.subr.bf16.mxu0 0
        %1857 = vmatpush2.bf16.msra.mxu0 0
        %1858 = vmatprep.subr.bf16.mxu0 0
        %1859 = vmatpush2.bf16.msra.mxu0 0
        %1860 = vmatprep.subr.bf16.mxu0 0
        %1861 = vmatpush2.bf16.msra.mxu0 0
        %1862 = vmatprep.subr.bf16.mxu0 0
        %1863 = vmatpush2.bf16.msra.mxu0 0
        %1864 = vmatprep.subr.bf16.mxu0 0
        %1865 = vmatpush2.bf16.msra.mxu0 0
        %1866 = vmatprep.subr.bf16.mxu0 0
        %1867 = vmatpush2.bf16.msra.mxu0 0
        %1868 = vmatprep.subr.bf16.mxu0 0
        %1869 = vmatpush2.bf16.msra.mxu0 0
        %1870 = vmatprep.mubr.bf16.mxu0 0
        %1871 = vmatmul.mubr.bf16.gmra.mxu0 %v408
        %v1872 = vpop.f32.mrf.mxu0
        %v1873 = vadd.f32 %v1785, %v1872
        %v1874 = vpop.f32.mrf.mxu0
        %v1875 = vpop.f32.mrf.mxu0
        %v1876 = vpop.f32.mrf.mxu0
        %1877 = vdwg.mxu0
        %v1878 = vld [vmem:[%s622 + $0x10] sm:$0xf]
        %v1879 = vld [vmem:[%s622 + $0x34] sm:$0xf]
        %v1880 = vld [vmem:[%s622 + $0x58] sm:$0xf]
        %v1881 = vld [vmem:[%s622 + $0x7c] sm:$0xf]
        %v1882 = vld [vmem:[%s622 + $0xa0] sm:$0xf]
        %v1883 = vld [vmem:[%s622 + $0xc4] sm:$0xf]
        %v1884 = vld [vmem:[%s622 + $0xe8] sm:$0xf]
        %v1885 = vld [vmem:[%s622 + $0x10c] sm:$0xf]
        %v1886 = vld [vmem:[%s622 + $0x130] sm:$0xf]
        %v1887 = vld [vmem:[%s622 + $0x154] sm:$0xf]
        %v1888 = vld [vmem:[%s622 + $0x178] sm:$0xf]
        %v1889 = vld [vmem:[%s622 + $0x19c] sm:$0xf]
        %v1890 = vld [vmem:[%s622 + $0x1c0] sm:$0xf]
        %v1891 = vld [vmem:[%s622 + $0x1e4] sm:$0xf]
        %v1892 = vld [vmem:[%s622 + $0x208] sm:$0xf]
        %v1893 = vld [vmem:[%s622 + $0x22c] sm:$0xf]
        %v1910 = vunpack.c.l.b16 %v1878
        %v1911 = vunpack.c.l.b16 %v1879
        %v1912 = vunpack.c.l.b16 %v1880
        %v1913 = vunpack.c.l.b16 %v1881
        %v1914 = vunpack.c.l.b16 %v1882
        %v1915 = vunpack.c.l.b16 %v1883
        %v1916 = vunpack.c.l.b16 %v1884
        %v1917 = vunpack.c.l.b16 %v1885
        %v1918 = vunpack.c.l.b16 %v1886
        %v1919 = vunpack.c.l.b16 %v1887
        %v1920 = vunpack.c.l.b16 %v1888
        %v1921 = vunpack.c.l.b16 %v1889
        %v1922 = vunpack.c.l.b16 %v1890
        %v1923 = vunpack.c.l.b16 %v1891
        %v1924 = vunpack.c.l.b16 %v1892
        %v1925 = vunpack.c.l.b16 %v1893
        %v1926 = vpack.c.b16 %v1911, %v1910
        %v1927 = vpack.c.b16 %v1913, %v1912
        %v1928 = vpack.c.b16 %v1915, %v1914
        %v1929 = vpack.c.b16 %v1917, %v1916
        %v1930 = vpack.c.b16 %v1919, %v1918
        %v1931 = vpack.c.b16 %v1921, %v1920
        %v1932 = vpack.c.b16 %v1923, %v1922
        %v1933 = vpack.c.b16 %v1925, %v1924
        %1942 = vmatprep.subr.bf16.mxu0 0
        %1943 = vmatpush1.bf16.msra.mxu0 %v1933
        %1944 = vmatprep.subr.bf16.mxu0 0
        %1945 = vmatpush1.bf16.msra.mxu0 %v1932
        %1946 = vmatprep.subr.bf16.mxu0 0
        %1947 = vmatpush1.bf16.msra.mxu0 %v1931
        %1948 = vmatprep.subr.bf16.mxu0 0
        %1949 = vmatpush1.bf16.msra.mxu0 %v1930
        %1950 = vmatprep.subr.bf16.mxu0 0
        %1951 = vmatpush1.bf16.msra.mxu0 %v1929
        %1952 = vmatprep.subr.bf16.mxu0 0
        %1953 = vmatpush1.bf16.msra.mxu0 %v1928
        %1954 = vmatprep.subr.bf16.mxu0 0
        %1955 = vmatpush1.bf16.msra.mxu0 %v1927
        %1956 = vmatprep.subr.bf16.mxu0 0
        %1957 = vmatpush1.bf16.msra.mxu0 %v1926
        %1958 = vmatprep.subr.bf16.mxu0 0
        %1959 = vmatpush2.bf16.msra.mxu0 0
        %1960 = vmatprep.subr.bf16.mxu0 0
        %1961 = vmatpush2.bf16.msra.mxu0 0
        %1962 = vmatprep.subr.bf16.mxu0 0
        %1963 = vmatpush2.bf16.msra.mxu0 0
        %1964 = vmatprep.subr.bf16.mxu0 0
        %1965 = vmatpush2.bf16.msra.mxu0 0
        %1966 = vmatprep.subr.bf16.mxu0 0
        %1967 = vmatpush2.bf16.msra.mxu0 0
        %1968 = vmatprep.subr.bf16.mxu0 0
        %1969 = vmatpush2.bf16.msra.mxu0 0
        %1970 = vmatprep.subr.bf16.mxu0 0
        %1971 = vmatpush2.bf16.msra.mxu0 0
        %1972 = vmatprep.subr.bf16.mxu0 0
        %1973 = vmatpush2.bf16.msra.mxu0 0
        %1974 = vmatprep.mubr.bf16.mxu0 0
        %1975 = vmatmul.mubr.bf16.gmra.mxu0 %v412
        %v1976 = vpop.f32.mrf.mxu0
        %v1977 = vadd.f32 0.0, %v1976
        %v1978 = vpop.f32.mrf.mxu0
        %v1979 = vpop.f32.mrf.mxu0
        %v1980 = vpop.f32.mrf.mxu0
        %1981 = vdwg.mxu0
        %v1982 = vadd.f32 %v1873, %v1977
        %v1983 = vmax.f32 %v1669, %v1982
        %v1984 = vld [vmem:[%s352 + $0x14] sm:$0xf]
        %v1985 = vld [vmem:[%s352 + $0x38] sm:$0xf]
        %v1986 = vld [vmem:[%s352 + $0x5c] sm:$0xf]
        %v1987 = vld [vmem:[%s352 + $0x80] sm:$0xf]
        %v1988 = vld [vmem:[%s352 + $0xa4] sm:$0xf]
        %v1989 = vld [vmem:[%s352 + $0xc8] sm:$0xf]
        %v1990 = vld [vmem:[%s352 + $0xec] sm:$0xf]
        %v1991 = vld [vmem:[%s352 + $0x110] sm:$0xf]
        %v1992 = vld [vmem:[%s352 + $0x134] sm:$0xf]
        %v1993 = vld [vmem:[%s352 + $0x158] sm:$0xf]
        %v1994 = vld [vmem:[%s352 + $0x17c] sm:$0xf]
        %v1995 = vld [vmem:[%s352 + $0x1a0] sm:$0xf]
        %v1996 = vld [vmem:[%s352 + $0x1c4] sm:$0xf]
        %v1997 = vld [vmem:[%s352 + $0x1e8] sm:$0xf]
        %v1998 = vld [vmem:[%s352 + $0x20c] sm:$0xf]
        %v1999 = vld [vmem:[%s352 + $0x230] sm:$0xf]
        %v2000 = vld [vmem:[%s429 + $0x14] sm:$0xf]
        %v2001 = vld [vmem:[%s429 + $0x38] sm:$0xf]
        %v2002 = vld [vmem:[%s429 + $0x5c] sm:$0xf]
        %v2003 = vld [vmem:[%s429 + $0x80] sm:$0xf]
        %v2004 = vld [vmem:[%s429 + $0xa4] sm:$0xf]
        %v2005 = vld [vmem:[%s429 + $0xc8] sm:$0xf]
        %v2006 = vld [vmem:[%s429 + $0xec] sm:$0xf]
        %v2007 = vld [vmem:[%s429 + $0x110] sm:$0xf]
        %v2008 = vld [vmem:[%s429 + $0x134] sm:$0xf]
        %v2009 = vld [vmem:[%s429 + $0x158] sm:$0xf]
        %v2010 = vld [vmem:[%s429 + $0x17c] sm:$0xf]
        %v2011 = vld [vmem:[%s429 + $0x1a0] sm:$0xf]
        %v2012 = vld [vmem:[%s429 + $0x1c4] sm:$0xf]
        %v2013 = vld [vmem:[%s429 + $0x1e8] sm:$0xf]
        %v2014 = vld [vmem:[%s429 + $0x20c] sm:$0xf]
        %v2015 = vld [vmem:[%s429 + $0x230] sm:$0xf]
        %v2032 = vunpack.c.l.b16 %v2000
        %v2033 = vunpack.c.l.b16 %v2001
        %v2034 = vunpack.c.l.b16 %v2002
        %v2035 = vunpack.c.l.b16 %v2003
        %v2036 = vunpack.c.l.b16 %v2004
        %v2037 = vunpack.c.l.b16 %v2005
        %v2038 = vunpack.c.l.b16 %v2006
        %v2039 = vunpack.c.l.b16 %v2007
        %v2040 = vunpack.c.l.b16 %v2008
        %v2041 = vunpack.c.l.b16 %v2009
        %v2042 = vunpack.c.l.b16 %v2010
        %v2043 = vunpack.c.l.b16 %v2011
        %v2044 = vunpack.c.l.b16 %v2012
        %v2045 = vunpack.c.l.b16 %v2013
        %v2046 = vunpack.c.l.b16 %v2014
        %v2047 = vunpack.c.l.b16 %v2015
        %v2048 = vpack.c.b16 %v2033, %v2032
        %v2049 = vpack.c.b16 %v2035, %v2034
        %v2050 = vpack.c.b16 %v2037, %v2036
        %v2051 = vpack.c.b16 %v2039, %v2038
        %v2052 = vpack.c.b16 %v2041, %v2040
        %v2053 = vpack.c.b16 %v2043, %v2042
        %v2054 = vpack.c.b16 %v2045, %v2044
        %v2055 = vpack.c.b16 %v2047, %v2046
        %2064 = vmatprep.subr.bf16.mxu0 0
        %2065 = vmatpush1.bf16.msra.mxu0 %v2055
        %2066 = vmatprep.subr.bf16.mxu0 0
        %2067 = vmatpush1.bf16.msra.mxu0 %v2054
        %2068 = vmatprep.subr.bf16.mxu0 0
        %2069 = vmatpush1.bf16.msra.mxu0 %v2053
        %2070 = vmatprep.subr.bf16.mxu0 0
        %2071 = vmatpush1.bf16.msra.mxu0 %v2052
        %2072 = vmatprep.subr.bf16.mxu0 0
        %2073 = vmatpush1.bf16.msra.mxu0 %v2051
        %2074 = vmatprep.subr.bf16.mxu0 0
        %2075 = vmatpush1.bf16.msra.mxu0 %v2050
        %2076 = vmatprep.subr.bf16.mxu0 0
        %2077 = vmatpush1.bf16.msra.mxu0 %v2049
        %2078 = vmatprep.subr.bf16.mxu0 0
        %2079 = vmatpush1.bf16.msra.mxu0 %v2048
        %2080 = vmatprep.subr.bf16.mxu0 0
        %2081 = vmatpush2.bf16.msra.mxu0 0
        %2082 = vmatprep.subr.bf16.mxu0 0
        %2083 = vmatpush2.bf16.msra.mxu0 0
        %2084 = vmatprep.subr.bf16.mxu0 0
        %2085 = vmatpush2.bf16.msra.mxu0 0
        %2086 = vmatprep.subr.bf16.mxu0 0
        %2087 = vmatpush2.bf16.msra.mxu0 0
        %2088 = vmatprep.subr.bf16.mxu0 0
        %2089 = vmatpush2.bf16.msra.mxu0 0
        %2090 = vmatprep.subr.bf16.mxu0 0
        %2091 = vmatpush2.bf16.msra.mxu0 0
        %2092 = vmatprep.subr.bf16.mxu0 0
        %2093 = vmatpush2.bf16.msra.mxu0 0
        %2094 = vmatprep.subr.bf16.mxu0 0
        %2095 = vmatpush2.bf16.msra.mxu0 0
        %2096 = vmatprep.mubr.bf16.mxu0 0
        %2097 = vmatmul.mubr.bf16.gmra.mxu0 %v410
        %v2098 = vpop.f32.mrf.mxu0
        %v2099 = vadd.f32 0.0, %v2098
        %v2100 = vpop.f32.mrf.mxu0
        %v2101 = vpop.f32.mrf.mxu0
        %v2102 = vpop.f32.mrf.mxu0
        %2103 = vdwg.mxu0
        %v2120 = vunpack.c.l.b16 %v1984
        %v2121 = vunpack.c.l.b16 %v1985
        %v2122 = vunpack.c.l.b16 %v1986
        %v2123 = vunpack.c.l.b16 %v1987
        %v2124 = vunpack.c.l.b16 %v1988
        %v2125 = vunpack.c.l.b16 %v1989
        %v2126 = vunpack.c.l.b16 %v1990
        %v2127 = vunpack.c.l.b16 %v1991
        %v2128 = vunpack.c.l.b16 %v1992
        %v2129 = vunpack.c.l.b16 %v1993
        %v2130 = vunpack.c.l.b16 %v1994
        %v2131 = vunpack.c.l.b16 %v1995
        %v2132 = vunpack.c.l.b16 %v1996
        %v2133 = vunpack.c.l.b16 %v1997
        %v2134 = vunpack.c.l.b16 %v1998
        %v2135 = vunpack.c.l.b16 %v1999
        %v2136 = vpack.c.b16 %v2121, %v2120
        %v2137 = vpack.c.b16 %v2123, %v2122
        %v2138 = vpack.c.b16 %v2125, %v2124
        %v2139 = vpack.c.b16 %v2127, %v2126
        %v2140 = vpack.c.b16 %v2129, %v2128
        %v2141 = vpack.c.b16 %v2131, %v2130
        %v2142 = vpack.c.b16 %v2133, %v2132
        %v2143 = vpack.c.b16 %v2135, %v2134
        %2152 = vmatprep.subr.bf16.mxu0 0
        %2153 = vmatpush1.bf16.msra.mxu0 %v2143
        %2154 = vmatprep.subr.bf16.mxu0 0
        %2155 = vmatpush1.bf16.msra.mxu0 %v2142
        %2156 = vmatprep.subr.bf16.mxu0 0
        %2157 = vmatpush1.bf16.msra.mxu0 %v2141
        %2158 = vmatprep.subr.bf16.mxu0 0
        %2159 = vmatpush1.bf16.msra.mxu0 %v2140
        %2160 = vmatprep.subr.bf16.mxu0 0
        %2161 = vmatpush1.bf16.msra.mxu0 %v2139
        %2162 = vmatprep.subr.bf16.mxu0 0
        %2163 = vmatpush1.bf16.msra.mxu0 %v2138
        %2164 = vmatprep.subr.bf16.mxu0 0
        %2165 = vmatpush1.bf16.msra.mxu0 %v2137
        %2166 = vmatprep.subr.bf16.mxu0 0
        %2167 = vmatpush1.bf16.msra.mxu0 %v2136
        %2168 = vmatprep.subr.bf16.mxu0 0
        %2169 = vmatpush2.bf16.msra.mxu0 0
        %2170 = vmatprep.subr.bf16.mxu0 0
        %2171 = vmatpush2.bf16.msra.mxu0 0
        %2172 = vmatprep.subr.bf16.mxu0 0
        %2173 = vmatpush2.bf16.msra.mxu0 0
        %2174 = vmatprep.subr.bf16.mxu0 0
        %2175 = vmatpush2.bf16.msra.mxu0 0
        %2176 = vmatprep.subr.bf16.mxu0 0
        %2177 = vmatpush2.bf16.msra.mxu0 0
        %2178 = vmatprep.subr.bf16.mxu0 0
        %2179 = vmatpush2.bf16.msra.mxu0 0
        %2180 = vmatprep.subr.bf16.mxu0 0
        %2181 = vmatpush2.bf16.msra.mxu0 0
        %2182 = vmatprep.subr.bf16.mxu0 0
        %2183 = vmatpush2.bf16.msra.mxu0 0
        %2184 = vmatprep.mubr.bf16.mxu0 0
        %2185 = vmatmul.mubr.bf16.gmra.mxu0 %v408
        %v2186 = vpop.f32.mrf.mxu0
        %v2187 = vadd.f32 %v2099, %v2186
        %v2188 = vpop.f32.mrf.mxu0
        %v2189 = vpop.f32.mrf.mxu0
        %v2190 = vpop.f32.mrf.mxu0
        %2191 = vdwg.mxu0
        %v2192 = vld [vmem:[%s622 + $0x14] sm:$0xf]
        %v2193 = vld [vmem:[%s622 + $0x38] sm:$0xf]
        %v2194 = vld [vmem:[%s622 + $0x5c] sm:$0xf]
        %v2195 = vld [vmem:[%s622 + $0x80] sm:$0xf]
        %v2196 = vld [vmem:[%s622 + $0xa4] sm:$0xf]
        %v2197 = vld [vmem:[%s622 + $0xc8] sm:$0xf]
        %v2198 = vld [vmem:[%s622 + $0xec] sm:$0xf]
        %v2199 = vld [vmem:[%s622 + $0x110] sm:$0xf]
        %v2200 = vld [vmem:[%s622 + $0x134] sm:$0xf]
        %v2201 = vld [vmem:[%s622 + $0x158] sm:$0xf]
        %v2202 = vld [vmem:[%s622 + $0x17c] sm:$0xf]
        %v2203 = vld [vmem:[%s622 + $0x1a0] sm:$0xf]
        %v2204 = vld [vmem:[%s622 + $0x1c4] sm:$0xf]
        %v2205 = vld [vmem:[%s622 + $0x1e8] sm:$0xf]
        %v2206 = vld [vmem:[%s622 + $0x20c] sm:$0xf]
        %v2207 = vld [vmem:[%s622 + $0x230] sm:$0xf]
        %v2224 = vunpack.c.l.b16 %v2192
        %v2225 = vunpack.c.l.b16 %v2193
        %v2226 = vunpack.c.l.b16 %v2194
        %v2227 = vunpack.c.l.b16 %v2195
        %v2228 = vunpack.c.l.b16 %v2196
        %v2229 = vunpack.c.l.b16 %v2197
        %v2230 = vunpack.c.l.b16 %v2198
        %v2231 = vunpack.c.l.b16 %v2199
        %v2232 = vunpack.c.l.b16 %v2200
        %v2233 = vunpack.c.l.b16 %v2201
        %v2234 = vunpack.c.l.b16 %v2202
        %v2235 = vunpack.c.l.b16 %v2203
        %v2236 = vunpack.c.l.b16 %v2204
        %v2237 = vunpack.c.l.b16 %v2205
        %v2238 = vunpack.c.l.b16 %v2206
        %v2239 = vunpack.c.l.b16 %v2207
        %v2240 = vpack.c.b16 %v2225, %v2224
        %v2241 = vpack.c.b16 %v2227, %v2226
        %v2242 = vpack.c.b16 %v2229, %v2228
        %v2243 = vpack.c.b16 %v2231, %v2230
        %v2244 = vpack.c.b16 %v2233, %v2232
        %v2245 = vpack.c.b16 %v2235, %v2234
        %v2246 = vpack.c.b16 %v2237, %v2236
        %v2247 = vpack.c.b16 %v2239, %v2238
        %2256 = vmatprep.subr.bf16.mxu0 0
        %2257 = vmatpush1.bf16.msra.mxu0 %v2247
        %2258 = vmatprep.subr.bf16.mxu0 0
        %2259 = vmatpush1.bf16.msra.mxu0 %v2246
        %2260 = vmatprep.subr.bf16.mxu0 0
        %2261 = vmatpush1.bf16.msra.mxu0 %v2245
        %2262 = vmatprep.subr.bf16.mxu0 0
        %2263 = vmatpush1.bf16.msra.mxu0 %v2244
        %2264 = vmatprep.subr.bf16.mxu0 0
        %2265 = vmatpush1.bf16.msra.mxu0 %v2243
        %2266 = vmatprep.subr.bf16.mxu0 0
        %2267 = vmatpush1.bf16.msra.mxu0 %v2242
        %2268 = vmatprep.subr.bf16.mxu0 0
        %2269 = vmatpush1.bf16.msra.mxu0 %v2241
        %2270 = vmatprep.subr.bf16.mxu0 0
        %2271 = vmatpush1.bf16.msra.mxu0 %v2240
        %2272 = vmatprep.subr.bf16.mxu0 0
        %2273 = vmatpush2.bf16.msra.mxu0 0
        %2274 = vmatprep.subr.bf16.mxu0 0
        %2275 = vmatpush2.bf16.msra.mxu0 0
        %2276 = vmatprep.subr.bf16.mxu0 0
        %2277 = vmatpush2.bf16.msra.mxu0 0
        %2278 = vmatprep.subr.bf16.mxu0 0
        %2279 = vmatpush2.bf16.msra.mxu0 0
        %2280 = vmatprep.subr.bf16.mxu0 0
        %2281 = vmatpush2.bf16.msra.mxu0 0
        %2282 = vmatprep.subr.bf16.mxu0 0
        %2283 = vmatpush2.bf16.msra.mxu0 0
        %2284 = vmatprep.subr.bf16.mxu0 0
        %2285 = vmatpush2.bf16.msra.mxu0 0
        %2286 = vmatprep.subr.bf16.mxu0 0
        %2287 = vmatpush2.bf16.msra.mxu0 0
        %2288 = vmatprep.mubr.bf16.mxu0 0
        %2289 = vmatmul.mubr.bf16.gmra.mxu0 %v412
        %v2290 = vpop.f32.mrf.mxu0
        %v2291 = vadd.f32 0.0, %v2290
        %v2292 = vpop.f32.mrf.mxu0
        %v2293 = vpop.f32.mrf.mxu0
        %v2294 = vpop.f32.mrf.mxu0
        %2295 = vdwg.mxu0
        %v2296 = vadd.f32 %v2187, %v2291
        %v2297 = vmax.f32 %v1983, %v2296
        %v2298 = vld [vmem:[%s352 + $0x18] sm:$0xf]
        %v2299 = vld [vmem:[%s352 + $0x3c] sm:$0xf]
        %v2300 = vld [vmem:[%s352 + $0x60] sm:$0xf]
        %v2301 = vld [vmem:[%s352 + $0x84] sm:$0xf]
        %v2302 = vld [vmem:[%s352 + $0xa8] sm:$0xf]
        %v2303 = vld [vmem:[%s352 + $0xcc] sm:$0xf]
        %v2304 = vld [vmem:[%s352 + $0xf0] sm:$0xf]
        %v2305 = vld [vmem:[%s352 + $0x114] sm:$0xf]
        %v2306 = vld [vmem:[%s352 + $0x138] sm:$0xf]
        %v2307 = vld [vmem:[%s352 + $0x15c] sm:$0xf]
        %v2308 = vld [vmem:[%s352 + $0x180] sm:$0xf]
        %v2309 = vld [vmem:[%s352 + $0x1a4] sm:$0xf]
        %v2310 = vld [vmem:[%s352 + $0x1c8] sm:$0xf]
        %v2311 = vld [vmem:[%s352 + $0x1ec] sm:$0xf]
        %v2312 = vld [vmem:[%s352 + $0x210] sm:$0xf]
        %v2313 = vld [vmem:[%s352 + $0x234] sm:$0xf]
        %v2314 = vld [vmem:[%s429 + $0x18] sm:$0xf]
        %v2315 = vld [vmem:[%s429 + $0x3c] sm:$0xf]
        %v2316 = vld [vmem:[%s429 + $0x60] sm:$0xf]
        %v2317 = vld [vmem:[%s429 + $0x84] sm:$0xf]
        %v2318 = vld [vmem:[%s429 + $0xa8] sm:$0xf]
        %v2319 = vld [vmem:[%s429 + $0xcc] sm:$0xf]
        %v2320 = vld [vmem:[%s429 + $0xf0] sm:$0xf]
        %v2321 = vld [vmem:[%s429 + $0x114] sm:$0xf]
        %v2322 = vld [vmem:[%s429 + $0x138] sm:$0xf]
        %v2323 = vld [vmem:[%s429 + $0x15c] sm:$0xf]
        %v2324 = vld [vmem:[%s429 + $0x180] sm:$0xf]
        %v2325 = vld [vmem:[%s429 + $0x1a4] sm:$0xf]
        %v2326 = vld [vmem:[%s429 + $0x1c8] sm:$0xf]
        %v2327 = vld [vmem:[%s429 + $0x1ec] sm:$0xf]
        %v2328 = vld [vmem:[%s429 + $0x210] sm:$0xf]
        %v2329 = vld [vmem:[%s429 + $0x234] sm:$0xf]
        %v2346 = vunpack.c.l.b16 %v2314
        %v2347 = vunpack.c.l.b16 %v2315
        %v2348 = vunpack.c.l.b16 %v2316
        %v2349 = vunpack.c.l.b16 %v2317
        %v2350 = vunpack.c.l.b16 %v2318
        %v2351 = vunpack.c.l.b16 %v2319
        %v2352 = vunpack.c.l.b16 %v2320
        %v2353 = vunpack.c.l.b16 %v2321
        %v2354 = vunpack.c.l.b16 %v2322
        %v2355 = vunpack.c.l.b16 %v2323
        %v2356 = vunpack.c.l.b16 %v2324
        %v2357 = vunpack.c.l.b16 %v2325
        %v2358 = vunpack.c.l.b16 %v2326
        %v2359 = vunpack.c.l.b16 %v2327
        %v2360 = vunpack.c.l.b16 %v2328
        %v2361 = vunpack.c.l.b16 %v2329
        %v2362 = vpack.c.b16 %v2347, %v2346
        %v2363 = vpack.c.b16 %v2349, %v2348
        %v2364 = vpack.c.b16 %v2351, %v2350
        %v2365 = vpack.c.b16 %v2353, %v2352
        %v2366 = vpack.c.b16 %v2355, %v2354
        %v2367 = vpack.c.b16 %v2357, %v2356
        %v2368 = vpack.c.b16 %v2359, %v2358
        %v2369 = vpack.c.b16 %v2361, %v2360
        %2378 = vmatprep.subr.bf16.mxu0 0
        %2379 = vmatpush1.bf16.msra.mxu0 %v2369
        %2380 = vmatprep.subr.bf16.mxu0 0
        %2381 = vmatpush1.bf16.msra.mxu0 %v2368
        %2382 = vmatprep.subr.bf16.mxu0 0
        %2383 = vmatpush1.bf16.msra.mxu0 %v2367
        %2384 = vmatprep.subr.bf16.mxu0 0
        %2385 = vmatpush1.bf16.msra.mxu0 %v2366
        %2386 = vmatprep.subr.bf16.mxu0 0
        %2387 = vmatpush1.bf16.msra.mxu0 %v2365
        %2388 = vmatprep.subr.bf16.mxu0 0
        %2389 = vmatpush1.bf16.msra.mxu0 %v2364
        %2390 = vmatprep.subr.bf16.mxu0 0
        %2391 = vmatpush1.bf16.msra.mxu0 %v2363
        %2392 = vmatprep.subr.bf16.mxu0 0
        %2393 = vmatpush1.bf16.msra.mxu0 %v2362
        %2394 = vmatprep.subr.bf16.mxu0 0
        %2395 = vmatpush2.bf16.msra.mxu0 0
        %2396 = vmatprep.subr.bf16.mxu0 0
        %2397 = vmatpush2.bf16.msra.mxu0 0
        %2398 = vmatprep.subr.bf16.mxu0 0
        %2399 = vmatpush2.bf16.msra.mxu0 0
        %2400 = vmatprep.subr.bf16.mxu0 0
        %2401 = vmatpush2.bf16.msra.mxu0 0
        %2402 = vmatprep.subr.bf16.mxu0 0
        %2403 = vmatpush2.bf16.msra.mxu0 0
        %2404 = vmatprep.subr.bf16.mxu0 0
        %2405 = vmatpush2.bf16.msra.mxu0 0
        %2406 = vmatprep.subr.bf16.mxu0 0
        %2407 = vmatpush2.bf16.msra.mxu0 0
        %2408 = vmatprep.subr.bf16.mxu0 0
        %2409 = vmatpush2.bf16.msra.mxu0 0
        %2410 = vmatprep.mubr.bf16.mxu0 0
        %2411 = vmatmul.mubr.bf16.gmra.mxu0 %v410
        %v2412 = vpop.f32.mrf.mxu0
        %v2413 = vadd.f32 0.0, %v2412
        %v2414 = vpop.f32.mrf.mxu0
        %v2415 = vpop.f32.mrf.mxu0
        %v2416 = vpop.f32.mrf.mxu0
        %2417 = vdwg.mxu0
        %v2434 = vunpack.c.l.b16 %v2298
        %v2435 = vunpack.c.l.b16 %v2299
        %v2436 = vunpack.c.l.b16 %v2300
        %v2437 = vunpack.c.l.b16 %v2301
        %v2438 = vunpack.c.l.b16 %v2302
        %v2439 = vunpack.c.l.b16 %v2303
        %v2440 = vunpack.c.l.b16 %v2304
        %v2441 = vunpack.c.l.b16 %v2305
        %v2442 = vunpack.c.l.b16 %v2306
        %v2443 = vunpack.c.l.b16 %v2307
        %v2444 = vunpack.c.l.b16 %v2308
        %v2445 = vunpack.c.l.b16 %v2309
        %v2446 = vunpack.c.l.b16 %v2310
        %v2447 = vunpack.c.l.b16 %v2311
        %v2448 = vunpack.c.l.b16 %v2312
        %v2449 = vunpack.c.l.b16 %v2313
        %v2450 = vpack.c.b16 %v2435, %v2434
        %v2451 = vpack.c.b16 %v2437, %v2436
        %v2452 = vpack.c.b16 %v2439, %v2438
        %v2453 = vpack.c.b16 %v2441, %v2440
        %v2454 = vpack.c.b16 %v2443, %v2442
        %v2455 = vpack.c.b16 %v2445, %v2444
        %v2456 = vpack.c.b16 %v2447, %v2446
        %v2457 = vpack.c.b16 %v2449, %v2448
        %2466 = vmatprep.subr.bf16.mxu0 0
        %2467 = vmatpush1.bf16.msra.mxu0 %v2457
        %2468 = vmatprep.subr.bf16.mxu0 0
        %2469 = vmatpush1.bf16.msra.mxu0 %v2456
        %2470 = vmatprep.subr.bf16.mxu0 0
        %2471 = vmatpush1.bf16.msra.mxu0 %v2455
        %2472 = vmatprep.subr.bf16.mxu0 0
        %2473 = vmatpush1.bf16.msra.mxu0 %v2454
        %2474 = vmatprep.subr.bf16.mxu0 0
        %2475 = vmatpush1.bf16.msra.mxu0 %v2453
        %2476 = vmatprep.subr.bf16.mxu0 0
        %2477 = vmatpush1.bf16.msra.mxu0 %v2452
        %2478 = vmatprep.subr.bf16.mxu0 0
        %2479 = vmatpush1.bf16.msra.mxu0 %v2451
        %2480 = vmatprep.subr.bf16.mxu0 0
        %2481 = vmatpush1.bf16.msra.mxu0 %v2450
        %2482 = vmatprep.subr.bf16.mxu0 0
        %2483 = vmatpush2.bf16.msra.mxu0 0
        %2484 = vmatprep.subr.bf16.mxu0 0
        %2485 = vmatpush2.bf16.msra.mxu0 0
        %2486 = vmatprep.subr.bf16.mxu0 0
        %2487 = vmatpush2.bf16.msra.mxu0 0
        %2488 = vmatprep.subr.bf16.mxu0 0
        %2489 = vmatpush2.bf16.msra.mxu0 0
        %2490 = vmatprep.subr.bf16.mxu0 0
        %2491 = vmatpush2.bf16.msra.mxu0 0
        %2492 = vmatprep.subr.bf16.mxu0 0
        %2493 = vmatpush2.bf16.msra.mxu0 0
        %2494 = vmatprep.subr.bf16.mxu0 0
        %2495 = vmatpush2.bf16.msra.mxu0 0
        %2496 = vmatprep.subr.bf16.mxu0 0
        %2497 = vmatpush2.bf16.msra.mxu0 0
        %2498 = vmatprep.mubr.bf16.mxu0 0
        %2499 = vmatmul.mubr.bf16.gmra.mxu0 %v408
        %v2500 = vpop.f32.mrf.mxu0
        %v2501 = vadd.f32 %v2413, %v2500
        %v2502 = vpop.f32.mrf.mxu0
        %v2503 = vpop.f32.mrf.mxu0
        %v2504 = vpop.f32.mrf.mxu0
        %2505 = vdwg.mxu0
        %v2506 = vld [vmem:[%s622 + $0x18] sm:$0xf]
        %v2507 = vld [vmem:[%s622 + $0x3c] sm:$0xf]
        %v2508 = vld [vmem:[%s622 + $0x60] sm:$0xf]
        %v2509 = vld [vmem:[%s622 + $0x84] sm:$0xf]
        %v2510 = vld [vmem:[%s622 + $0xa8] sm:$0xf]
        %v2511 = vld [vmem:[%s622 + $0xcc] sm:$0xf]
        %v2512 = vld [vmem:[%s622 + $0xf0] sm:$0xf]
        %v2513 = vld [vmem:[%s622 + $0x114] sm:$0xf]
        %v2514 = vld [vmem:[%s622 + $0x138] sm:$0xf]
        %v2515 = vld [vmem:[%s622 + $0x15c] sm:$0xf]
        %v2516 = vld [vmem:[%s622 + $0x180] sm:$0xf]
        %v2517 = vld [vmem:[%s622 + $0x1a4] sm:$0xf]
        %v2518 = vld [vmem:[%s622 + $0x1c8] sm:$0xf]
        %v2519 = vld [vmem:[%s622 + $0x1ec] sm:$0xf]
        %v2520 = vld [vmem:[%s622 + $0x210] sm:$0xf]
        %v2521 = vld [vmem:[%s622 + $0x234] sm:$0xf]
        %v2538 = vunpack.c.l.b16 %v2506
        %v2539 = vunpack.c.l.b16 %v2507
        %v2540 = vunpack.c.l.b16 %v2508
        %v2541 = vunpack.c.l.b16 %v2509
        %v2542 = vunpack.c.l.b16 %v2510
        %v2543 = vunpack.c.l.b16 %v2511
        %v2544 = vunpack.c.l.b16 %v2512
        %v2545 = vunpack.c.l.b16 %v2513
        %v2546 = vunpack.c.l.b16 %v2514
        %v2547 = vunpack.c.l.b16 %v2515
        %v2548 = vunpack.c.l.b16 %v2516
        %v2549 = vunpack.c.l.b16 %v2517
        %v2550 = vunpack.c.l.b16 %v2518
        %v2551 = vunpack.c.l.b16 %v2519
        %v2552 = vunpack.c.l.b16 %v2520
        %v2553 = vunpack.c.l.b16 %v2521
        %v2554 = vpack.c.b16 %v2539, %v2538
        %v2555 = vpack.c.b16 %v2541, %v2540
        %v2556 = vpack.c.b16 %v2543, %v2542
        %v2557 = vpack.c.b16 %v2545, %v2544
        %v2558 = vpack.c.b16 %v2547, %v2546
        %v2559 = vpack.c.b16 %v2549, %v2548
        %v2560 = vpack.c.b16 %v2551, %v2550
        %v2561 = vpack.c.b16 %v2553, %v2552
        %2570 = vmatprep.subr.bf16.mxu0 0
        %2571 = vmatpush1.bf16.msra.mxu0 %v2561
        %2572 = vmatprep.subr.bf16.mxu0 0
        %2573 = vmatpush1.bf16.msra.mxu0 %v2560
        %2574 = vmatprep.subr.bf16.mxu0 0
        %2575 = vmatpush1.bf16.msra.mxu0 %v2559
        %2576 = vmatprep.subr.bf16.mxu0 0
        %2577 = vmatpush1.bf16.msra.mxu0 %v2558
        %2578 = vmatprep.subr.bf16.mxu0 0
        %2579 = vmatpush1.bf16.msra.mxu0 %v2557
        %2580 = vmatprep.subr.bf16.mxu0 0
        %2581 = vmatpush1.bf16.msra.mxu0 %v2556
        %2582 = vmatprep.subr.bf16.mxu0 0
        %2583 = vmatpush1.bf16.msra.mxu0 %v2555
        %2584 = vmatprep.subr.bf16.mxu0 0
        %2585 = vmatpush1.bf16.msra.mxu0 %v2554
        %2586 = vmatprep.subr.bf16.mxu0 0
        %2587 = vmatpush2.bf16.msra.mxu0 0
        %2588 = vmatprep.subr.bf16.mxu0 0
        %2589 = vmatpush2.bf16.msra.mxu0 0
        %2590 = vmatprep.subr.bf16.mxu0 0
        %2591 = vmatpush2.bf16.msra.mxu0 0
        %2592 = vmatprep.subr.bf16.mxu0 0
        %2593 = vmatpush2.bf16.msra.mxu0 0
        %2594 = vmatprep.subr.bf16.mxu0 0
        %2595 = vmatpush2.bf16.msra.mxu0 0
        %2596 = vmatprep.subr.bf16.mxu0 0
        %2597 = vmatpush2.bf16.msra.mxu0 0
        %2598 = vmatprep.subr.bf16.mxu0 0
        %2599 = vmatpush2.bf16.msra.mxu0 0
        %2600 = vmatprep.subr.bf16.mxu0 0
        %2601 = vmatpush2.bf16.msra.mxu0 0
        %2602 = vmatprep.mubr.bf16.mxu0 0
        %2603 = vmatmul.mubr.bf16.gmra.mxu0 %v412
        %v2604 = vpop.f32.mrf.mxu0
        %v2605 = vadd.f32 0.0, %v2604
        %v2606 = vpop.f32.mrf.mxu0
        %v2607 = vpop.f32.mrf.mxu0
        %v2608 = vpop.f32.mrf.mxu0
        %2609 = vdwg.mxu0
        %v2610 = vadd.f32 %v2501, %v2605
        %v2611 = vmax.f32 %v2297, %v2610
        %v2612 = vld [vmem:[%s352 + $0x1c] sm:$0xf]
        %v2613 = vld [vmem:[%s352 + $0x40] sm:$0xf]
        %v2614 = vld [vmem:[%s352 + $0x64] sm:$0xf]
        %v2615 = vld [vmem:[%s352 + $0x88] sm:$0xf]
        %v2616 = vld [vmem:[%s352 + $0xac] sm:$0xf]
        %v2617 = vld [vmem:[%s352 + $0xd0] sm:$0xf]
        %v2618 = vld [vmem:[%s352 + $0xf4] sm:$0xf]
        %v2619 = vld [vmem:[%s352 + $0x118] sm:$0xf]
        %v2620 = vld [vmem:[%s352 + $0x13c] sm:$0xf]
        %v2621 = vld [vmem:[%s352 + $0x160] sm:$0xf]
        %v2622 = vld [vmem:[%s352 + $0x184] sm:$0xf]
        %v2623 = vld [vmem:[%s352 + $0x1a8] sm:$0xf]
        %v2624 = vld [vmem:[%s352 + $0x1cc] sm:$0xf]
        %v2625 = vld [vmem:[%s352 + $0x1f0] sm:$0xf]
        %v2626 = vld [vmem:[%s352 + $0x214] sm:$0xf]
        %v2627 = vld [vmem:[%s352 + $0x238] sm:$0xf]
        %v2628 = vld [vmem:[%s429 + $0x1c] sm:$0xf]
        %v2629 = vld [vmem:[%s429 + $0x40] sm:$0xf]
        %v2630 = vld [vmem:[%s429 + $0x64] sm:$0xf]
        %v2631 = vld [vmem:[%s429 + $0x88] sm:$0xf]
        %v2632 = vld [vmem:[%s429 + $0xac] sm:$0xf]
        %v2633 = vld [vmem:[%s429 + $0xd0] sm:$0xf]
        %v2634 = vld [vmem:[%s429 + $0xf4] sm:$0xf]
        %v2635 = vld [vmem:[%s429 + $0x118] sm:$0xf]
        %v2636 = vld [vmem:[%s429 + $0x13c] sm:$0xf]
        %v2637 = vld [vmem:[%s429 + $0x160] sm:$0xf]
        %v2638 = vld [vmem:[%s429 + $0x184] sm:$0xf]
        %v2639 = vld [vmem:[%s429 + $0x1a8] sm:$0xf]
        %v2640 = vld [vmem:[%s429 + $0x1cc] sm:$0xf]
        %v2641 = vld [vmem:[%s429 + $0x1f0] sm:$0xf]
        %v2642 = vld [vmem:[%s429 + $0x214] sm:$0xf]
        %v2643 = vld [vmem:[%s429 + $0x238] sm:$0xf]
        %v2660 = vunpack.c.l.b16 %v2628
        %v2661 = vunpack.c.l.b16 %v2629
        %v2662 = vunpack.c.l.b16 %v2630
        %v2663 = vunpack.c.l.b16 %v2631
        %v2664 = vunpack.c.l.b16 %v2632
        %v2665 = vunpack.c.l.b16 %v2633
        %v2666 = vunpack.c.l.b16 %v2634
        %v2667 = vunpack.c.l.b16 %v2635
        %v2668 = vunpack.c.l.b16 %v2636
        %v2669 = vunpack.c.l.b16 %v2637
        %v2670 = vunpack.c.l.b16 %v2638
        %v2671 = vunpack.c.l.b16 %v2639
        %v2672 = vunpack.c.l.b16 %v2640
        %v2673 = vunpack.c.l.b16 %v2641
        %v2674 = vunpack.c.l.b16 %v2642
        %v2675 = vunpack.c.l.b16 %v2643
        %v2676 = vpack.c.b16 %v2661, %v2660
        %v2677 = vpack.c.b16 %v2663, %v2662
        %v2678 = vpack.c.b16 %v2665, %v2664
        %v2679 = vpack.c.b16 %v2667, %v2666
        %v2680 = vpack.c.b16 %v2669, %v2668
        %v2681 = vpack.c.b16 %v2671, %v2670
        %v2682 = vpack.c.b16 %v2673, %v2672
        %v2683 = vpack.c.b16 %v2675, %v2674
        %2692 = vmatprep.subr.bf16.mxu0 0
        %2693 = vmatpush1.bf16.msra.mxu0 %v2683
        %2694 = vmatprep.subr.bf16.mxu0 0
        %2695 = vmatpush1.bf16.msra.mxu0 %v2682
        %2696 = vmatprep.subr.bf16.mxu0 0
        %2697 = vmatpush1.bf16.msra.mxu0 %v2681
        %2698 = vmatprep.subr.bf16.mxu0 0
        %2699 = vmatpush1.bf16.msra.mxu0 %v2680
        %2700 = vmatprep.subr.bf16.mxu0 0
        %2701 = vmatpush1.bf16.msra.mxu0 %v2679
        %2702 = vmatprep.subr.bf16.mxu0 0
        %2703 = vmatpush1.bf16.msra.mxu0 %v2678
        %2704 = vmatprep.subr.bf16.mxu0 0
        %2705 = vmatpush1.bf16.msra.mxu0 %v2677
        %2706 = vmatprep.subr.bf16.mxu0 0
        %2707 = vmatpush1.bf16.msra.mxu0 %v2676
        %2708 = vmatprep.subr.bf16.mxu0 0
        %2709 = vmatpush2.bf16.msra.mxu0 0
        %2710 = vmatprep.subr.bf16.mxu0 0
        %2711 = vmatpush2.bf16.msra.mxu0 0
        %2712 = vmatprep.subr.bf16.mxu0 0
        %2713 = vmatpush2.bf16.msra.mxu0 0
        %2714 = vmatprep.subr.bf16.mxu0 0
        %2715 = vmatpush2.bf16.msra.mxu0 0
        %2716 = vmatprep.subr.bf16.mxu0 0
        %2717 = vmatpush2.bf16.msra.mxu0 0
        %2718 = vmatprep.subr.bf16.mxu0 0
        %2719 = vmatpush2.bf16.msra.mxu0 0
        %2720 = vmatprep.subr.bf16.mxu0 0
        %2721 = vmatpush2.bf16.msra.mxu0 0
        %2722 = vmatprep.subr.bf16.mxu0 0
        %2723 = vmatpush2.bf16.msra.mxu0 0
        %2724 = vmatprep.mubr.bf16.mxu0 0
        %2725 = vmatmul.mubr.bf16.gmra.mxu0 %v410
        %v2726 = vpop.f32.mrf.mxu0
        %v2727 = vadd.f32 0.0, %v2726
        %v2728 = vpop.f32.mrf.mxu0
        %v2729 = vpop.f32.mrf.mxu0
        %v2730 = vpop.f32.mrf.mxu0
        %2731 = vdwg.mxu0
        %v2748 = vunpack.c.l.b16 %v2612
        %v2749 = vunpack.c.l.b16 %v2613
        %v2750 = vunpack.c.l.b16 %v2614
        %v2751 = vunpack.c.l.b16 %v2615
        %v2752 = vunpack.c.l.b16 %v2616
        %v2753 = vunpack.c.l.b16 %v2617
        %v2754 = vunpack.c.l.b16 %v2618
        %v2755 = vunpack.c.l.b16 %v2619
        %v2756 = vunpack.c.l.b16 %v2620
        %v2757 = vunpack.c.l.b16 %v2621
        %v2758 = vunpack.c.l.b16 %v2622
        %v2759 = vunpack.c.l.b16 %v2623
        %v2760 = vunpack.c.l.b16 %v2624
        %v2761 = vunpack.c.l.b16 %v2625
        %v2762 = vunpack.c.l.b16 %v2626
        %v2763 = vunpack.c.l.b16 %v2627
        %v2764 = vpack.c.b16 %v2749, %v2748
        %v2765 = vpack.c.b16 %v2751, %v2750
        %v2766 = vpack.c.b16 %v2753, %v2752
        %v2767 = vpack.c.b16 %v2755, %v2754
        %v2768 = vpack.c.b16 %v2757, %v2756
        %v2769 = vpack.c.b16 %v2759, %v2758
        %v2770 = vpack.c.b16 %v2761, %v2760
        %v2771 = vpack.c.b16 %v2763, %v2762
        %2780 = vmatprep.subr.bf16.mxu0 0
        %2781 = vmatpush1.bf16.msra.mxu0 %v2771
        %2782 = vmatprep.subr.bf16.mxu0 0
        %2783 = vmatpush1.bf16.msra.mxu0 %v2770
        %2784 = vmatprep.subr.bf16.mxu0 0
        %2785 = vmatpush1.bf16.msra.mxu0 %v2769
        %2786 = vmatprep.subr.bf16.mxu0 0
        %2787 = vmatpush1.bf16.msra.mxu0 %v2768
        %2788 = vmatprep.subr.bf16.mxu0 0
        %2789 = vmatpush1.bf16.msra.mxu0 %v2767
        %2790 = vmatprep.subr.bf16.mxu0 0
        %2791 = vmatpush1.bf16.msra.mxu0 %v2766
        %2792 = vmatprep.subr.bf16.mxu0 0
        %2793 = vmatpush1.bf16.msra.mxu0 %v2765
        %2794 = vmatprep.subr.bf16.mxu0 0
        %2795 = vmatpush1.bf16.msra.mxu0 %v2764
        %2796 = vmatprep.subr.bf16.mxu0 0
        %2797 = vmatpush2.bf16.msra.mxu0 0
        %2798 = vmatprep.subr.bf16.mxu0 0
        %2799 = vmatpush2.bf16.msra.mxu0 0
        %2800 = vmatprep.subr.bf16.mxu0 0
        %2801 = vmatpush2.bf16.msra.mxu0 0
        %2802 = vmatprep.subr.bf16.mxu0 0
        %2803 = vmatpush2.bf16.msra.mxu0 0
        %2804 = vmatprep.subr.bf16.mxu0 0
        %2805 = vmatpush2.bf16.msra.mxu0 0
        %2806 = vmatprep.subr.bf16.mxu0 0
        %2807 = vmatpush2.bf16.msra.mxu0 0
        %2808 = vmatprep.subr.bf16.mxu0 0
        %2809 = vmatpush2.bf16.msra.mxu0 0
        %2810 = vmatprep.subr.bf16.mxu0 0
        %2811 = vmatpush2.bf16.msra.mxu0 0
        %2812 = vmatprep.mubr.bf16.mxu0 0
        %2813 = vmatmul.mubr.bf16.gmra.mxu0 %v408
        %v2814 = vpop.f32.mrf.mxu0
        %v2815 = vadd.f32 %v2727, %v2814
        %v2816 = vpop.f32.mrf.mxu0
        %v2817 = vpop.f32.mrf.mxu0
        %v2818 = vpop.f32.mrf.mxu0
        %2819 = vdwg.mxu0
        %v2820 = vld [vmem:[%s622 + $0x1c] sm:$0xf]
        %v2821 = vld [vmem:[%s622 + $0x40] sm:$0xf]
        %v2822 = vld [vmem:[%s622 + $0x64] sm:$0xf]
        %v2823 = vld [vmem:[%s622 + $0x88] sm:$0xf]
        %v2824 = vld [vmem:[%s622 + $0xac] sm:$0xf]
        %v2825 = vld [vmem:[%s622 + $0xd0] sm:$0xf]
        %v2826 = vld [vmem:[%s622 + $0xf4] sm:$0xf]
        %v2827 = vld [vmem:[%s622 + $0x118] sm:$0xf]
        %v2828 = vld [vmem:[%s622 + $0x13c] sm:$0xf]
        %v2829 = vld [vmem:[%s622 + $0x160] sm:$0xf]
        %v2830 = vld [vmem:[%s622 + $0x184] sm:$0xf]
        %v2831 = vld [vmem:[%s622 + $0x1a8] sm:$0xf]
        %v2832 = vld [vmem:[%s622 + $0x1cc] sm:$0xf]
        %v2833 = vld [vmem:[%s622 + $0x1f0] sm:$0xf]
        %v2834 = vld [vmem:[%s622 + $0x214] sm:$0xf]
        %v2835 = vld [vmem:[%s622 + $0x238] sm:$0xf]
        %v2852 = vunpack.c.l.b16 %v2820
        %v2853 = vunpack.c.l.b16 %v2821
        %v2854 = vunpack.c.l.b16 %v2822
        %v2855 = vunpack.c.l.b16 %v2823
        %v2856 = vunpack.c.l.b16 %v2824
        %v2857 = vunpack.c.l.b16 %v2825
        %v2858 = vunpack.c.l.b16 %v2826
        %v2859 = vunpack.c.l.b16 %v2827
        %v2860 = vunpack.c.l.b16 %v2828
        %v2861 = vunpack.c.l.b16 %v2829
        %v2862 = vunpack.c.l.b16 %v2830
        %v2863 = vunpack.c.l.b16 %v2831
        %v2864 = vunpack.c.l.b16 %v2832
        %v2865 = vunpack.c.l.b16 %v2833
        %v2866 = vunpack.c.l.b16 %v2834
        %v2867 = vunpack.c.l.b16 %v2835
        %v2868 = vpack.c.b16 %v2853, %v2852
        %v2869 = vpack.c.b16 %v2855, %v2854
        %v2870 = vpack.c.b16 %v2857, %v2856
        %v2871 = vpack.c.b16 %v2859, %v2858
        %v2872 = vpack.c.b16 %v2861, %v2860
        %v2873 = vpack.c.b16 %v2863, %v2862
        %v2874 = vpack.c.b16 %v2865, %v2864
        %v2875 = vpack.c.b16 %v2867, %v2866
        %2884 = vmatprep.subr.bf16.mxu0 0
        %2885 = vmatpush1.bf16.msra.mxu0 %v2875
        %2886 = vmatprep.subr.bf16.mxu0 0
        %2887 = vmatpush1.bf16.msra.mxu0 %v2874
        %2888 = vmatprep.subr.bf16.mxu0 0
        %2889 = vmatpush1.bf16.msra.mxu0 %v2873
        %2890 = vmatprep.subr.bf16.mxu0 0
        %2891 = vmatpush1.bf16.msra.mxu0 %v2872
        %2892 = vmatprep.subr.bf16.mxu0 0
        %2893 = vmatpush1.bf16.msra.mxu0 %v2871
        %2894 = vmatprep.subr.bf16.mxu0 0
        %2895 = vmatpush1.bf16.msra.mxu0 %v2870
        %2896 = vmatprep.subr.bf16.mxu0 0
        %2897 = vmatpush1.bf16.msra.mxu0 %v2869
        %2898 = vmatprep.subr.bf16.mxu0 0
        %2899 = vmatpush1.bf16.msra.mxu0 %v2868
        %2900 = vmatprep.subr.bf16.mxu0 0
        %2901 = vmatpush2.bf16.msra.mxu0 0
        %2902 = vmatprep.subr.bf16.mxu0 0
        %2903 = vmatpush2.bf16.msra.mxu0 0
        %2904 = vmatprep.subr.bf16.mxu0 0
        %2905 = vmatpush2.bf16.msra.mxu0 0
        %2906 = vmatprep.subr.bf16.mxu0 0
        %2907 = vmatpush2.bf16.msra.mxu0 0
        %2908 = vmatprep.subr.bf16.mxu0 0
        %2909 = vmatpush2.bf16.msra.mxu0 0
        %2910 = vmatprep.subr.bf16.mxu0 0
        %2911 = vmatpush2.bf16.msra.mxu0 0
        %2912 = vmatprep.subr.bf16.mxu0 0
        %2913 = vmatpush2.bf16.msra.mxu0 0
        %2914 = vmatprep.subr.bf16.mxu0 0
        %2915 = vmatpush2.bf16.msra.mxu0 0
        %2916 = vmatprep.mubr.bf16.mxu0 0
        %2917 = vmatmul.mubr.bf16.gmra.mxu0 %v412
        %v2918 = vpop.f32.mrf.mxu0
        %v2919 = vadd.f32 0.0, %v2918
        %v2920 = vpop.f32.mrf.mxu0
        %v2921 = vpop.f32.mrf.mxu0
        %v2922 = vpop.f32.mrf.mxu0
        %2923 = vdwg.mxu0
        %v2924 = vadd.f32 %v2815, %v2919
        %v2925 = vmax.f32 %v2611, %v2924
        %v2926 = vld [vmem:[%s352 + $0x20] sm:$0xf]
        %v2927 = vld [vmem:[%s352 + $0x44] sm:$0xf]
        %v2928 = vld [vmem:[%s352 + $0x68] sm:$0xf]
        %v2929 = vld [vmem:[%s352 + $0x8c] sm:$0xf]
        %v2930 = vld [vmem:[%s352 + $0xb0] sm:$0xf]
        %v2931 = vld [vmem:[%s352 + $0xd4] sm:$0xf]
        %v2932 = vld [vmem:[%s352 + $0xf8] sm:$0xf]
        %v2933 = vld [vmem:[%s352 + $0x11c] sm:$0xf]
        %v2934 = vld [vmem:[%s352 + $0x140] sm:$0xf]
        %v2935 = vld [vmem:[%s352 + $0x164] sm:$0xf]
        %v2936 = vld [vmem:[%s352 + $0x188] sm:$0xf]
        %v2937 = vld [vmem:[%s352 + $0x1ac] sm:$0xf]
        %v2938 = vld [vmem:[%s352 + $0x1d0] sm:$0xf]
        %v2939 = vld [vmem:[%s352 + $0x1f4] sm:$0xf]
        %v2940 = vld [vmem:[%s352 + $0x218] sm:$0xf]
        %v2941 = vld [vmem:[%s352 + $0x23c] sm:$0xf]
        %v2942 = vld [vmem:[%s429 + $0x20] sm:$0xf]
        %v2943 = vld [vmem:[%s429 + $0x44] sm:$0xf]
        %v2944 = vld [vmem:[%s429 + $0x68] sm:$0xf]
        %v2945 = vld [vmem:[%s429 + $0x8c] sm:$0xf]
        %v2946 = vld [vmem:[%s429 + $0xb0] sm:$0xf]
        %v2947 = vld [vmem:[%s429 + $0xd4] sm:$0xf]
        %v2948 = vld [vmem:[%s429 + $0xf8] sm:$0xf]
        %v2949 = vld [vmem:[%s429 + $0x11c] sm:$0xf]
        %v2950 = vld [vmem:[%s429 + $0x140] sm:$0xf]
        %v2951 = vld [vmem:[%s429 + $0x164] sm:$0xf]
        %v2952 = vld [vmem:[%s429 + $0x188] sm:$0xf]
        %v2953 = vld [vmem:[%s429 + $0x1ac] sm:$0xf]
        %v2954 = vld [vmem:[%s429 + $0x1d0] sm:$0xf]
        %v2955 = vld [vmem:[%s429 + $0x1f4] sm:$0xf]
        %v2956 = vld [vmem:[%s429 + $0x218] sm:$0xf]
        %v2957 = vld [vmem:[%s429 + $0x23c] sm:$0xf]
        %v2974 = vunpack.c.l.b16 %v2942
        %v2975 = vunpack.c.l.b16 %v2943
        %v2976 = vunpack.c.l.b16 %v2944
        %v2977 = vunpack.c.l.b16 %v2945
        %v2978 = vunpack.c.l.b16 %v2946
        %v2979 = vunpack.c.l.b16 %v2947
        %v2980 = vunpack.c.l.b16 %v2948
        %v2981 = vunpack.c.l.b16 %v2949
        %v2982 = vunpack.c.l.b16 %v2950
        %v2983 = vunpack.c.l.b16 %v2951
        %v2984 = vunpack.c.l.b16 %v2952
        %v2985 = vunpack.c.l.b16 %v2953
        %v2986 = vunpack.c.l.b16 %v2954
        %v2987 = vunpack.c.l.b16 %v2955
        %v2988 = vunpack.c.l.b16 %v2956
        %v2989 = vunpack.c.l.b16 %v2957
        %v2990 = vpack.c.b16 %v2975, %v2974
        %v2991 = vpack.c.b16 %v2977, %v2976
        %v2992 = vpack.c.b16 %v2979, %v2978
        %v2993 = vpack.c.b16 %v2981, %v2980
        %v2994 = vpack.c.b16 %v2983, %v2982
        %v2995 = vpack.c.b16 %v2985, %v2984
        %v2996 = vpack.c.b16 %v2987, %v2986
        %v2997 = vpack.c.b16 %v2989, %v2988
        %3006 = vmatprep.subr.bf16.mxu0 0
        %3007 = vmatpush1.bf16.msra.mxu0 %v2997
        %3008 = vmatprep.subr.bf16.mxu0 0
        %3009 = vmatpush1.bf16.msra.mxu0 %v2996
        %3010 = vmatprep.subr.bf16.mxu0 0
        %3011 = vmatpush1.bf16.msra.mxu0 %v2995
        %3012 = vmatprep.subr.bf16.mxu0 0
        %3013 = vmatpush1.bf16.msra.mxu0 %v2994
        %3014 = vmatprep.subr.bf16.mxu0 0
        %3015 = vmatpush1.bf16.msra.mxu0 %v2993
        %3016 = vmatprep.subr.bf16.mxu0 0
        %3017 = vmatpush1.bf16.msra.mxu0 %v2992
        %3018 = vmatprep.subr.bf16.mxu0 0
        %3019 = vmatpush1.bf16.msra.mxu0 %v2991
        %3020 = vmatprep.subr.bf16.mxu0 0
        %3021 = vmatpush1.bf16.msra.mxu0 %v2990
        %3022 = vmatprep.subr.bf16.mxu0 0
        %3023 = vmatpush2.bf16.msra.mxu0 0
        %3024 = vmatprep.subr.bf16.mxu0 0
        %3025 = vmatpush2.bf16.msra.mxu0 0
        %3026 = vmatprep.subr.bf16.mxu0 0
        %3027 = vmatpush2.bf16.msra.mxu0 0
        %3028 = vmatprep.subr.bf16.mxu0 0
        %3029 = vmatpush2.bf16.msra.mxu0 0
        %3030 = vmatprep.subr.bf16.mxu0 0
        %3031 = vmatpush2.bf16.msra.mxu0 0
        %3032 = vmatprep.subr.bf16.mxu0 0
        %3033 = vmatpush2.bf16.msra.mxu0 0
        %3034 = vmatprep.subr.bf16.mxu0 0
        %3035 = vmatpush2.bf16.msra.mxu0 0
        %3036 = vmatprep.subr.bf16.mxu0 0
        %3037 = vmatpush2.bf16.msra.mxu0 0
        %3038 = vmatprep.mubr.bf16.mxu0 0
        %3039 = vmatmul.mubr.bf16.gmra.mxu0 %v410
        %v3040 = vpop.f32.mrf.mxu0
        %v3041 = vadd.f32 0.0, %v3040
        %v3042 = vpop.f32.mrf.mxu0
        %v3043 = vpop.f32.mrf.mxu0
        %v3044 = vpop.f32.mrf.mxu0
        %3045 = vdwg.mxu0
        %v3062 = vunpack.c.l.b16 %v2926
        %v3063 = vunpack.c.l.b16 %v2927
        %v3064 = vunpack.c.l.b16 %v2928
        %v3065 = vunpack.c.l.b16 %v2929
        %v3066 = vunpack.c.l.b16 %v2930
        %v3067 = vunpack.c.l.b16 %v2931
        %v3068 = vunpack.c.l.b16 %v2932
        %v3069 = vunpack.c.l.b16 %v2933
        %v3070 = vunpack.c.l.b16 %v2934
        %v3071 = vunpack.c.l.b16 %v2935
        %v3072 = vunpack.c.l.b16 %v2936
        %v3073 = vunpack.c.l.b16 %v2937
        %v3074 = vunpack.c.l.b16 %v2938
        %v3075 = vunpack.c.l.b16 %v2939
        %v3076 = vunpack.c.l.b16 %v2940
        %v3077 = vunpack.c.l.b16 %v2941
        %v3078 = vpack.c.b16 %v3063, %v3062
        %v3079 = vpack.c.b16 %v3065, %v3064
        %v3080 = vpack.c.b16 %v3067, %v3066
        %v3081 = vpack.c.b16 %v3069, %v3068
        %v3082 = vpack.c.b16 %v3071, %v3070
        %v3083 = vpack.c.b16 %v3073, %v3072
        %v3084 = vpack.c.b16 %v3075, %v3074
        %v3085 = vpack.c.b16 %v3077, %v3076
        %3094 = vmatprep.subr.bf16.mxu0 0
        %3095 = vmatpush1.bf16.msra.mxu0 %v3085
        %3096 = vmatprep.subr.bf16.mxu0 0
        %3097 = vmatpush1.bf16.msra.mxu0 %v3084
        %3098 = vmatprep.subr.bf16.mxu0 0
        %3099 = vmatpush1.bf16.msra.mxu0 %v3083
        %3100 = vmatprep.subr.bf16.mxu0 0
        %3101 = vmatpush1.bf16.msra.mxu0 %v3082
        %3102 = vmatprep.subr.bf16.mxu0 0
        %3103 = vmatpush1.bf16.msra.mxu0 %v3081
        %3104 = vmatprep.subr.bf16.mxu0 0
        %3105 = vmatpush1.bf16.msra.mxu0 %v3080
        %3106 = vmatprep.subr.bf16.mxu0 0
        %3107 = vmatpush1.bf16.msra.mxu0 %v3079
        %3108 = vmatprep.subr.bf16.mxu0 0
        %3109 = vmatpush1.bf16.msra.mxu0 %v3078
        %3110 = vmatprep.subr.bf16.mxu0 0
        %3111 = vmatpush2.bf16.msra.mxu0 0
        %3112 = vmatprep.subr.bf16.mxu0 0
        %3113 = vmatpush2.bf16.msra.mxu0 0
        %3114 = vmatprep.subr.bf16.mxu0 0
        %3115 = vmatpush2.bf16.msra.mxu0 0
        %3116 = vmatprep.subr.bf16.mxu0 0
        %3117 = vmatpush2.bf16.msra.mxu0 0
        %3118 = vmatprep.subr.bf16.mxu0 0
        %3119 = vmatpush2.bf16.msra.mxu0 0
        %3120 = vmatprep.subr.bf16.mxu0 0
        %3121 = vmatpush2.bf16.msra.mxu0 0
        %3122 = vmatprep.subr.bf16.mxu0 0
        %3123 = vmatpush2.bf16.msra.mxu0 0
        %3124 = vmatprep.subr.bf16.mxu0 0
        %3125 = vmatpush2.bf16.msra.mxu0 0
        %3126 = vmatprep.mubr.bf16.mxu0 0
        %3127 = vmatmul.mubr.bf16.gmra.mxu0 %v408
        %v3128 = vpop.f32.mrf.mxu0
        %v3129 = vadd.f32 %v3041, %v3128
        %v3130 = vpop.f32.mrf.mxu0
        %v3131 = vpop.f32.mrf.mxu0
        %v3132 = vpop.f32.mrf.mxu0
        %3133 = vdwg.mxu0
        %v3134 = vld [vmem:[%s622 + $0x20] sm:$0xf]
        %v3135 = vld [vmem:[%s622 + $0x44] sm:$0xf]
        %v3136 = vld [vmem:[%s622 + $0x68] sm:$0xf]
        %v3137 = vld [vmem:[%s622 + $0x8c] sm:$0xf]
        %v3138 = vld [vmem:[%s622 + $0xb0] sm:$0xf]
        %v3139 = vld [vmem:[%s622 + $0xd4] sm:$0xf]
        %v3140 = vld [vmem:[%s622 + $0xf8] sm:$0xf]
        %v3141 = vld [vmem:[%s622 + $0x11c] sm:$0xf]
        %v3142 = vld [vmem:[%s622 + $0x140] sm:$0xf]
        %v3143 = vld [vmem:[%s622 + $0x164] sm:$0xf]
        %v3144 = vld [vmem:[%s622 + $0x188] sm:$0xf]
        %v3145 = vld [vmem:[%s622 + $0x1ac] sm:$0xf]
        %v3146 = vld [vmem:[%s622 + $0x1d0] sm:$0xf]
        %v3147 = vld [vmem:[%s622 + $0x1f4] sm:$0xf]
        %v3148 = vld [vmem:[%s622 + $0x218] sm:$0xf]
        %v3149 = vld [vmem:[%s622 + $0x23c] sm:$0xf]
        %v3166 = vunpack.c.l.b16 %v3134
        %v3167 = vunpack.c.l.b16 %v3135
        %v3168 = vunpack.c.l.b16 %v3136
        %v3169 = vunpack.c.l.b16 %v3137
        %v3170 = vunpack.c.l.b16 %v3138
        %v3171 = vunpack.c.l.b16 %v3139
        %v3172 = vunpack.c.l.b16 %v3140
        %v3173 = vunpack.c.l.b16 %v3141
        %v3174 = vunpack.c.l.b16 %v3142
        %v3175 = vunpack.c.l.b16 %v3143
        %v3176 = vunpack.c.l.b16 %v3144
        %v3177 = vunpack.c.l.b16 %v3145
        %v3178 = vunpack.c.l.b16 %v3146
        %v3179 = vunpack.c.l.b16 %v3147
        %v3180 = vunpack.c.l.b16 %v3148
        %v3181 = vunpack.c.l.b16 %v3149
        %v3182 = vpack.c.b16 %v3167, %v3166
        %v3183 = vpack.c.b16 %v3169, %v3168
        %v3184 = vpack.c.b16 %v3171, %v3170
        %v3185 = vpack.c.b16 %v3173, %v3172
        %v3186 = vpack.c.b16 %v3175, %v3174
        %v3187 = vpack.c.b16 %v3177, %v3176
        %v3188 = vpack.c.b16 %v3179, %v3178
        %v3189 = vpack.c.b16 %v3181, %v3180
        %3198 = vmatprep.subr.bf16.mxu0 0
        %3199 = vmatpush1.bf16.msra.mxu0 %v3189
        %3200 = vmatprep.subr.bf16.mxu0 0
        %3201 = vmatpush1.bf16.msra.mxu0 %v3188
        %3202 = vmatprep.subr.bf16.mxu0 0
        %3203 = vmatpush1.bf16.msra.mxu0 %v3187
        %3204 = vmatprep.subr.bf16.mxu0 0
        %3205 = vmatpush1.bf16.msra.mxu0 %v3186
        %3206 = vmatprep.subr.bf16.mxu0 0
        %3207 = vmatpush1.bf16.msra.mxu0 %v3185
        %3208 = vmatprep.subr.bf16.mxu0 0
        %3209 = vmatpush1.bf16.msra.mxu0 %v3184
        %3210 = vmatprep.subr.bf16.mxu0 0
        %3211 = vmatpush1.bf16.msra.mxu0 %v3183
        %3212 = vmatprep.subr.bf16.mxu0 0
        %3213 = vmatpush1.bf16.msra.mxu0 %v3182
        %3214 = vmatprep.subr.bf16.mxu0 0
        %3215 = vmatpush2.bf16.msra.mxu0 0
        %3216 = vmatprep.subr.bf16.mxu0 0
        %3217 = vmatpush2.bf16.msra.mxu0 0
        %3218 = vmatprep.subr.bf16.mxu0 0
        %3219 = vmatpush2.bf16.msra.mxu0 0
        %3220 = vmatprep.subr.bf16.mxu0 0
        %3221 = vmatpush2.bf16.msra.mxu0 0
        %3222 = vmatprep.subr.bf16.mxu0 0
        %3223 = vmatpush2.bf16.msra.mxu0 0
        %3224 = vmatprep.subr.bf16.mxu0 0
        %3225 = vmatpush2.bf16.msra.mxu0 0
        %3226 = vmatprep.subr.bf16.mxu0 0
        %3227 = vmatpush2.bf16.msra.mxu0 0
        %3228 = vmatprep.subr.bf16.mxu0 0
        %3229 = vmatpush2.bf16.msra.mxu0 0
        %3230 = vmatprep.mubr.bf16.mxu0 0
        %3231 = vmatmul.mubr.bf16.gmra.mxu0 %v412
        %v3232 = vpop.f32.mrf.mxu0
        %v3233 = vadd.f32 0.0, %v3232
        %v3234 = vpop.f32.mrf.mxu0
        %v3235 = vpop.f32.mrf.mxu0
        %v3236 = vpop.f32.mrf.mxu0
        %3237 = vdwg.mxu0
        %v3238 = vadd.f32 %v3129, %v3233
        %v3239 = vmax.f32 %v2925, %v3238
        %3240 = vst [vmem:[%s391] sm:$0xff] %v3239
        %s3241 = sand.u32 %s187, 1
        %s3242 = scalar_lea.sflag [#allocation4], %s3241
        %s3243 = sand.u32 %s187, 1
        %s3244 = smul.addr %s3243, 8
        %s3245 = scalar_lea.vmem [#allocation10], %s3244
        // Predicated region
        $region53: #{tpu_custom_call.1} parent=35 // pred_check
          %p3246 = pneg %p197
        $region54: #{tpu_custom_call.1} parent=35 // pred_check_branch
          %3248 = sbr.rel (%p3246) target = $region56
        $region55: #{tpu_custom_call.1} parent=35 // pred_region
          %s3250 = ssub.s32 128, 128
          %3251 = vsyncadd %s3242, %s3250
          %s3252 = smul.addr %s32, 2
          %s3253 = sadd.s32 %s31, %s3252
          %s3254 = smul.addr %s3253, 128
          %s3255 = scalar_lea.hbm %s4, %s3254
          %s3257 = sshll.u32 %s3245, 4
          %s3258 = int_to_ptr.vmem [resolvable:$true] %s3257
          %3260 = dma.vmem_to_hbm [thread:$0]  %s3258, 128, %s3255, %s3242
        $region56: #{tpu_custom_call.1} parent=35 // pred_fallthru
          _
      $region36: #{tpu_custom_call.1} parent=5 // pred_fallthru
        _
      %p3261 = scmp.le.s32.totalorder 2, %s22
      // Predicated region
      $region57: #{tpu_custom_call.1} parent=5 // pred_check
        %p3262 = pneg %p3261
      $region58: #{tpu_custom_call.1} parent=5 // pred_check_branch
        %3264 = sbr.rel (%p3262) target = $region60
      $region59: #{tpu_custom_call.1} parent=5 // pred_region
        %s3265 = ssub.s32 %s22, 2
        // Predicated region
        $region61: #{tpu_custom_call.1} parent=59 // pred_check
          %p3266 = pneg %p203
        $region62: #{tpu_custom_call.1} parent=59 // pred_check_branch
          %3268 = sbr.rel (%p3266) target = $region64
        $region63: #{tpu_custom_call.1} parent=59 // pred_region
          %s3269 = sand.u32 %s188, 1
          %s3270 = scalar_lea.sflag [#allocation4], %s3269
          %s3271 = sand.u32 %s188, 1
          %s3272 = smul.addr %s3271, 8
          %s3273 = scalar_lea.vmem [#allocation10], %s3272
          %3274 = dma.done %s3270, 128
        $region64: #{tpu_custom_call.1} parent=59 // pred_fallthru
          _
      $region60: #{tpu_custom_call.1} parent=5 // pred_fallthru
        _
    $region6: #{tpu_custom_call.1} parent=1 // loop_footer
      %s26 = sadd.s32 1, %s22
    $region7: #{tpu_custom_call.1} parent=1 // loop_footer_branch
      %21 = sbr.rel target = $region3
    $region8: #{tpu_custom_call.1} parent=1 // loop_exit
      _
    %3275 = vsyncpa [#allocation3], 1
    %s3276 = scalar_lea.sflag [#allocation3], 1
    %3277 = vsyncpa %s3276, 1
    %3278 = vsyncpa [#allocation6], 1
    %s3279 = scalar_lea.sflag [#allocation6], 1
    %3280 = vsyncpa %s3279, 1
    %3281 = vsyncpa [#allocation9], 1
    %s3282 = scalar_lea.sflag [#allocation9], 1
    %3283 = vsyncpa %s3282, 1
    %3284 = vsyncpa [#allocation4], 1
    %s3285 = scalar_lea.sflag [#allocation4], 1
    %3286 = vsyncpa %s3285, 1

</llo_original>
